<compile_context>
chip_gen: v6e
topology: v6e:2x2x1
jax: 0.10.0
libtpu: 0.0.40
codegen_flags: <defaults>
</compile_context>

<pallas_src>
import functools
import numpy as np
import jax
import jax.numpy as jnp
from jax.experimental import pallas as pl
from jax.experimental.pallas import tpu as pltpu

EPS = 1e-5
TILE = 256                      # node tile (Q and K) for the fused block kernel
VMEM_LIMIT = 32 * 1024 * 1024   # explicit scoped-VMEM budget, safe on v5e/v6e/v7x
VMEM_SPEC = pl.BlockSpec(memory_space=pltpu.MemorySpace.VMEM)


def _next_pow2(n):
    return 1 << max(0, (int(n) - 1).bit_length())


def _leaky(x, slope):
    return jnp.where(x >= 0, x, slope * x)


# ----------------------------- Pallas kernels ------------------------------ #

def _basic_block_kernel(xq_ref, xk_ref, qm_ref, kmT_ref, keyq_ref, keyk_ref,
                        s1_ref, t1_ref, w1_ref, s2_ref, t2_ref, wc_ref,
                        so_ref, to_ref, wo_ref, *rest,
                        r2, l, slope, band_lo, has_identity):
    """Fully fused BasicBlock: (BN->LReLU->Linear->BN->LReLU->conv proj) on the
    K band tile, banded radius+sequence-window mean aggregation, degree
    normalization, output BN->LReLU->Linear, and residual add.

    TODO(synk): exact CDConv (relative-geometry kernel MLP over kernel_channels,
    orientation features) not provided in the source; implemented as
    radius + sequence-window mean aggregation followed by a learned projection.
    """
    if has_identity:
        si_ref, ti_ref, wi_ref, o_ref, acc_ref, deg_ref = rest
    else:
        o_ref, acc_ref, deg_ref = rest

    q = pl.program_id(0)
    k = pl.program_id(1)

    @pl.when(k == 0)
    def _():
        acc_ref[...] = jnp.zeros_like(acc_ref)
        deg_ref[...] = jnp.zeros_like(deg_ref)

    kk = q + k - band_lo
    valid = jnp.logical_and(kk >= 0, kk < pl.num_programs(0))

    @pl.when(valid)
    def _():
        # K-tile pre-MLP + hoisted conv projection, recomputed in VMEM/vregs
        # (narrow intermediates never stored to HBM).
        xk = xk_ref[...]                                            # (TK, C_in) f32
        h = _leaky(xk * s1_ref[...] + t1_ref[...], slope)
        h = jnp.dot(h.astype(jnp.bfloat16), w1_ref[...],
                    preferred_element_type=jnp.float32)             # (TK, W)
        h = _leaky(h * s2_ref[...] + t2_ref[...], slope)
        hw = jnp.dot(h.astype(jnp.bfloat16), wc_ref[...],
                     preferred_element_type=jnp.float32).astype(jnp.bfloat16)

        # Pairwise squared distances in a single (TQ,8)@(8,TK) MXU matmul over
        # augmented coordinates (the MXU was idle; the VALU was the bottleneck).
        d2 = jnp.dot(qm_ref[...], kmT_ref[...],
                     preferred_element_type=jnp.float32)            # (TQ, TK)

        # Compact strictly-increasing key: |key diff| <= l  <=>
        # same batch AND |seq diff| <= l.
        dkey = keyq_ref[...] - keyk_ref[...]                        # (TQ, TK) i32
        mask = jnp.logical_and(d2 <= r2, jnp.abs(dkey) <= l)
        adj = jnp.where(mask, 1.0, 0.0)                             # f32 0/1

        deg_ref[...] += jnp.sum(adj, axis=-1, keepdims=True)
        acc_ref[...] += jnp.dot(adj.astype(jnp.bfloat16), hw,
                                preferred_element_type=jnp.float32)

    @pl.when(k == pl.num_programs(1) - 1)
    def _():
        agg = acc_ref[...] / jnp.maximum(deg_ref[...], 1.0)         # exact mean
        h = _leaky(agg * so_ref[...] + to_ref[...], slope)          # output BN+LReLU
        out = jnp.dot(h.astype(jnp.bfloat16), wo_ref[...],
                      preferred_element_type=jnp.float32)           # (TQ, C_out)
        xq = xq_ref[...]
        if has_identity:
            hi = _leaky(xq * si_ref[...] + ti_ref[...], slope)
            idt = jnp.dot(hi.astype(jnp.bfloat16), wi_ref[...],
                          preferred_element_type=jnp.float32)
        else:
            idt = xq                                                # c_in == c_out
        o_ref[...] = out + idt                                      # residual add


def _mlp_mid_kernel(x_ref, s1_ref, t1_ref, w1_ref, c1_ref,
                    s2_ref, t2_ref, w2_ref, c2_ref, o_ref, *, slope):
    """Fused feature extractor: BN->LReLU->Linear(+b)->BN->LReLU->Linear(+b)."""
    x = x_ref[...]
    h = _leaky(x * s1_ref[...] + t1_ref[...], slope)
    h = jnp.dot(h.astype(jnp.bfloat16), w1_ref[...],
                preferred_element_type=jnp.float32) + c1_ref[...]
    h = _leaky(h * s2_ref[...] + t2_ref[...], slope)
    o_ref[...] = jnp.dot(h.astype(jnp.bfloat16), w2_ref[...],
                         preferred_element_type=jnp.float32) + c2_ref[...]


# --------------------------- parameter construction ------------------------ #

def init_bn_fold(c):
    # eval-mode BN (gamma=1, beta=0, mean=0, var=1) pre-folded into scale/shift
    scale = jnp.full((1, c), 1.0 / np.sqrt(1.0 + EPS), jnp.float32)
    shift = jnp.zeros((1, c), jnp.float32)
    return dict(scale=scale, shift=shift)


def init_basic_block(key, c_in, c_out, base_width=16.0):
    width = int(c_out * (base_width / 64.0))
    k1, k2, k3, k4 = jax.random.split(key, 4)
    p = dict(
        bn1=init_bn_fold(c_in),
        w1=(0.1 * jax.random.normal(k1, (c_in, width), jnp.float32)).astype(jnp.bfloat16),
        bn2=init_bn_fold(width),
        conv_w=(0.1 * jax.random.normal(k2, (width, width), jnp.float32)).astype(jnp.bfloat16),
        bn_out=init_bn_fold(width),
        w_out=(0.1 * jax.random.normal(k3, (width, c_out), jnp.float32)).astype(jnp.bfloat16),
    )
    if c_in != c_out:
        p['bn_id'] = init_bn_fold(c_in)
        p['w_id'] = (0.1 * jax.random.normal(k4, (c_in, c_out), jnp.float32)).astype(jnp.bfloat16)
    return p


def init_mlp_mid(key, c_in, c_mid, c_out):
    # MLP (mid given, bias=True): BN -> LReLU -> Linear -> BN -> LReLU -> Linear
    k1, k2, k3, k4 = jax.random.split(key, 4)
    return dict(
        bn1=init_bn_fold(c_in),
        w1=(0.1 * jax.random.normal(k1, (c_in, c_mid), jnp.float32)).astype(jnp.bfloat16),
        b1=0.01 * jax.random.normal(k2, (1, c_mid), jnp.float32),
        bn2=init_bn_fold(c_mid),
        w2=(0.1 * jax.random.normal(k3, (c_mid, c_out), jnp.float32)).astype(jnp.bfloat16),
        b2=0.01 * jax.random.normal(k4, (1, c_out), jnp.float32))


def make_model_params(key, geometric_radii, seq_kernel, channels,
                      emb_dim=16, feature_dim=128, base_width=16.0):
    params = {'geometric_radii': list(geometric_radii), 'l': float(seq_kernel)}
    for name in ('ag', 'ab'):
        key, k_emb, k_feat = jax.random.split(key, 3)
        blocks = []
        c_in = emb_dim
        for c_out in channels:
            key, k1, k2 = jax.random.split(key, 3)
            blocks.append(init_basic_block(k1, c_in, c_out, base_width))
            blocks.append(init_basic_block(k2, c_out, c_out, base_width))
            c_in = c_out
        params[name] = dict(
            embedding=0.1 * jax.random.normal(k_emb, (25, emb_dim), jnp.float32),
            blocks=blocks,
            feat=init_mlp_mid(k_feat, channels[-1], max(channels[-1], feature_dim),
                              feature_dim))
    return params


# ---------------------- host-side geometry (per pooling level) ------------- #

def make_geometry(pos, seq, batch, l, tile=TILE):
    """Padded, device-resident geometry shared by both BasicBlocks at a level."""
    pos = np.asarray(pos, np.float32).reshape(-1, 3)
    seq = np.asarray(seq, np.int64).reshape(-1)
    batch = np.asarray(batch, np.int64).reshape(-1)
    n = pos.shape[0]
    nq = _next_pow2(int(np.ceil(max(n, 1) / tile)))   # bucketed -> fewer recompiles
    n_pad = nq * tile
    l_int = int(np.floor(l))

    # Compact strictly-increasing key: within a batch key diffs == seq diffs;
    # across batch boundaries the diff is l+1 (> l).  No int32 overflow.
    if n > 1:
        dseq = np.diff(seq)
        newb = np.diff(batch) != 0
        kdiff = np.where(newb, l_int + 1, dseq)
        key = np.concatenate([[0], np.cumsum(kdiff)]).astype(np.int64)
    else:
        key = np.zeros((n,), np.int64)
    pad_key = int(key.max()) + l_int + 1              # pads never neighbor real nodes
    key_pad = np.full((n_pad,), pad_key, np.int32)
    key_pad[:n] = key.astype(np.int32)

    # Augmented coordinates: d2[i,j] = qmat[i] . kmat[:,j]
    #   qmat row  = [-2x, -2y, -2z, |p|^2, 1, 0, 0, 0]
    #   kmat col  = [  x,   y,   z,     1, |p|^2, 0, 0, 0]
    p2 = np.sum(pos * pos, axis=-1)
    qmat = np.zeros((n_pad, 8), np.float32)
    qmat[:n, 0:3] = -2.0 * pos
    qmat[:n, 3] = p2
    qmat[:n, 4] = 1.0
    kmat = np.zeros((8, n_pad), np.float32)
    kmat[0:3, :n] = pos.T
    kmat[3, :n] = 1.0
    kmat[4, :n] = p2

    return dict(n=n, n_pad=n_pad, nq=nq, l_int=l_int,
                qmat=jnp.asarray(qmat), kmatT=jnp.asarray(kmat),
                key_col=jnp.asarray(key_pad.reshape(n_pad, 1)),
                key_row=jnp.asarray(key_pad.reshape(1, n_pad)))


# ------------------------------- module forwards --------------------------- #

def basic_block_fwd(p, x, geom, r, *, tile=TILE, slope=0.1):
    """One BasicBlock as a single fused, band-limited Pallas kernel."""
    n, n_pad, nq = geom['n'], geom['n_pad'], geom['nq']
    l_int = geom['l_int']
    c_in = x.shape[1]
    width = p['w1'].shape[1]
    c_out = p['w_out'].shape[1]
    has_identity = 'w_id' in p

    x_p = jnp.pad(x, ((0, n_pad - n), (0, 0)))

    band_lo = int(np.ceil(l_int / tile)) if l_int > 0 else 0
    band = 2 * band_lo + 1

    def qmap(qi, ki):
        return (qi, 0)

    def zmap(qi, ki):
        return (0, 0)

    def band_row(qi, ki):
        kk = qi + ki - band_lo
        kk = jnp.minimum(jnp.maximum(kk, 0), nq - 1)
        return (kk, 0)

    def band_col(qi, ki):
        kk = qi + ki - band_lo
        kk = jnp.minimum(jnp.maximum(kk, 0), nq - 1)
        return (0, kk)

    in_specs = [
        pl.BlockSpec((tile, c_in), qmap),        # x   (Q tile, identity branch)
        pl.BlockSpec((tile, c_in), band_row),    # x   (K band tile, pre-MLP)
        pl.BlockSpec((tile, 8), qmap),           # augmented pos (Q tile)
        pl.BlockSpec((8, tile), band_col),       # augmented pos^T (K band tile)
        pl.BlockSpec((tile, 1), qmap),           # key column (Q)
        pl.BlockSpec((1, tile), band_col),       # key row    (K)
        pl.BlockSpec((1, c_in), zmap),           # bn1 scale
        pl.BlockSpec((1, c_in), zmap),           # bn1 shift
        pl.BlockSpec((c_in, width), zmap),       # w1 (bf16)
        pl.BlockSpec((1, width), zmap),          # bn2 scale
        pl.BlockSpec((1, width), zmap),          # bn2 shift
        pl.BlockSpec((width, width), zmap),      # conv_w (bf16)
        pl.BlockSpec((1, width), zmap),          # bn_out scale
        pl.BlockSpec((1, width), zmap),          # bn_out shift
        pl.BlockSpec((width, c_out), zmap),      # w_out (bf16)
    ]
    args = [x_p, x_p, geom['qmat'], geom['kmatT'], geom['key_col'], geom['key_row'],
            p['bn1']['scale'], p['bn1']['shift'], p['w1'],
            p['bn2']['scale'], p['bn2']['shift'], p['conv_w'],
            p['bn_out']['scale'], p['bn_out']['shift'], p['w_out']]
    if has_identity:
        in_specs += [pl.BlockSpec((1, c_in), zmap),
                     pl.BlockSpec((1, c_in), zmap),
                     pl.BlockSpec((c_in, c_out), zmap)]
        args += [p['bn_id']['scale'], p['bn_id']['shift'], p['w_id']]

    out_p = pl.pallas_call(
        functools.partial(_basic_block_kernel,
                          r2=float(r) * float(r), l=l_int, slope=float(slope),
                          band_lo=band_lo, has_identity=has_identity),
        out_shape=jax.ShapeDtypeStruct((n_pad, c_out), jnp.float32),
        grid=(nq, band),
        in_specs=in_specs,
        out_specs=pl.BlockSpec((tile, c_out), qmap),
        scratch_shapes=[pltpu.VMEM((tile, width), jnp.float32),   # feature accumulator
                        pltpu.VMEM((tile, 1), jnp.float32)],      # degree accumulator
        compiler_params=pltpu.CompilerParams(
            dimension_semantics=("parallel", "arbitrary"),
            vmem_limit_bytes=VMEM_LIMIT),
    )(*args)

    return out_p[:n]


def mlp_mid_fwd(p, x, slope=0.2):
    b = x.shape[0]
    c_out = p['w2'].shape[1]
    return pl.pallas_call(
        functools.partial(_mlp_mid_kernel, slope=float(slope)),
        out_shape=jax.ShapeDtypeStruct((b, c_out), jnp.float32),
        in_specs=[VMEM_SPEC] * 9,
        out_specs=VMEM_SPEC,
    )(x, p['bn1']['scale'], p['bn1']['shift'], p['w1'], p['b1'],
      p['bn2']['scale'], p['bn2']['shift'], p['w2'], p['b2'])


def global_mean_pool(x, batch):
    # on-device segment mean (no host Python loop / per-batch np.where)
    batch_np = np.asarray(batch)
    nseg = int(batch_np.max()) + 1
    seg = jnp.asarray(batch_np, jnp.int32)
    s = jax.ops.segment_sum(x, seg, num_segments=nseg)
    cnt = jax.ops.segment_sum(jnp.ones((x.shape[0], 1), x.dtype), seg,
                              num_segments=nseg)
    return s / jnp.maximum(cnt, 1.0)


def local_mean_pool(x, pos, seq, ori, batch):
    # TODO(synk): AvgPooling source not provided; pool consecutive node pairs
    # (single-graph batches in this example), dropping a trailing odd node.
    n = x.shape[0]
    if n < 2:
        return x, pos, seq, ori, batch
    m = n // 2
    n2 = 2 * m
    x_p = x[:n2].reshape(m, 2, -1).mean(axis=1)
    pos_p = np.asarray(pos)[:n2].reshape(m, 2, 3).mean(axis=1)
    return x_p, pos_p, np.asarray(seq)[:n2:2], np.asarray(ori)[:n2:2], np.asarray(batch)[:n2:2]


def branch_forward(bp, geometric_radii, l, S_idx, pos_np, seq_np, ori_np, batch_np):
    x = bp['embedding'][jnp.asarray(S_idx)]
    pos = np.asarray(pos_np, np.float32)
    seq = np.asarray(seq_np).reshape(-1).astype(np.int64)
    ori = np.asarray(ori_np, np.float32)   # TODO(synk): ori unused by the conv approximation
    batch = np.asarray(batch_np).astype(np.int64)
    geom = make_geometry(pos, seq, batch, l)          # built once per pooling level
    n_layers = len(bp['blocks'])
    for i, blk in enumerate(bp['blocks']):
        r = geometric_radii[i // 2]
        x = basic_block_fwd(blk, x, geom, r)
        if i == n_layers - 1:
            x = global_mean_pool(x, batch)
        elif i % 2 == 1:
            x, pos, seq, ori, batch = local_mean_pool(x, pos, seq, ori, batch)
            geom = make_geometry(pos, seq, batch, l)  # rebuild only after pooling
    return mlp_mid_fwd(bp['feat'], x, slope=0.2)


# --------------------------- host-side preprocessing ----------------------- #

def orientation(pos):
    # TODO(synk): original `orientation` util not provided; local frames from chain tangents.
    n = pos.shape[0]
    if n < 2:
        return np.tile(np.eye(3, dtype=np.float32), (n, 1, 1))
    fwd = np.zeros_like(pos); fwd[:-1] = pos[1:] - pos[:-1]; fwd[-1] = fwd[-2]
    bwd = np.zeros_like(pos); bwd[1:] = pos[:-1] - pos[1:]; bwd[0] = bwd[1]
    def nrm(v): return v / (np.linalg.norm(v, axis=-1, keepdims=True) + 1e-8)
    u = nrm(fwd); b = nrm(u - nrm(bwd)); c = nrm(np.cross(u, b))
    return np.stack([b, c, np.cross(b, c)], axis=1).astype(np.float32)


def preprocess(data):
    """Mirrors the torch masking / segment-id logic of Model.forward (host glue)."""
    S = np.asarray(data['S']).astype(np.int64)
    lengths = np.asarray(data['lengths'])
    X = np.asarray(data['X'], dtype=np.float32)

    batch_id = np.zeros_like(S)
    cs = np.cumsum(lengths)[:-1]
    batch_id[cs] = 1
    batch_id = np.cumsum(batch_id)

    glbl_mask = (S == 22) | (S == 23) | (S == 24)
    glbl = S[glbl_mask].copy()
    glbl[glbl == 22] = 1; glbl[glbl == 23] = 2; glbl[glbl == 24] = 3
    segment = np.zeros_like(S)
    segment[glbl_mask] = glbl - np.concatenate([[0], glbl[:-1]])
    segment = np.cumsum(segment)

    is_ag = segment == 1
    batch_num = int(batch_id.max())

    branches = {'ag': [], 'ab': []}
    for i in range(batch_num + 1):
        bm = batch_id == i
        m_ag = np.logical_and(bm == is_ag, bm)
        m_ab = np.logical_and(~m_ag, bm)
        m_ag[0] = False
        H = np.logical_and(m_ab == (segment == 2), m_ab)
        H[int(m_ag.sum()) + 1] = False
        L = np.logical_and(m_ab == (segment == 3), m_ab)
        L[int(m_ag.sum()) + int(H.sum()) + 2] = False
        m_ab = H | L

        X_ag = X[m_ag].mean(axis=1)   # Atom_Mean=True -> mean over the 14 atoms
        if X_ag.shape[0] > 2:
            X_ab = X[m_ab].mean(axis=1)
            for name, m, Xb in (('ag', m_ag, X_ag), ('ab', m_ab, X_ab)):
                Sb = S[m].astype(np.int32)
                ori = orientation(Xb)
                seq = np.arange(Xb.shape[0], dtype=np.int32).reshape(-1, 1)
                branches[name].append((Sb, Xb, seq, ori, batch_id[m].astype(np.int32)))
        else:
            for name in ('ag', 'ab'):
                branches[name].append((np.zeros((1,), np.int32),
                                       np.zeros((1, 3), np.float32),
                                       np.zeros((1, 1), np.int32),
                                       np.zeros((1, 3, 3), np.float32),
                                       np.full((1,), i, np.int32)))

    out = {}
    for name in ('ag', 'ab'):
        out[name] = (np.concatenate([t[0] for t in branches[name]]),
                     np.concatenate([t[1] for t in branches[name]]).astype(np.float32),
                     np.concatenate([t[2] for t in branches[name]]),
                     np.concatenate([t[3] for t in branches[name]]).astype(np.float32),
                     np.concatenate([t[4] for t in branches[name]]))
    return out


# ----------------------------------- main ----------------------------------- #

if __name__ == "__main__":
    key = jax.random.PRNGKey(0)

    # Single complex: [BOA(22), 6 antigen residues, BOH(23), 5 heavy, BOL(24), 4 light]
    n_ag, n_h, n_l = 6, 5, 4
    S = np.array([22] + list(np.arange(n_ag) % 20)
                 + [23] + list(np.arange(n_h) % 20)
                 + [24] + list(np.arange(n_l) % 20), dtype=np.int32)
    N = S.shape[0]
    key, kx = jax.random.split(key)
    X = np.asarray(4.0 * jax.random.normal(kx, (N, 14, 3), jnp.float32))
    data = {'S': S,
            'lengths': np.array([N], dtype=np.int64),
            'X': X,
            'residue_pos': np.arange(N, dtype=np.int32)}

    params = make_model_params(key,
                               geometric_radii=[6.0, 12.0],
                               seq_kernel=11.0,
                               channels=[32, 64],
                               emb_dim=16,
                               feature_dim=128,
                               base_width=16.0)

    prep = preprocess(data)
    logit_per_ag = branch_forward(params['ag'], params['geometric_radii'], params['l'],
                                  *prep['ag'])
    logit_per_ab = branch_forward(params['ab'], params['geometric_radii'], params['l'],
                                  *prep['ab'])
    jax.block_until_ready((logit_per_ag, logit_per_ab))

    assert logit_per_ag.shape == (1, 128) and logit_per_ab.shape == (1, 128)
    assert np.all(np.isfinite(np.asarray(logit_per_ag)))
    assert np.all(np.isfinite(np.asarray(logit_per_ab)))
    print("KERNEL_OK")
</pallas_src>

<mosaic_0001>
module attributes {stable_mosaic.version = 11 : i64} {
  func.func @_basic_block_kernel(%arg0: i32, %arg1: i32, %arg2: memref<256x16xf32, #tpu.memory_space<vmem>>, %arg3: memref<256x16xf32, #tpu.memory_space<vmem>>, %arg4: memref<256x8xf32, #tpu.memory_space<vmem>>, %arg5: memref<8x256xf32, #tpu.memory_space<vmem>>, %arg6: memref<256x1xi32, #tpu.memory_space<vmem>>, %arg7: memref<1x256xi32, #tpu.memory_space<vmem>>, %arg8: memref<1x16xf32, #tpu.memory_space<vmem>>, %arg9: memref<1x16xf32, #tpu.memory_space<vmem>>, %arg10: memref<16x8xbf16, #tpu.memory_space<vmem>>, %arg11: memref<1x8xf32, #tpu.memory_space<vmem>>, %arg12: memref<1x8xf32, #tpu.memory_space<vmem>>, %arg13: memref<8x8xbf16, #tpu.memory_space<vmem>>, %arg14: memref<1x8xf32, #tpu.memory_space<vmem>>, %arg15: memref<1x8xf32, #tpu.memory_space<vmem>>, %arg16: memref<8x32xbf16, #tpu.memory_space<vmem>>, %arg17: memref<1x16xf32, #tpu.memory_space<vmem>>, %arg18: memref<1x16xf32, #tpu.memory_space<vmem>>, %arg19: memref<16x32xbf16, #tpu.memory_space<vmem>>, %arg20: memref<256x32xf32, #tpu.memory_space<vmem>>, %arg21: memref<256x8xf32, #tpu.memory_space<vmem>>, %arg22: memref<256x1xf32, #tpu.memory_space<vmem>>) attributes {dimension_semantics = [#tpu.dimension_semantics<parallel>, #tpu.dimension_semantics<arbitrary>], iteration_bounds = array<i64: 1, 3>, scalar_prefetch = 0 : i64, scratch_operands = 2 : i64, tpu.core_type = #tpu.core_type<tc>, window_params = [{transform_indices = @transform_0, window_bounds = array<i64: 256, 16>}, {transform_indices = @transform_1, window_bounds = array<i64: 256, 16>}, {transform_indices = @transform_2, window_bounds = array<i64: 256, 8>}, {transform_indices = @transform_3, window_bounds = array<i64: 8, 256>}, {transform_indices = @transform_4, window_bounds = array<i64: 256, 1>}, {transform_indices = @transform_5, window_bounds = array<i64: 1, 256>}, {pipeline_mode = #tpu.pipeline_mode<synchronous>, transform_indices = @transform_6, window_bounds = array<i64: 1, 16>}, {pipeline_mode = #tpu.pipeline_mode<synchronous>, transform_indices = @transform_7, window_bounds = array<i64: 1, 16>}, {pipeline_mode = #tpu.pipeline_mode<synchronous>, transform_indices = @transform_8, window_bounds = array<i64: 16, 8>}, {pipeline_mode = #tpu.pipeline_mode<synchronous>, transform_indices = @transform_9, window_bounds = array<i64: 1, 8>}, {pipeline_mode = #tpu.pipeline_mode<synchronous>, transform_indices = @transform_10, window_bounds = array<i64: 1, 8>}, {pipeline_mode = #tpu.pipeline_mode<synchronous>, transform_indices = @transform_11, window_bounds = array<i64: 8, 8>}, {pipeline_mode = #tpu.pipeline_mode<synchronous>, transform_indices = @transform_12, window_bounds = array<i64: 1, 8>}, {pipeline_mode = #tpu.pipeline_mode<synchronous>, transform_indices = @transform_13, window_bounds = array<i64: 1, 8>}, {pipeline_mode = #tpu.pipeline_mode<synchronous>, transform_indices = @transform_14, window_bounds = array<i64: 8, 32>}, {pipeline_mode = #tpu.pipeline_mode<synchronous>, transform_indices = @transform_15, window_bounds = array<i64: 1, 16>}, {pipeline_mode = #tpu.pipeline_mode<synchronous>, transform_indices = @transform_16, window_bounds = array<i64: 1, 16>}, {pipeline_mode = #tpu.pipeline_mode<synchronous>, transform_indices = @transform_17, window_bounds = array<i64: 16, 32>}, {transform_indices = @transform_18, window_bounds = array<i64: 256, 32>}]} {
    %c0_i32 = arith.constant 0 : i32
    %0 = arith.cmpi eq, %arg1, %c0_i32 : i32
    %1 = arith.extui %0 : i1 to i32
    %c0_i32_0 = arith.constant 0 : i32
    %2 = arith.cmpi ne, %1, %c0_i32_0 : i32
    scf.if %2 {
      %cst = arith.constant 0.000000e+00 : f32
      %13 = vector.broadcast %cst : f32 to vector<256x8xf32>
      %c0 = arith.constant 0 : index
      %c0_5 = arith.constant 0 : index
      %14 = vector.load %arg21[%c0, %c0_5] : memref<256x8xf32, #tpu.memory_space<vmem>>, vector<256x8xf32>
      tpu.vector_store %arg21[%c0, %c0_5], %13 {strides = array<i32>} : memref<256x8xf32, #tpu.memory_space<vmem>>, vector<256x8xf32>,
      %cst_6 = arith.constant 0.000000e+00 : f32
      %15 = vector.broadcast %cst_6 : f32 to vector<256x1xf32>
      %c0_7 = arith.constant 0 : index
      %c0_8 = arith.constant 0 : index
      %16 = vector.load %arg22[%c0_7, %c0_8] : memref<256x1xf32, #tpu.memory_space<vmem>>, vector<256x1xf32>
      tpu.vector_store %arg22[%c0_7, %c0_8], %15 {strides = array<i32>} : memref<256x1xf32, #tpu.memory_space<vmem>>, vector<256x1xf32>,
    } else {
    }
    %3 = arith.addi %arg0, %arg1 : i32
    %c1_i32 = arith.constant 1 : i32
    %4 = arith.subi %3, %c1_i32 : i32
    %c0_i32_1 = arith.constant 0 : i32
    %5 = arith.cmpi sge, %4, %c0_i32_1 : i32
    %c1_i32_2 = arith.constant 1 : i32
    %6 = arith.cmpi slt, %4, %c1_i32_2 : i32
    %7 = arith.andi %5, %6 : i1
    %8 = arith.extui %7 : i1 to i32
    %c0_i32_3 = arith.constant 0 : i32
    %9 = arith.cmpi ne, %8, %c0_i32_3 : i32
    scf.if %9 {
      %c0 = arith.constant 0 : index
      %c0_5 = arith.constant 0 : index
      %13 = vector.load %arg3[%c0, %c0_5] : memref<256x16xf32, #tpu.memory_space<vmem>>, vector<256x16xf32>
      %c0_6 = arith.constant 0 : index
      %c0_7 = arith.constant 0 : index
      %14 = vector.load %arg8[%c0_6, %c0_7] : memref<1x16xf32, #tpu.memory_space<vmem>>, vector<1x16xf32>
      %15 = vector.broadcast %14 : vector<1x16xf32> to vector<256x16xf32>
      %16 = arith.mulf %13, %15 : vector<256x16xf32>
      %c0_8 = arith.constant 0 : index
      %c0_9 = arith.constant 0 : index
      %17 = vector.load %arg9[%c0_8, %c0_9] : memref<1x16xf32, #tpu.memory_space<vmem>>, vector<1x16xf32>
      %18 = vector.broadcast %17 : vector<1x16xf32> to vector<256x16xf32>
      %19 = arith.addf %16, %18 : vector<256x16xf32>
      %cst = arith.constant 0.000000e+00 : f32
      %20 = vector.broadcast %cst : f32 to vector<256x16xf32>
      %21 = arith.cmpf oge, %19, %20 : vector<256x16xf32>
      %cst_10 = arith.constant 1.000000e-01 : f32
      %22 = vector.broadcast %cst_10 : f32 to vector<256x16xf32>
      %23 = arith.mulf %22, %19 : vector<256x16xf32>
      %24 = arith.select %21, %19, %23 : vector<256x16xi1>, vector<256x16xf32>
      %25 = arith.truncf %24 : vector<256x16xf32> to vector<256x16xbf16>
      %c0_11 = arith.constant 0 : index
      %c0_12 = arith.constant 0 : index
      %26 = vector.load %arg10[%c0_11, %c0_12] : memref<16x8xbf16, #tpu.memory_space<vmem>>, vector<16x8xbf16>
      %cst_13 = arith.constant dense<0.000000e+00> : vector<256x8xf32>
      %27 = tpu.matmul %25, %26, %cst_13 {dimension_numbers = #tpu.dot_dimension_numbers<[1], [0], [0], [1], [0, 0, 1, 1], [], []>} : vector<256x16xbf16>, vector<16x8xbf16>, vector<256x8xf32> -> vector<256x8xf32>
      %c0_14 = arith.constant 0 : index
      %c0_15 = arith.constant 0 : index
      %28 = vector.load %arg11[%c0_14, %c0_15] : memref<1x8xf32, #tpu.memory_space<vmem>>, vector<1x8xf32>
      %29 = vector.broadcast %28 : vector<1x8xf32> to vector<256x8xf32>
      %30 = arith.mulf %27, %29 : vector<256x8xf32>
      %c0_16 = arith.constant 0 : index
      %c0_17 = arith.constant 0 : index
      %31 = vector.load %arg12[%c0_16, %c0_17] : memref<1x8xf32, #tpu.memory_space<vmem>>, vector<1x8xf32>
      %32 = vector.broadcast %31 : vector<1x8xf32> to vector<256x8xf32>
      %33 = arith.addf %30, %32 : vector<256x8xf32>
      %cst_18 = arith.constant 0.000000e+00 : f32
      %34 = vector.broadcast %cst_18 : f32 to vector<256x8xf32>
      %35 = arith.cmpf oge, %33, %34 : vector<256x8xf32>
      %cst_19 = arith.constant 1.000000e-01 : f32
      %36 = vector.broadcast %cst_19 : f32 to vector<256x8xf32>
      %37 = arith.mulf %36, %33 : vector<256x8xf32>
      %38 = arith.select %35, %33, %37 : vector<256x8xi1>, vector<256x8xf32>
      %39 = arith.truncf %38 : vector<256x8xf32> to vector<256x8xbf16>
      %c0_20 = arith.constant 0 : index
      %c0_21 = arith.constant 0 : index
      %40 = vector.load %arg13[%c0_20, %c0_21] : memref<8x8xbf16, #tpu.memory_space<vmem>>, vector<8x8xbf16>
      %cst_22 = arith.constant dense<0.000000e+00> : vector<256x8xf32>
      %41 = tpu.matmul %39, %40, %cst_22 {dimension_numbers = #tpu.dot_dimension_numbers<[1], [0], [0], [1], [0, 0, 1, 1], [], []>} : vector<256x8xbf16>, vector<8x8xbf16>, vector<256x8xf32> -> vector<256x8xf32>
      %42 = arith.truncf %41 : vector<256x8xf32> to vector<256x8xbf16>
      %c0_23 = arith.constant 0 : index
      %c0_24 = arith.constant 0 : index
      %43 = vector.load %arg4[%c0_23, %c0_24] : memref<256x8xf32, #tpu.memory_space<vmem>>, vector<256x8xf32>
      %c0_25 = arith.constant 0 : index
      %c0_26 = arith.constant 0 : index
      %44 = vector.load %arg5[%c0_25, %c0_26] : memref<8x256xf32, #tpu.memory_space<vmem>>, vector<8x256xf32>
      %cst_27 = arith.constant dense<0.000000e+00> : vector<256x256xf32>
      %45 = tpu.matmul %43, %44, %cst_27 {dimension_numbers = #tpu.dot_dimension_numbers<[1], [0], [0], [1], [0, 0, 1, 1], [], []>} : vector<256x8xf32>, vector<8x256xf32>, vector<256x256xf32> -> vector<256x256xf32>
      %c0_28 = arith.constant 0 : index
      %c0_29 = arith.constant 0 : index
      %46 = vector.load %arg6[%c0_28, %c0_29] : memref<256x1xi32, #tpu.memory_space<vmem>>, vector<256x1xi32>
      %c0_30 = arith.constant 0 : index
      %c0_31 = arith.constant 0 : index
      %47 = vector.load %arg7[%c0_30, %c0_31] : memref<1x256xi32, #tpu.memory_space<vmem>>, vector<1x256xi32>
      %48 = vector.broadcast %46 : vector<256x1xi32> to vector<256x256xi32>
      %49 = vector.broadcast %47 : vector<1x256xi32> to vector<256x256xi32>
      %50 = arith.subi %48, %49 : vector<256x256xi32>
      %cst_32 = arith.constant 3.600000e+01 : f32
      %51 = vector.broadcast %cst_32 : f32 to vector<256x256xf32>
      %52 = arith.cmpf ole, %45, %51 : vector<256x256xf32>
      %53 = math.absi %50 : vector<256x256xi32>
      %c11_i32 = arith.constant 11 : i32
      %54 = vector.broadcast %c11_i32 : i32 to vector<256x256xi32>
      %55 = arith.cmpi sle, %53, %54 : vector<256x256xi32>
      %56 = arith.andi %52, %55 : vector<256x256xi1>
      %cst_33 = arith.constant 1.000000e+00 : f32
      %cst_34 = arith.constant 0.000000e+00 : f32
      %57 = vector.broadcast %cst_33 : f32 to vector<256x256xf32>
      %58 = vector.broadcast %cst_34 : f32 to vector<256x256xf32>
      %59 = arith.select %56, %57, %58 : vector<256x256xi1>, vector<256x256xf32>
      %c0_35 = arith.constant 0 : index
      %c0_36 = arith.constant 0 : index
      %60 = vector.load %arg22[%c0_35, %c0_36] : memref<256x1xf32, #tpu.memory_space<vmem>>, vector<256x1xf32>
      %cst_37 = arith.constant dense<0.000000e+00> : vector<256xf32>
      %61 = vector.multi_reduction <add>, %59, %cst_37 [1] : vector<256x256xf32> to vector<256xf32>
      %62 = vector.shape_cast %61 : vector<256xf32> to vector<256x1xf32>
      %63 = arith.addf %60, %62 : vector<256x1xf32>
      %c0_38 = arith.constant 0 : index
      %c0_39 = arith.constant 0 : index
      %64 = vector.load %arg22[%c0_38, %c0_39] : memref<256x1xf32, #tpu.memory_space<vmem>>, vector<256x1xf32>
      tpu.vector_store %arg22[%c0_38, %c0_39], %63 {strides = array<i32>} : memref<256x1xf32, #tpu.memory_space<vmem>>, vector<256x1xf32>,
      %c0_40 = arith.constant 0 : index
      %c0_41 = arith.constant 0 : index
      %65 = vector.load %arg21[%c0_40, %c0_41] : memref<256x8xf32, #tpu.memory_space<vmem>>, vector<256x8xf32>
      %66 = arith.truncf %59 : vector<256x256xf32> to vector<256x256xbf16>
      %cst_42 = arith.constant dense<0.000000e+00> : vector<256x8xf32>
      %67 = tpu.matmul %66, %42, %cst_42 {dimension_numbers = #tpu.dot_dimension_numbers<[1], [0], [0], [1], [0, 0, 1, 1], [], []>} : vector<256x256xbf16>, vector<256x8xbf16>, vector<256x8xf32> -> vector<256x8xf32>
      %68 = arith.addf %65, %67 : vector<256x8xf32>
      %c0_43 = arith.constant 0 : index
      %c0_44 = arith.constant 0 : index
      %69 = vector.load %arg21[%c0_43, %c0_44] : memref<256x8xf32, #tpu.memory_space<vmem>>, vector<256x8xf32>
      tpu.vector_store %arg21[%c0_43, %c0_44], %68 {strides = array<i32>} : memref<256x8xf32, #tpu.memory_space<vmem>>, vector<256x8xf32>,
    } else {
    }
    %c2_i32 = arith.constant 2 : i32
    %10 = arith.cmpi eq, %arg1, %c2_i32 : i32
    %11 = arith.extui %10 : i1 to i32
    %c0_i32_4 = arith.constant 0 : i32
    %12 = arith.cmpi ne, %11, %c0_i32_4 : i32
    scf.if %12 {
      %c0 = arith.constant 0 : index
      %c0_5 = arith.constant 0 : index
      %13 = vector.load %arg21[%c0, %c0_5] : memref<256x8xf32, #tpu.memory_space<vmem>>, vector<256x8xf32>
      %c0_6 = arith.constant 0 : index
      %c0_7 = arith.constant 0 : index
      %14 = vector.load %arg22[%c0_6, %c0_7] : memref<256x1xf32, #tpu.memory_space<vmem>>, vector<256x1xf32>
      %cst = arith.constant 1.000000e+00 : f32
      %15 = vector.broadcast %cst : f32 to vector<256x1xf32>
      %16 = arith.maximumf %14, %15 : vector<256x1xf32>
      %17 = vector.broadcast %16 : vector<256x1xf32> to vector<256x8xf32>
      %18 = arith.divf %13, %17 : vector<256x8xf32>
      %c0_8 = arith.constant 0 : index
      %c0_9 = arith.constant 0 : index
      %19 = vector.load %arg14[%c0_8, %c0_9] : memref<1x8xf32, #tpu.memory_space<vmem>>, vector<1x8xf32>
      %20 = vector.broadcast %19 : vector<1x8xf32> to vector<256x8xf32>
      %21 = arith.mulf %18, %20 : vector<256x8xf32>
      %c0_10 = arith.constant 0 : index
      %c0_11 = arith.constant 0 : index
      %22 = vector.load %arg15[%c0_10, %c0_11] : memref<1x8xf32, #tpu.memory_space<vmem>>, vector<1x8xf32>
      %23 = vector.broadcast %22 : vector<1x8xf32> to vector<256x8xf32>
      %24 = arith.addf %21, %23 : vector<256x8xf32>
      %cst_12 = arith.constant 0.000000e+00 : f32
      %25 = vector.broadcast %cst_12 : f32 to vector<256x8xf32>
      %26 = arith.cmpf oge, %24, %25 : vector<256x8xf32>
      %cst_13 = arith.constant 1.000000e-01 : f32
      %27 = vector.broadcast %cst_13 : f32 to vector<256x8xf32>
      %28 = arith.mulf %27, %24 : vector<256x8xf32>
      %29 = arith.select %26, %24, %28 : vector<256x8xi1>, vector<256x8xf32>
      %30 = arith.truncf %29 : vector<256x8xf32> to vector<256x8xbf16>
      %c0_14 = arith.constant 0 : index
      %c0_15 = arith.constant 0 : index
      %31 = vector.load %arg16[%c0_14, %c0_15] : memref<8x32xbf16, #tpu.memory_space<vmem>>, vector<8x32xbf16>
      %cst_16 = arith.constant dense<0.000000e+00> : vector<256x32xf32>
      %32 = tpu.matmul %30, %31, %cst_16 {dimension_numbers = #tpu.dot_dimension_numbers<[1], [0], [0], [1], [0, 0, 1, 1], [], []>} : vector<256x8xbf16>, vector<8x32xbf16>, vector<256x32xf32> -> vector<256x32xf32>
      %c0_17 = arith.constant 0 : index
      %c0_18 = arith.constant 0 : index
      %33 = vector.load %arg2[%c0_17, %c0_18] : memref<256x16xf32, #tpu.memory_space<vmem>>, vector<256x16xf32>
      %c0_19 = arith.constant 0 : index
      %c0_20 = arith.constant 0 : index
      %34 = vector.load %arg17[%c0_19, %c0_20] : memref<1x16xf32, #tpu.memory_space<vmem>>, vector<1x16xf32>
      %35 = vector.broadcast %34 : vector<1x16xf32> to vector<256x16xf32>
      %36 = arith.mulf %33, %35 : vector<256x16xf32>
      %c0_21 = arith.constant 0 : index
      %c0_22 = arith.constant 0 : index
      %37 = vector.load %arg18[%c0_21, %c0_22] : memref<1x16xf32, #tpu.memory_space<vmem>>, vector<1x16xf32>
      %38 = vector.broadcast %37 : vector<1x16xf32> to vector<256x16xf32>
      %39 = arith.addf %36, %38 : vector<256x16xf32>
      %cst_23 = arith.constant 0.000000e+00 : f32
      %40 = vector.broadcast %cst_23 : f32 to vector<256x16xf32>
      %41 = arith.cmpf oge, %39, %40 : vector<256x16xf32>
      %cst_24 = arith.constant 1.000000e-01 : f32
      %42 = vector.broadcast %cst_24 : f32 to vector<256x16xf32>
      %43 = arith.mulf %42, %39 : vector<256x16xf32>
      %44 = arith.select %41, %39, %43 : vector<256x16xi1>, vector<256x16xf32>
      %45 = arith.truncf %44 : vector<256x16xf32> to vector<256x16xbf16>
      %c0_25 = arith.constant 0 : index
      %c0_26 = arith.constant 0 : index
      %46 = vector.load %arg19[%c0_25, %c0_26] : memref<16x32xbf16, #tpu.memory_space<vmem>>, vector<16x32xbf16>
      %cst_27 = arith.constant dense<0.000000e+00> : vector<256x32xf32>
      %47 = tpu.matmul %45, %46, %cst_27 {dimension_numbers = #tpu.dot_dimension_numbers<[1], [0], [0], [1], [0, 0, 1, 1], [], []>} : vector<256x16xbf16>, vector<16x32xbf16>, vector<256x32xf32> -> vector<256x32xf32>
      %48 = arith.addf %32, %47 : vector<256x32xf32>
      %c0_28 = arith.constant 0 : index
      %c0_29 = arith.constant 0 : index
      %49 = vector.load %arg20[%c0_28, %c0_29] : memref<256x32xf32, #tpu.memory_space<vmem>>, vector<256x32xf32>
      tpu.vector_store %arg20[%c0_28, %c0_29], %48 {strides = array<i32>} : memref<256x32xf32, #tpu.memory_space<vmem>>, vector<256x32xf32>,
    } else {
    }
    return
  }
  func.func @transform_0(%arg0: i32, %arg1: i32) -> (i32, i32) {
    %c0_i32 = arith.constant 0 : i32
    %c0_i32_0 = arith.constant 0 : i32
    return %arg0, %c0_i32 : i32, i32
  }
  func.func @transform_1(%arg0: i32, %arg1: i32) -> (i32, i32) {
    %0 = arith.addi %arg0, %arg1 : i32
    %c1_i32 = arith.constant 1 : i32
    %1 = arith.subi %0, %c1_i32 : i32
    %c0_i32 = arith.constant 0 : i32
    %2 = arith.maxsi %1, %c0_i32 : i32
    %c0_i32_0 = arith.constant 0 : i32
    %3 = arith.minsi %2, %c0_i32_0 : i32
    %c0_i32_1 = arith.constant 0 : i32
    %c0_i32_2 = arith.constant 0 : i32
    return %3, %c0_i32_1 : i32, i32
  }
  func.func @transform_2(%arg0: i32, %arg1: i32) -> (i32, i32) {
    %c0_i32 = arith.constant 0 : i32
    %c0_i32_0 = arith.constant 0 : i32
    return %arg0, %c0_i32 : i32, i32
  }
  func.func @transform_3(%arg0: i32, %arg1: i32) -> (i32, i32) {
    %0 = arith.addi %arg0, %arg1 : i32
    %c1_i32 = arith.constant 1 : i32
    %1 = arith.subi %0, %c1_i32 : i32
    %c0_i32 = arith.constant 0 : i32
    %2 = arith.maxsi %1, %c0_i32 : i32
    %c0_i32_0 = arith.constant 0 : i32
    %3 = arith.minsi %2, %c0_i32_0 : i32
    %c0_i32_1 = arith.constant 0 : i32
    %c0_i32_2 = arith.constant 0 : i32
    return %c0_i32_1, %3 : i32, i32
  }
  func.func @transform_4(%arg0: i32, %arg1: i32) -> (i32, i32) {
    %c0_i32 = arith.constant 0 : i32
    %c0_i32_0 = arith.constant 0 : i32
    return %arg0, %c0_i32 : i32, i32
  }
  func.func @transform_5(%arg0: i32, %arg1: i32) -> (i32, i32) {
    %0 = arith.addi %arg0, %arg1 : i32
    %c1_i32 = arith.constant 1 : i32
    %1 = arith.subi %0, %c1_i32 : i32
    %c0_i32 = arith.constant 0 : i32
    %2 = arith.maxsi %1, %c0_i32 : i32
    %c0_i32_0 = arith.constant 0 : i32
    %3 = arith.minsi %2, %c0_i32_0 : i32
    %c0_i32_1 = arith.constant 0 : i32
    %c0_i32_2 = arith.constant 0 : i32
    return %c0_i32_1, %3 : i32, i32
  }
  func.func @transform_6(%arg0: i32, %arg1: i32) -> (i32, i32) {
    %c0_i32 = arith.constant 0 : i32
    %c0_i32_0 = arith.constant 0 : i32
    %c0_i32_1 = arith.constant 0 : i32
    return %c0_i32, %c0_i32_0 : i32, i32
  }
  func.func @transform_7(%arg0: i32, %arg1: i32) -> (i32, i32) {
    %c0_i32 = arith.constant 0 : i32
    %c0_i32_0 = arith.constant 0 : i32
    %c0_i32_1 = arith.constant 0 : i32
    return %c0_i32, %c0_i32_0 : i32, i32
  }
  func.func @transform_8(%arg0: i32, %arg1: i32) -> (i32, i32) {
    %c0_i32 = arith.constant 0 : i32
    %c0_i32_0 = arith.constant 0 : i32
    %c0_i32_1 = arith.constant 0 : i32
    return %c0_i32, %c0_i32_0 : i32, i32
  }
  func.func @transform_9(%arg0: i32, %arg1: i32) -> (i32, i32) {
    %c0_i32 = arith.constant 0 : i32
    %c0_i32_0 = arith.constant 0 : i32
    %c0_i32_1 = arith.constant 0 : i32
    return %c0_i32, %c0_i32_0 : i32, i32
  }
  func.func @transform_10(%arg0: i32, %arg1: i32) -> (i32, i32) {
    %c0_i32 = arith.constant 0 : i32
    %c0_i32_0 = arith.constant 0 : i32
    %c0_i32_1 = arith.constant 0 : i32
    return %c0_i32, %c0_i32_0 : i32, i32
  }
  func.func @transform_11(%arg0: i32, %arg1: i32) -> (i32, i32) {
    %c0_i32 = arith.constant 0 : i32
    %c0_i32_0 = arith.constant 0 : i32
    %c0_i32_1 = arith.constant 0 : i32
    return %c0_i32, %c0_i32_0 : i32, i32
  }
  func.func @transform_12(%arg0: i32, %arg1: i32) -> (i32, i32) {
    %c0_i32 = arith.constant 0 : i32
    %c0_i32_0 = arith.constant 0 : i32
    %c0_i32_1 = arith.constant 0 : i32
    return %c0_i32, %c0_i32_0 : i32, i32
  }
  func.func @transform_13(%arg0: i32, %arg1: i32) -> (i32, i32) {
    %c0_i32 = arith.constant 0 : i32
    %c0_i32_0 = arith.constant 0 : i32
    %c0_i32_1 = arith.constant 0 : i32
    return %c0_i32, %c0_i32_0 : i32, i32
  }
  func.func @transform_14(%arg0: i32, %arg1: i32) -> (i32, i32) {
    %c0_i32 = arith.constant 0 : i32
    %c0_i32_0 = arith.constant 0 : i32
    %c0_i32_1 = arith.constant 0 : i32
    return %c0_i32, %c0_i32_0 : i32, i32
  }
  func.func @transform_15(%arg0: i32, %arg1: i32) -> (i32, i32) {
    %c0_i32 = arith.constant 0 : i32
    %c0_i32_0 = arith.constant 0 : i32
    %c0_i32_1 = arith.constant 0 : i32
    return %c0_i32, %c0_i32_0 : i32, i32
  }
  func.func @transform_16(%arg0: i32, %arg1: i32) -> (i32, i32) {
    %c0_i32 = arith.constant 0 : i32
    %c0_i32_0 = arith.constant 0 : i32
    %c0_i32_1 = arith.constant 0 : i32
    return %c0_i32, %c0_i32_0 : i32, i32
  }
  func.func @transform_17(%arg0: i32, %arg1: i32) -> (i32, i32) {
    %c0_i32 = arith.constant 0 : i32
    %c0_i32_0 = arith.constant 0 : i32
    %c0_i32_1 = arith.constant 0 : i32
    return %c0_i32, %c0_i32_0 : i32, i32
  }
  func.func @transform_18(%arg0: i32, %arg1: i32) -> (i32, i32) {
    %c0_i32 = arith.constant 0 : i32
    %c0_i32_0 = arith.constant 0 : i32
    return %arg0, %c0_i32 : i32, i32
  }
}

</mosaic_0001>

<llo_original>
// kernel: tpu_custom_call.1
$region0: #{tpu_custom_call.1}
  #allocation0 [shape = 'u32[]', space=smem, size = 0x4, offset = 0x4, fixed_abs, tag = 'smem constant byte address 0x4 - core index']
  #allocation1 [shape = 'u32[144,128]{1,0:T(1,128)}', space=vmem, size = 0x12000, scoped, tag = 'internal scratch']
  #allocation2 [shape = 'f32[256,8]{1,0:T(8,128)}', space=vmem, size = 0x20000, scoped, tag = 'scratch operand']
  #allocation3 [shape = 'f32[256,1]{1,0:T(8,128)}', space=vmem, size = 0x20000, scoped, tag = 'scratch operand']
  %s0 = inlined_call_operand.vmem [shape: f32[256,16], index: 0, kind: input, shape index: {}]
  %s1 = inlined_call_operand.vmem [shape: f32[256,16], index: 1, kind: input, shape index: {}]
  %s2 = inlined_call_operand.vmem [shape: f32[256,8], index: 2, kind: input, shape index: {}]
  %s3 = inlined_call_operand.vmem [shape: f32[8,256], index: 3, kind: input, shape index: {}]
  %s4 = inlined_call_operand.vmem [shape: s32[256,1], index: 4, kind: input, shape index: {}]
  %s5 = inlined_call_operand.vmem [shape: s32[1,256], index: 5, kind: input, shape index: {}]
  %s6 = inlined_call_operand.vmem [shape: f32[1,16], index: 6, kind: input, shape index: {}]
  %s7 = inlined_call_operand.vmem [shape: f32[1,16], index: 7, kind: input, shape index: {}]
  %s8 = inlined_call_operand.vmem [shape: bf16[16,8], index: 8, kind: input, shape index: {}]
  %s9 = inlined_call_operand.vmem [shape: f32[1,8], index: 9, kind: input, shape index: {}]
  %s10 = inlined_call_operand.vmem [shape: f32[1,8], index: 10, kind: input, shape index: {}]
  %s11 = inlined_call_operand.vmem [shape: bf16[8,8], index: 11, kind: input, shape index: {}]
  %s12 = inlined_call_operand.vmem [shape: f32[1,8], index: 12, kind: input, shape index: {}]
  %s13 = inlined_call_operand.vmem [shape: f32[1,8], index: 13, kind: input, shape index: {}]
  %s14 = inlined_call_operand.vmem [shape: bf16[8,32], index: 14, kind: input, shape index: {}]
  %s15 = inlined_call_operand.vmem [shape: f32[1,16], index: 15, kind: input, shape index: {}]
  %s16 = inlined_call_operand.vmem [shape: f32[1,16], index: 16, kind: input, shape index: {}]
  %s17 = inlined_call_operand.vmem [shape: bf16[16,32], index: 17, kind: input, shape index: {}]
  %s18 = inlined_call_operand.vmem [shape: f32[256,32], index: 18, kind: output, shape index: {}]
  %s19 = sld [smem:[#allocation0]]
  $region117: #{tpu_custom_call.1} parent=0
    _
  %s21 = ssub.s32 1, %s19
  %s22 = scalar_select 0, %s21, %s19
  loop: start=0, step=1, limit=5
  $region2: #{tpu_custom_call.1} parent=0 // loop_pre_header
    _
  $region3: #{tpu_custom_call.1} parent=0 // loop_header
    %s24 = sphi 0, %s28
    %p25 = scmp.ge.s32.totalorder %s24, 5
    %s31 = sphi 0, %s43
    %s32 = sphi 0, %s39
    %s33 = sphi 0, %s31
    %s34 = sphi 0, %s32
    %s35 = sphi 0, %s33
    %s36 = sphi 0, %s34
    %s46 = sphi 0, %s48
    %s49 = sphi 0, %s46
    %s50 = sphi 0, %s49
    %s66 = sphi 0, %s50
    %s84 = sphi 0, %s86
    %s87 = sphi 0, %s84
    %s88 = sphi 0, %s87
    %s104 = sphi 0, %s88
    %s110 = sphi 0, %s112
    %s113 = sphi 0, %s110
    %s114 = sphi 0, %s113
    %s130 = sphi 0, %s114
    %s148 = sphi 0, %s150
    %s151 = sphi 0, %s148
    %s152 = sphi 0, %s151
    %s168 = sphi 0, %s152
    %s174 = sphi 0, %s176
    %s177 = sphi 0, %s174
    %s178 = sphi 0, %s177
    %s194 = sphi 0, %s178
    %s212 = sphi 0, %s214
    %s215 = sphi 0, %s212
    %s216 = sphi 0, %s215
    %s232 = sphi 0, %s216
    %s236 = sphi 0, %s236
    %s238 = sphi 0, %s236
    %s239 = sphi 0, %s238
    %s253 = sphi 0, %s239
    %s257 = sphi 0, %s257
    %s259 = sphi 0, %s257
    %s260 = sphi 0, %s259
    %s274 = sphi 0, %s260
    %s278 = sphi 0, %s278
    %s280 = sphi 0, %s278
    %s281 = sphi 0, %s280
    %s295 = sphi 0, %s281
    %s299 = sphi 0, %s299
    %s301 = sphi 0, %s299
    %s302 = sphi 0, %s301
    %s316 = sphi 0, %s302
    %s320 = sphi 0, %s320
    %s322 = sphi 0, %s320
    %s323 = sphi 0, %s322
    %s337 = sphi 0, %s323
    %s341 = sphi 0, %s341
    %s343 = sphi 0, %s341
    %s344 = sphi 0, %s343
    %s358 = sphi 0, %s344
    %s362 = sphi 0, %s362
    %s364 = sphi 0, %s362
    %s365 = sphi 0, %s364
    %s379 = sphi 0, %s365
    %s383 = sphi 0, %s383
    %s385 = sphi 0, %s383
    %s386 = sphi 0, %s385
    %s400 = sphi 0, %s386
    %s404 = sphi 0, %s404
    %s406 = sphi 0, %s404
    %s407 = sphi 0, %s406
    %s421 = sphi 0, %s407
    %s425 = sphi 0, %s425
    %s427 = sphi 0, %s425
    %s428 = sphi 0, %s427
    %s442 = sphi 0, %s428
    %s446 = sphi 0, %s446
    %s448 = sphi 0, %s446
    %s449 = sphi 0, %s448
    %s463 = sphi 0, %s449
    %s467 = sphi 0, %s467
    %s469 = sphi 0, %s467
    %s470 = sphi 0, %s469
    %s484 = sphi 0, %s470
    %s490 = sphi 0, %s492
    %s493 = sphi 0, %s490
    %s494 = sphi 0, %s493
    %s510 = sphi 0, %s494
  $region4: #{tpu_custom_call.1} parent=0 // loop_header_branch
    %27 = sbr.rel (%p25) target = $region8
  $region5: #{tpu_custom_call.1} parent=0 // loop_body
    %s29 = ssub.s32 %s24, 1
    %s30 = ssub.s32 %s24, 2
    %s37 = sadd.s32 1, %s32
    %p38 = scmp.ge.s32.totalorder %s37, 3
    %s39 = scalar_select %p38, 0, %s37
    %s40 = sadd.s32 1, %s31
    %s41 = scalar_select %p38, %s40, %s31
    %p42 = scmp.ge.s32.totalorder %s41, 1
    %s43 = scalar_select %p42, 0, %s41
    %s44 = ssub.s32 %s31, %s43
    %p45 = scmp.eq.s32.totalorder %s44, 0
    %s47 = sadd.s32 %s46, 1
    %s48 = scalar_select %p45, %s46, %s47
    %p51 = pneg %p45
    %p52 = scmp.eq.s32.totalorder %s24, 2
    %p53 = por %p51, %p52
    %p54 = scmp.ne.s32.totalorder %s46, %s49
    %p55 = scmp.eq.s32.totalorder %s24, 0
    %p56 = por %p54, %p55
    %p57 = scmp.ne.s32.totalorder %s46, %s49
    %p58 = scmp.eq.s32.totalorder %s29, 2
    %p59 = por %p57, %p58
    %p60 = scmp.ne.s32.totalorder %s49, %s50
    %p61 = scmp.eq.s32.totalorder %s29, 0
    %p62 = por %p60, %p61
    %p63 = scmp.ne.s32.totalorder %s49, %s50
    %p64 = scmp.eq.s32.totalorder %s30, 2
    %p65 = por %p63, %p64
    %p67 = scmp.ne.s32.totalorder %s50, %s66
    %p68 = scmp.eq.s32.totalorder %s30, 0
    %p69 = por %p67, %p68
    %s70 = sadd.s32 %s31, %s32
    %s71 = ssub.s32 %s70, 1
    %p72 = scmp.gt.s32.totalorder %s71, 0
    %s73 = scalar_select %p72, %s71, 0
    %p74 = scmp.lt.s32.totalorder %s73, 0
    %s75 = scalar_select %p74, %s73, 0
    %s76 = sadd.s32 %s43, %s39
    %s77 = ssub.s32 %s76, 1
    %p78 = scmp.gt.s32.totalorder %s77, 0
    %s79 = scalar_select %p78, %s77, 0
    %p80 = scmp.lt.s32.totalorder %s79, 0
    %s81 = scalar_select %p80, %s79, 0
    %s82 = ssub.s32 %s75, %s81
    %p83 = scmp.eq.s32.totalorder %s82, 0
    %s85 = sadd.s32 %s84, 1
    %s86 = scalar_select %p83, %s84, %s85
    %p89 = pneg %p83
    %p90 = scmp.eq.s32.totalorder %s24, 2
    %p91 = por %p89, %p90
    %p92 = scmp.ne.s32.totalorder %s84, %s87
    %p93 = scmp.eq.s32.totalorder %s24, 0
    %p94 = por %p92, %p93
    %p95 = scmp.ne.s32.totalorder %s84, %s87
    %p96 = scmp.eq.s32.totalorder %s29, 2
    %p97 = por %p95, %p96
    %p98 = scmp.ne.s32.totalorder %s87, %s88
    %p99 = scmp.eq.s32.totalorder %s29, 0
    %p100 = por %p98, %p99
    %p101 = scmp.ne.s32.totalorder %s87, %s88
    %p102 = scmp.eq.s32.totalorder %s30, 2
    %p103 = por %p101, %p102
    %p105 = scmp.ne.s32.totalorder %s88, %s104
    %p106 = scmp.eq.s32.totalorder %s30, 0
    %p107 = por %p105, %p106
    %s108 = ssub.s32 %s31, %s43
    %p109 = scmp.eq.s32.totalorder %s108, 0
    %s111 = sadd.s32 %s110, 1
    %s112 = scalar_select %p109, %s110, %s111
    %p115 = pneg %p109
    %p116 = scmp.eq.s32.totalorder %s24, 2
    %p117 = por %p115, %p116
    %p118 = scmp.ne.s32.totalorder %s110, %s113
    %p119 = scmp.eq.s32.totalorder %s24, 0
    %p120 = por %p118, %p119
    %p121 = scmp.ne.s32.totalorder %s110, %s113
    %p122 = scmp.eq.s32.totalorder %s29, 2
    %p123 = por %p121, %p122
    %p124 = scmp.ne.s32.totalorder %s113, %s114
    %p125 = scmp.eq.s32.totalorder %s29, 0
    %p126 = por %p124, %p125
    %p127 = scmp.ne.s32.totalorder %s113, %s114
    %p128 = scmp.eq.s32.totalorder %s30, 2
    %p129 = por %p127, %p128
    %p131 = scmp.ne.s32.totalorder %s114, %s130
    %p132 = scmp.eq.s32.totalorder %s30, 0
    %p133 = por %p131, %p132
    %s134 = sadd.s32 %s31, %s32
    %s135 = ssub.s32 %s134, 1
    %p136 = scmp.gt.s32.totalorder %s135, 0
    %s137 = scalar_select %p136, %s135, 0
    %p138 = scmp.lt.s32.totalorder %s137, 0
    %s139 = scalar_select %p138, %s137, 0
    %s140 = sadd.s32 %s43, %s39
    %s141 = ssub.s32 %s140, 1
    %p142 = scmp.gt.s32.totalorder %s141, 0
    %s143 = scalar_select %p142, %s141, 0
    %p144 = scmp.lt.s32.totalorder %s143, 0
    %s145 = scalar_select %p144, %s143, 0
    %s146 = ssub.s32 %s139, %s145
    %p147 = scmp.eq.s32.totalorder %s146, 0
    %s149 = sadd.s32 %s148, 1
    %s150 = scalar_select %p147, %s148, %s149
    %p153 = pneg %p147
    %p154 = scmp.eq.s32.totalorder %s24, 2
    %p155 = por %p153, %p154
    %p156 = scmp.ne.s32.totalorder %s148, %s151
    %p157 = scmp.eq.s32.totalorder %s24, 0
    %p158 = por %p156, %p157
    %p159 = scmp.ne.s32.totalorder %s148, %s151
    %p160 = scmp.eq.s32.totalorder %s29, 2
    %p161 = por %p159, %p160
    %p162 = scmp.ne.s32.totalorder %s151, %s152
    %p163 = scmp.eq.s32.totalorder %s29, 0
    %p164 = por %p162, %p163
    %p165 = scmp.ne.s32.totalorder %s151, %s152
    %p166 = scmp.eq.s32.totalorder %s30, 2
    %p167 = por %p165, %p166
    %p169 = scmp.ne.s32.totalorder %s152, %s168
    %p170 = scmp.eq.s32.totalorder %s30, 0
    %p171 = por %p169, %p170
    %s172 = ssub.s32 %s31, %s43
    %p173 = scmp.eq.s32.totalorder %s172, 0
    %s175 = sadd.s32 %s174, 1
    %s176 = scalar_select %p173, %s174, %s175
    %p179 = pneg %p173
    %p180 = scmp.eq.s32.totalorder %s24, 2
    %p181 = por %p179, %p180
    %p182 = scmp.ne.s32.totalorder %s174, %s177
    %p183 = scmp.eq.s32.totalorder %s24, 0
    %p184 = por %p182, %p183
    %p185 = scmp.ne.s32.totalorder %s174, %s177
    %p186 = scmp.eq.s32.totalorder %s29, 2
    %p187 = por %p185, %p186
    %p188 = scmp.ne.s32.totalorder %s177, %s178
    %p189 = scmp.eq.s32.totalorder %s29, 0
    %p190 = por %p188, %p189
    %p191 = scmp.ne.s32.totalorder %s177, %s178
    %p192 = scmp.eq.s32.totalorder %s30, 2
    %p193 = por %p191, %p192
    %p195 = scmp.ne.s32.totalorder %s178, %s194
    %p196 = scmp.eq.s32.totalorder %s30, 0
    %p197 = por %p195, %p196
    %s198 = sadd.s32 %s31, %s32
    %s199 = ssub.s32 %s198, 1
    %p200 = scmp.gt.s32.totalorder %s199, 0
    %s201 = scalar_select %p200, %s199, 0
    %p202 = scmp.lt.s32.totalorder %s201, 0
    %s203 = scalar_select %p202, %s201, 0
    %s204 = sadd.s32 %s43, %s39
    %s205 = ssub.s32 %s204, 1
    %p206 = scmp.gt.s32.totalorder %s205, 0
    %s207 = scalar_select %p206, %s205, 0
    %p208 = scmp.lt.s32.totalorder %s207, 0
    %s209 = scalar_select %p208, %s207, 0
    %s210 = ssub.s32 %s203, %s209
    %p211 = scmp.eq.s32.totalorder %s210, 0
    %s213 = sadd.s32 %s212, 1
    %s214 = scalar_select %p211, %s212, %s213
    %p217 = pneg %p211
    %p218 = scmp.eq.s32.totalorder %s24, 2
    %p219 = por %p217, %p218
    %p220 = scmp.ne.s32.totalorder %s212, %s215
    %p221 = scmp.eq.s32.totalorder %s24, 0
    %p222 = por %p220, %p221
    %p223 = scmp.ne.s32.totalorder %s212, %s215
    %p224 = scmp.eq.s32.totalorder %s29, 2
    %p225 = por %p223, %p224
    %p226 = scmp.ne.s32.totalorder %s215, %s216
    %p227 = scmp.eq.s32.totalorder %s29, 0
    %p228 = por %p226, %p227
    %p229 = scmp.ne.s32.totalorder %s215, %s216
    %p230 = scmp.eq.s32.totalorder %s30, 2
    %p231 = por %p229, %p230
    %p233 = scmp.ne.s32.totalorder %s216, %s232
    %p234 = scmp.eq.s32.totalorder %s30, 0
    %p235 = por %p233, %p234
    %s237 = sadd.s32 %s236, 1
    %p240 = scmp.eq.s32.totalorder %s24, 2
    %p241 = scmp.ne.s32.totalorder %s236, %s238
    %p242 = scmp.eq.s32.totalorder %s24, 0
    %p243 = por %p241, %p242
    %p244 = scmp.ne.s32.totalorder %s236, %s238
    %p245 = scmp.eq.s32.totalorder %s29, 2
    %p246 = por %p244, %p245
    %p247 = scmp.ne.s32.totalorder %s238, %s239
    %p248 = scmp.eq.s32.totalorder %s29, 0
    %p249 = por %p247, %p248
    %p250 = scmp.ne.s32.totalorder %s238, %s239
    %p251 = scmp.eq.s32.totalorder %s30, 2
    %p252 = por %p250, %p251
    %p254 = scmp.ne.s32.totalorder %s239, %s253
    %p255 = scmp.eq.s32.totalorder %s30, 0
    %p256 = por %p254, %p255
    %s258 = sadd.s32 %s257, 1
    %p261 = scmp.eq.s32.totalorder %s24, 2
    %p262 = scmp.ne.s32.totalorder %s257, %s259
    %p263 = scmp.eq.s32.totalorder %s24, 0
    %p264 = por %p262, %p263
    %p265 = scmp.ne.s32.totalorder %s257, %s259
    %p266 = scmp.eq.s32.totalorder %s29, 2
    %p267 = por %p265, %p266
    %p268 = scmp.ne.s32.totalorder %s259, %s260
    %p269 = scmp.eq.s32.totalorder %s29, 0
    %p270 = por %p268, %p269
    %p271 = scmp.ne.s32.totalorder %s259, %s260
    %p272 = scmp.eq.s32.totalorder %s30, 2
    %p273 = por %p271, %p272
    %p275 = scmp.ne.s32.totalorder %s260, %s274
    %p276 = scmp.eq.s32.totalorder %s30, 0
    %p277 = por %p275, %p276
    %s279 = sadd.s32 %s278, 1
    %p282 = scmp.eq.s32.totalorder %s24, 2
    %p283 = scmp.ne.s32.totalorder %s278, %s280
    %p284 = scmp.eq.s32.totalorder %s24, 0
    %p285 = por %p283, %p284
    %p286 = scmp.ne.s32.totalorder %s278, %s280
    %p287 = scmp.eq.s32.totalorder %s29, 2
    %p288 = por %p286, %p287
    %p289 = scmp.ne.s32.totalorder %s280, %s281
    %p290 = scmp.eq.s32.totalorder %s29, 0
    %p291 = por %p289, %p290
    %p292 = scmp.ne.s32.totalorder %s280, %s281
    %p293 = scmp.eq.s32.totalorder %s30, 2
    %p294 = por %p292, %p293
    %p296 = scmp.ne.s32.totalorder %s281, %s295
    %p297 = scmp.eq.s32.totalorder %s30, 0
    %p298 = por %p296, %p297
    %s300 = sadd.s32 %s299, 1
    %p303 = scmp.eq.s32.totalorder %s24, 2
    %p304 = scmp.ne.s32.totalorder %s299, %s301
    %p305 = scmp.eq.s32.totalorder %s24, 0
    %p306 = por %p304, %p305
    %p307 = scmp.ne.s32.totalorder %s299, %s301
    %p308 = scmp.eq.s32.totalorder %s29, 2
    %p309 = por %p307, %p308
    %p310 = scmp.ne.s32.totalorder %s301, %s302
    %p311 = scmp.eq.s32.totalorder %s29, 0
    %p312 = por %p310, %p311
    %p313 = scmp.ne.s32.totalorder %s301, %s302
    %p314 = scmp.eq.s32.totalorder %s30, 2
    %p315 = por %p313, %p314
    %p317 = scmp.ne.s32.totalorder %s302, %s316
    %p318 = scmp.eq.s32.totalorder %s30, 0
    %p319 = por %p317, %p318
    %s321 = sadd.s32 %s320, 1
    %p324 = scmp.eq.s32.totalorder %s24, 2
    %p325 = scmp.ne.s32.totalorder %s320, %s322
    %p326 = scmp.eq.s32.totalorder %s24, 0
    %p327 = por %p325, %p326
    %p328 = scmp.ne.s32.totalorder %s320, %s322
    %p329 = scmp.eq.s32.totalorder %s29, 2
    %p330 = por %p328, %p329
    %p331 = scmp.ne.s32.totalorder %s322, %s323
    %p332 = scmp.eq.s32.totalorder %s29, 0
    %p333 = por %p331, %p332
    %p334 = scmp.ne.s32.totalorder %s322, %s323
    %p335 = scmp.eq.s32.totalorder %s30, 2
    %p336 = por %p334, %p335
    %p338 = scmp.ne.s32.totalorder %s323, %s337
    %p339 = scmp.eq.s32.totalorder %s30, 0
    %p340 = por %p338, %p339
    %s342 = sadd.s32 %s341, 1
    %p345 = scmp.eq.s32.totalorder %s24, 2
    %p346 = scmp.ne.s32.totalorder %s341, %s343
    %p347 = scmp.eq.s32.totalorder %s24, 0
    %p348 = por %p346, %p347
    %p349 = scmp.ne.s32.totalorder %s341, %s343
    %p350 = scmp.eq.s32.totalorder %s29, 2
    %p351 = por %p349, %p350
    %p352 = scmp.ne.s32.totalorder %s343, %s344
    %p353 = scmp.eq.s32.totalorder %s29, 0
    %p354 = por %p352, %p353
    %p355 = scmp.ne.s32.totalorder %s343, %s344
    %p356 = scmp.eq.s32.totalorder %s30, 2
    %p357 = por %p355, %p356
    %p359 = scmp.ne.s32.totalorder %s344, %s358
    %p360 = scmp.eq.s32.totalorder %s30, 0
    %p361 = por %p359, %p360
    %s363 = sadd.s32 %s362, 1
    %p366 = scmp.eq.s32.totalorder %s24, 2
    %p367 = scmp.ne.s32.totalorder %s362, %s364
    %p368 = scmp.eq.s32.totalorder %s24, 0
    %p369 = por %p367, %p368
    %p370 = scmp.ne.s32.totalorder %s362, %s364
    %p371 = scmp.eq.s32.totalorder %s29, 2
    %p372 = por %p370, %p371
    %p373 = scmp.ne.s32.totalorder %s364, %s365
    %p374 = scmp.eq.s32.totalorder %s29, 0
    %p375 = por %p373, %p374
    %p376 = scmp.ne.s32.totalorder %s364, %s365
    %p377 = scmp.eq.s32.totalorder %s30, 2
    %p378 = por %p376, %p377
    %p380 = scmp.ne.s32.totalorder %s365, %s379
    %p381 = scmp.eq.s32.totalorder %s30, 0
    %p382 = por %p380, %p381
    %s384 = sadd.s32 %s383, 1
    %p387 = scmp.eq.s32.totalorder %s24, 2
    %p388 = scmp.ne.s32.totalorder %s383, %s385
    %p389 = scmp.eq.s32.totalorder %s24, 0
    %p390 = por %p388, %p389
    %p391 = scmp.ne.s32.totalorder %s383, %s385
    %p392 = scmp.eq.s32.totalorder %s29, 2
    %p393 = por %p391, %p392
    %p394 = scmp.ne.s32.totalorder %s385, %s386
    %p395 = scmp.eq.s32.totalorder %s29, 0
    %p396 = por %p394, %p395
    %p397 = scmp.ne.s32.totalorder %s385, %s386
    %p398 = scmp.eq.s32.totalorder %s30, 2
    %p399 = por %p397, %p398
    %p401 = scmp.ne.s32.totalorder %s386, %s400
    %p402 = scmp.eq.s32.totalorder %s30, 0
    %p403 = por %p401, %p402
    %s405 = sadd.s32 %s404, 1
    %p408 = scmp.eq.s32.totalorder %s24, 2
    %p409 = scmp.ne.s32.totalorder %s404, %s406
    %p410 = scmp.eq.s32.totalorder %s24, 0
    %p411 = por %p409, %p410
    %p412 = scmp.ne.s32.totalorder %s404, %s406
    %p413 = scmp.eq.s32.totalorder %s29, 2
    %p414 = por %p412, %p413
    %p415 = scmp.ne.s32.totalorder %s406, %s407
    %p416 = scmp.eq.s32.totalorder %s29, 0
    %p417 = por %p415, %p416
    %p418 = scmp.ne.s32.totalorder %s406, %s407
    %p419 = scmp.eq.s32.totalorder %s30, 2
    %p420 = por %p418, %p419
    %p422 = scmp.ne.s32.totalorder %s407, %s421
    %p423 = scmp.eq.s32.totalorder %s30, 0
    %p424 = por %p422, %p423
    %s426 = sadd.s32 %s425, 1
    %p429 = scmp.eq.s32.totalorder %s24, 2
    %p430 = scmp.ne.s32.totalorder %s425, %s427
    %p431 = scmp.eq.s32.totalorder %s24, 0
    %p432 = por %p430, %p431
    %p433 = scmp.ne.s32.totalorder %s425, %s427
    %p434 = scmp.eq.s32.totalorder %s29, 2
    %p435 = por %p433, %p434
    %p436 = scmp.ne.s32.totalorder %s427, %s428
    %p437 = scmp.eq.s32.totalorder %s29, 0
    %p438 = por %p436, %p437
    %p439 = scmp.ne.s32.totalorder %s427, %s428
    %p440 = scmp.eq.s32.totalorder %s30, 2
    %p441 = por %p439, %p440
    %p443 = scmp.ne.s32.totalorder %s428, %s442
    %p444 = scmp.eq.s32.totalorder %s30, 0
    %p445 = por %p443, %p444
    %s447 = sadd.s32 %s446, 1
    %p450 = scmp.eq.s32.totalorder %s24, 2
    %p451 = scmp.ne.s32.totalorder %s446, %s448
    %p452 = scmp.eq.s32.totalorder %s24, 0
    %p453 = por %p451, %p452
    %p454 = scmp.ne.s32.totalorder %s446, %s448
    %p455 = scmp.eq.s32.totalorder %s29, 2
    %p456 = por %p454, %p455
    %p457 = scmp.ne.s32.totalorder %s448, %s449
    %p458 = scmp.eq.s32.totalorder %s29, 0
    %p459 = por %p457, %p458
    %p460 = scmp.ne.s32.totalorder %s448, %s449
    %p461 = scmp.eq.s32.totalorder %s30, 2
    %p462 = por %p460, %p461
    %p464 = scmp.ne.s32.totalorder %s449, %s463
    %p465 = scmp.eq.s32.totalorder %s30, 0
    %p466 = por %p464, %p465
    %s468 = sadd.s32 %s467, 1
    %p471 = scmp.eq.s32.totalorder %s24, 2
    %p472 = scmp.ne.s32.totalorder %s467, %s469
    %p473 = scmp.eq.s32.totalorder %s24, 0
    %p474 = por %p472, %p473
    %p475 = scmp.ne.s32.totalorder %s467, %s469
    %p476 = scmp.eq.s32.totalorder %s29, 2
    %p477 = por %p475, %p476
    %p478 = scmp.ne.s32.totalorder %s469, %s470
    %p479 = scmp.eq.s32.totalorder %s29, 0
    %p480 = por %p478, %p479
    %p481 = scmp.ne.s32.totalorder %s469, %s470
    %p482 = scmp.eq.s32.totalorder %s30, 2
    %p483 = por %p481, %p482
    %p485 = scmp.ne.s32.totalorder %s470, %s484
    %p486 = scmp.eq.s32.totalorder %s30, 0
    %p487 = por %p485, %p486
    %s488 = ssub.s32 %s31, %s43
    %p489 = scmp.eq.s32.totalorder %s488, 0
    %s491 = sadd.s32 %s490, 1
    %s492 = scalar_select %p489, %s490, %s491
    %p495 = pneg %p489
    %p496 = scmp.eq.s32.totalorder %s24, 2
    %p497 = por %p495, %p496
    %p498 = scmp.ne.s32.totalorder %s490, %s493
    %p499 = scmp.eq.s32.totalorder %s24, 0
    %p500 = por %p498, %p499
    %p501 = scmp.ne.s32.totalorder %s490, %s493
    %p502 = scmp.eq.s32.totalorder %s29, 2
    %p503 = por %p501, %p502
    %p504 = scmp.ne.s32.totalorder %s493, %s494
    %p505 = scmp.eq.s32.totalorder %s29, 0
    %p506 = por %p504, %p505
    %p507 = scmp.ne.s32.totalorder %s493, %s494
    %p508 = scmp.eq.s32.totalorder %s30, 2
    %p509 = por %p507, %p508
    %p511 = scmp.ne.s32.totalorder %s494, %s510
    %p512 = scmp.eq.s32.totalorder %s30, 0
    %p513 = por %p511, %p512
    %p514 = scmp.le.s32.totalorder 1, %s24
    %p515 = scmp.lt.s32.totalorder %s24, 4
    %p516 = pnand %p514, %p515
    %p517 = pneg %p516
    // Predicated region
    $region9: #{tpu_custom_call.1} parent=5 // pred_check
      _
    $region10: #{tpu_custom_call.1} parent=5 // pred_check_branch
      %519 = sbr.rel (%p516) target = $region12
    $region11: #{tpu_custom_call.1} parent=5 // pred_region
      %s520 = ssub.s32 %s24, 1
      // Predicated region
      $region13: #{tpu_custom_call.1} parent=11 // pred_check
        %p521 = pneg %p62
      $region14: #{tpu_custom_call.1} parent=11 // pred_check_branch
        %523 = sbr.rel (%p521) target = $region16
      $region15: #{tpu_custom_call.1} parent=11 // pred_region
        %s524 = smul.u32 32, %s33
        %p525 = scmp.lt.s32.totalorder %s524, 31
        %s526 = scalar_select %p525, %s524, 31
        %s527 = smul.addr %s526, 8
        %s528 = scalar_lea.vmem %s0, %s527
        %s529 = smul.u32 32, %s33
      $region16: #{tpu_custom_call.1} parent=11 // pred_fallthru
        _
      // Predicated region
      $region17: #{tpu_custom_call.1} parent=11 // pred_check
        %p530 = pneg %p126
      $region18: #{tpu_custom_call.1} parent=11 // pred_check_branch
        %532 = sbr.rel (%p530) target = $region20
      $region19: #{tpu_custom_call.1} parent=11 // pred_region
        %s533 = smul.u32 32, %s33
        %p534 = scmp.lt.s32.totalorder %s533, 31
        %s535 = scalar_select %p534, %s533, 31
        %s536 = smul.addr %s535, 8
        %s537 = scalar_lea.vmem %s2, %s536
        %s538 = smul.u32 32, %s33
      $region20: #{tpu_custom_call.1} parent=11 // pred_fallthru
        _
      // Predicated region
      $region21: #{tpu_custom_call.1} parent=11 // pred_check
        %p539 = pneg %p190
      $region22: #{tpu_custom_call.1} parent=11 // pred_check_branch
        %541 = sbr.rel (%p539) target = $region24
      $region23: #{tpu_custom_call.1} parent=11 // pred_region
        %s542 = smul.u32 32, %s33
        %p543 = scmp.lt.s32.totalorder %s542, 31
        %s544 = scalar_select %p543, %s542, 31
        %s545 = smul.addr %s544, 8
        %s546 = scalar_lea.vmem %s4, %s545
        %s547 = smul.u32 32, %s33
      $region24: #{tpu_custom_call.1} parent=11 // pred_fallthru
        _
      // Predicated region
      $region25: #{tpu_custom_call.1} parent=11 // pred_check
        %p548 = pneg %p249
      $region26: #{tpu_custom_call.1} parent=11 // pred_check_branch
        %550 = sbr.rel (%p548) target = $region28
      $region27: #{tpu_custom_call.1} parent=11 // pred_region
        _
      $region28: #{tpu_custom_call.1} parent=11 // pred_fallthru
        _
      // Predicated region
      $region29: #{tpu_custom_call.1} parent=11 // pred_check
        %p551 = pneg %p270
      $region30: #{tpu_custom_call.1} parent=11 // pred_check_branch
        %553 = sbr.rel (%p551) target = $region32
      $region31: #{tpu_custom_call.1} parent=11 // pred_region
        _
      $region32: #{tpu_custom_call.1} parent=11 // pred_fallthru
        _
      // Predicated region
      $region33: #{tpu_custom_call.1} parent=11 // pred_check
        %p554 = pneg %p291
      $region34: #{tpu_custom_call.1} parent=11 // pred_check_branch
        %556 = sbr.rel (%p554) target = $region36
      $region35: #{tpu_custom_call.1} parent=11 // pred_region
        _
      $region36: #{tpu_custom_call.1} parent=11 // pred_fallthru
        _
      // Predicated region
      $region37: #{tpu_custom_call.1} parent=11 // pred_check
        %p557 = pneg %p312
      $region38: #{tpu_custom_call.1} parent=11 // pred_check_branch
        %559 = sbr.rel (%p557) target = $region40
      $region39: #{tpu_custom_call.1} parent=11 // pred_region
        _
      $region40: #{tpu_custom_call.1} parent=11 // pred_fallthru
        _
      // Predicated region
      $region41: #{tpu_custom_call.1} parent=11 // pred_check
        %p560 = pneg %p333
      $region42: #{tpu_custom_call.1} parent=11 // pred_check_branch
        %562 = sbr.rel (%p560) target = $region44
      $region43: #{tpu_custom_call.1} parent=11 // pred_region
        _
      $region44: #{tpu_custom_call.1} parent=11 // pred_fallthru
        _
      // Predicated region
      $region45: #{tpu_custom_call.1} parent=11 // pred_check
        %p563 = pneg %p354
      $region46: #{tpu_custom_call.1} parent=11 // pred_check_branch
        %565 = sbr.rel (%p563) target = $region48
      $region47: #{tpu_custom_call.1} parent=11 // pred_region
        _
      $region48: #{tpu_custom_call.1} parent=11 // pred_fallthru
        _
      // Predicated region
      $region49: #{tpu_custom_call.1} parent=11 // pred_check
        %p566 = pneg %p375
      $region50: #{tpu_custom_call.1} parent=11 // pred_check_branch
        %568 = sbr.rel (%p566) target = $region52
      $region51: #{tpu_custom_call.1} parent=11 // pred_region
        _
      $region52: #{tpu_custom_call.1} parent=11 // pred_fallthru
        _
      // Predicated region
      $region53: #{tpu_custom_call.1} parent=11 // pred_check
        %p569 = pneg %p396
      $region54: #{tpu_custom_call.1} parent=11 // pred_check_branch
        %571 = sbr.rel (%p569) target = $region56
      $region55: #{tpu_custom_call.1} parent=11 // pred_region
        _
      $region56: #{tpu_custom_call.1} parent=11 // pred_fallthru
        _
      // Predicated region
      $region57: #{tpu_custom_call.1} parent=11 // pred_check
        %p572 = pneg %p417
      $region58: #{tpu_custom_call.1} parent=11 // pred_check_branch
        %574 = sbr.rel (%p572) target = $region60
      $region59: #{tpu_custom_call.1} parent=11 // pred_region
        _
      $region60: #{tpu_custom_call.1} parent=11 // pred_fallthru
        _
      // Predicated region
      $region61: #{tpu_custom_call.1} parent=11 // pred_check
        %p575 = pneg %p438
      $region62: #{tpu_custom_call.1} parent=11 // pred_check_branch
        %577 = sbr.rel (%p575) target = $region64
      $region63: #{tpu_custom_call.1} parent=11 // pred_region
        _
      $region64: #{tpu_custom_call.1} parent=11 // pred_fallthru
        _
      // Predicated region
      $region65: #{tpu_custom_call.1} parent=11 // pred_check
        %p578 = pneg %p459
      $region66: #{tpu_custom_call.1} parent=11 // pred_check_branch
        %580 = sbr.rel (%p578) target = $region68
      $region67: #{tpu_custom_call.1} parent=11 // pred_region
        _
      $region68: #{tpu_custom_call.1} parent=11 // pred_fallthru
        _
      // Predicated region
      $region69: #{tpu_custom_call.1} parent=11 // pred_check
        %p581 = pneg %p480
      $region70: #{tpu_custom_call.1} parent=11 // pred_check_branch
        %583 = sbr.rel (%p581) target = $region72
      $region71: #{tpu_custom_call.1} parent=11 // pred_region
        _
      $region72: #{tpu_custom_call.1} parent=11 // pred_fallthru
        _
    $region12: #{tpu_custom_call.1} parent=5 // pred_fallthru
      _
    %p584 = scmp.lt.s32.totalorder %s24, 3
    // Predicated region
    $region73: #{tpu_custom_call.1} parent=5 // pred_check
      %p585 = pneg %p584
    $region74: #{tpu_custom_call.1} parent=5 // pred_check_branch
      %587 = sbr.rel (%p585) target = $region76
    $region75: #{tpu_custom_call.1} parent=5 // pred_region
      // Predicated region
      $region77: #{tpu_custom_call.1} parent=75 // pred_check
        %p588 = pneg %p94
      $region78: #{tpu_custom_call.1} parent=75 // pred_check_branch
        %590 = sbr.rel (%p588) target = $region80
      $region79: #{tpu_custom_call.1} parent=75 // pred_region
        %s591 = sadd.s32 %s31, %s32
        %s592 = ssub.s32 %s591, 1
        %p593 = scmp.gt.s32.totalorder %s592, 0
        %s594 = scalar_select %p593, %s592, 0
        %p595 = scmp.lt.s32.totalorder %s594, 0
        %s596 = scalar_select %p595, %s594, 0
        %s597 = smul.u32 32, %s596
        %p598 = scmp.lt.s32.totalorder %s597, 31
        %s599 = scalar_select %p598, %s597, 31
        %s600 = smul.addr %s599, 8
        %s601 = scalar_lea.vmem %s1, %s600
        %s602 = sadd.s32 %s31, %s32
        %s603 = ssub.s32 %s602, 1
        %p604 = scmp.gt.s32.totalorder %s603, 0
        %s605 = scalar_select %p604, %s603, 0
        %p606 = scmp.lt.s32.totalorder %s605, 0
        %s607 = scalar_select %p606, %s605, 0
        %s608 = smul.u32 32, %s607
      $region80: #{tpu_custom_call.1} parent=75 // pred_fallthru
        _
      // Predicated region
      $region81: #{tpu_custom_call.1} parent=75 // pred_check
        %p609 = pneg %p158
      $region82: #{tpu_custom_call.1} parent=75 // pred_check_branch
        %611 = sbr.rel (%p609) target = $region84
      $region83: #{tpu_custom_call.1} parent=75 // pred_region
        %s612 = sadd.s32 %s31, %s32
        %s613 = ssub.s32 %s612, 1
        %p614 = scmp.gt.s32.totalorder %s613, 0
        %s615 = scalar_select %p614, %s613, 0
        %p616 = scmp.lt.s32.totalorder %s615, 0
        %s617 = scalar_select %p616, %s615, 0
        %s618 = smul.u32 2, %s617
        %p619 = scmp.lt.s32.totalorder %s618, 1
        %s620 = scalar_select %p619, %s618, 1
        %s621 = smul.addr %s620, 8
        %s622 = scalar_lea.vmem %s3, %s621
        %s623 = sadd.s32 %s31, %s32
        %s624 = ssub.s32 %s623, 1
        %p625 = scmp.gt.s32.totalorder %s624, 0
        %s626 = scalar_select %p625, %s624, 0
        %p627 = scmp.lt.s32.totalorder %s626, 0
        %s628 = scalar_select %p627, %s626, 0
        %s629 = smul.u32 2, %s628
      $region84: #{tpu_custom_call.1} parent=75 // pred_fallthru
        _
      // Predicated region
      $region85: #{tpu_custom_call.1} parent=75 // pred_check
        %p630 = pneg %p222
      $region86: #{tpu_custom_call.1} parent=75 // pred_check_branch
        %632 = sbr.rel (%p630) target = $region88
      $region87: #{tpu_custom_call.1} parent=75 // pred_region
        %s633 = sadd.s32 %s31, %s32
        %s634 = ssub.s32 %s633, 1
        %p635 = scmp.gt.s32.totalorder %s634, 0
        %s636 = scalar_select %p635, %s634, 0
        %p637 = scmp.lt.s32.totalorder %s636, 0
        %s638 = scalar_select %p637, %s636, 0
        %s639 = smul.u32 2, %s638
        %p640 = scmp.lt.s32.totalorder %s639, 1
        %s641 = scalar_select %p640, %s639, 1
        %s642 = scalar_lea.vmem %s5, %s641
        %s643 = sadd.s32 %s31, %s32
        %s644 = ssub.s32 %s643, 1
        %p645 = scmp.gt.s32.totalorder %s644, 0
        %s646 = scalar_select %p645, %s644, 0
        %p647 = scmp.lt.s32.totalorder %s646, 0
        %s648 = scalar_select %p647, %s646, 0
        %s649 = smul.u32 2, %s648
      $region88: #{tpu_custom_call.1} parent=75 // pred_fallthru
        _
    $region76: #{tpu_custom_call.1} parent=5 // pred_fallthru
      _
    %p650 = scmp.le.s32.totalorder 1, %s24
    %p651 = scmp.lt.s32.totalorder %s24, 4
    %p652 = pnand %p650, %p651
    %p653 = pneg %p652
    // Predicated region
    $region89: #{tpu_custom_call.1} parent=5 // pred_check
      _
    $region90: #{tpu_custom_call.1} parent=5 // pred_check_branch
      %655 = sbr.rel (%p652) target = $region92
    $region91: #{tpu_custom_call.1} parent=5 // pred_region
      %s656 = ssub.s32 %s24, 1
      %s657 = smul.u32 32, %s33
      %p658 = scmp.lt.s32.totalorder %s657, 31
      %s659 = scalar_select %p658, %s657, 31
      %s660 = smul.addr %s659, 8
      %s661 = scalar_lea.vmem %s0, %s660
      %p662 = pneg %p62
      %p663 = pneg %p59
      %s664 = sadd.s32 %s33, %s34
      %s665 = ssub.s32 %s664, 1
      %p666 = scmp.gt.s32.totalorder %s665, 0
      %s667 = scalar_select %p666, %s665, 0
      %p668 = scmp.lt.s32.totalorder %s667, 0
      %s669 = scalar_select %p668, %s667, 0
      %s670 = smul.u32 32, %s669
      %p671 = scmp.lt.s32.totalorder %s670, 31
      %s672 = scalar_select %p671, %s670, 31
      %s673 = smul.addr %s672, 8
      %s674 = scalar_lea.vmem %s1, %s673
      %p675 = pneg %p100
      %p676 = pneg %p97
      %s677 = smul.u32 32, %s33
      %p678 = scmp.lt.s32.totalorder %s677, 31
      %s679 = scalar_select %p678, %s677, 31
      %s680 = smul.addr %s679, 8
      %s681 = scalar_lea.vmem %s2, %s680
      %p682 = pneg %p126
      %p683 = pneg %p123
      %s684 = sadd.s32 %s33, %s34
      %s685 = ssub.s32 %s684, 1
      %p686 = scmp.gt.s32.totalorder %s685, 0
      %s687 = scalar_select %p686, %s685, 0
      %p688 = scmp.lt.s32.totalorder %s687, 0
      %s689 = scalar_select %p688, %s687, 0
      %s690 = smul.u32 2, %s689
      %p691 = scmp.lt.s32.totalorder %s690, 1
      %s692 = scalar_select %p691, %s690, 1
      %s693 = smul.addr %s692, 8
      %s694 = scalar_lea.vmem %s3, %s693
      %p695 = pneg %p164
      %p696 = pneg %p161
      %s697 = smul.u32 32, %s33
      %p698 = scmp.lt.s32.totalorder %s697, 31
      %s699 = scalar_select %p698, %s697, 31
      %s700 = smul.addr %s699, 8
      %s701 = scalar_lea.vmem %s4, %s700
      %p702 = pneg %p190
      %p703 = pneg %p187
      %s704 = sadd.s32 %s33, %s34
      %s705 = ssub.s32 %s704, 1
      %p706 = scmp.gt.s32.totalorder %s705, 0
      %s707 = scalar_select %p706, %s705, 0
      %p708 = scmp.lt.s32.totalorder %s707, 0
      %s709 = scalar_select %p708, %s707, 0
      %s710 = smul.u32 2, %s709
      %p711 = scmp.lt.s32.totalorder %s710, 1
      %s712 = scalar_select %p711, %s710, 1
      %s713 = scalar_lea.vmem %s5, %s712
      %p714 = pneg %p228
      %p715 = pneg %p225
      %p716 = pneg %p249
      %p717 = pneg %p246
      %p718 = pneg %p270
      %p719 = pneg %p267
      %p720 = pneg %p291
      %p721 = pneg %p288
      %p722 = pneg %p312
      %p723 = pneg %p309
      %p724 = pneg %p333
      %p725 = pneg %p330
      %p726 = pneg %p354
      %p727 = pneg %p351
      %p728 = pneg %p375
      %p729 = pneg %p372
      %p730 = pneg %p396
      %p731 = pneg %p393
      %p732 = pneg %p417
      %p733 = pneg %p414
      %p734 = pneg %p438
      %p735 = pneg %p435
      %p736 = pneg %p459
      %p737 = pneg %p456
      %p738 = pneg %p480
      %p739 = pneg %p477
      %p740 = pneg %p506
      %p741 = pneg %p503
      %s742 = smul.u32 32, %s33
      %p743 = scmp.lt.s32.totalorder %s742, 31
      %s744 = scalar_select %p743, %s742, 31
      %s745 = smul.addr %s744, 8
      %s746 = scalar_lea.vmem %s18, %s745
      %s747 = smul.u32 32, %s33
      %p748 = scmp.lt.s32.totalorder %s747, 31
      %s749 = scalar_select %p748, %s747, 31
      %s750 = smul.addr %s749, 8
      %s751 = scalar_lea.vmem %s0, %s750
      %s752 = smul.u32 32, %s33
      %s753 = sadd.s32 %s33, %s34
      %s754 = ssub.s32 %s753, 1
      %p755 = scmp.gt.s32.totalorder %s754, 0
      %s756 = scalar_select %p755, %s754, 0
      %p757 = scmp.lt.s32.totalorder %s756, 0
      %s758 = scalar_select %p757, %s756, 0
      %s759 = smul.u32 32, %s758
      %p760 = scmp.lt.s32.totalorder %s759, 31
      %s761 = scalar_select %p760, %s759, 31
      %s762 = smul.addr %s761, 8
      %s763 = scalar_lea.vmem %s1, %s762
      %s764 = sadd.s32 %s33, %s34
      %s765 = ssub.s32 %s764, 1
      %p766 = scmp.gt.s32.totalorder %s765, 0
      %s767 = scalar_select %p766, %s765, 0
      %p768 = scmp.lt.s32.totalorder %s767, 0
      %s769 = scalar_select %p768, %s767, 0
      %s770 = smul.u32 32, %s769
      %s771 = smul.u32 32, %s33
      %p772 = scmp.lt.s32.totalorder %s771, 31
      %s773 = scalar_select %p772, %s771, 31
      %s774 = smul.addr %s773, 8
      %s775 = scalar_lea.vmem %s2, %s774
      %s776 = smul.u32 32, %s33
      %s777 = sadd.s32 %s33, %s34
      %s778 = ssub.s32 %s777, 1
      %p779 = scmp.gt.s32.totalorder %s778, 0
      %s780 = scalar_select %p779, %s778, 0
      %p781 = scmp.lt.s32.totalorder %s780, 0
      %s782 = scalar_select %p781, %s780, 0
      %s783 = smul.u32 2, %s782
      %p784 = scmp.lt.s32.totalorder %s783, 1
      %s785 = scalar_select %p784, %s783, 1
      %s786 = smul.addr %s785, 8
      %s787 = scalar_lea.vmem %s3, %s786
      %s788 = sadd.s32 %s33, %s34
      %s789 = ssub.s32 %s788, 1
      %p790 = scmp.gt.s32.totalorder %s789, 0
      %s791 = scalar_select %p790, %s789, 0
      %p792 = scmp.lt.s32.totalorder %s791, 0
      %s793 = scalar_select %p792, %s791, 0
      %s794 = smul.u32 2, %s793
      %s795 = smul.u32 32, %s33
      %p796 = scmp.lt.s32.totalorder %s795, 31
      %s797 = scalar_select %p796, %s795, 31
      %s798 = smul.addr %s797, 8
      %s799 = scalar_lea.vmem %s4, %s798
      %s800 = smul.u32 32, %s33
      %s801 = sadd.s32 %s33, %s34
      %s802 = ssub.s32 %s801, 1
      %p803 = scmp.gt.s32.totalorder %s802, 0
      %s804 = scalar_select %p803, %s802, 0
      %p805 = scmp.lt.s32.totalorder %s804, 0
      %s806 = scalar_select %p805, %s804, 0
      %s807 = smul.u32 2, %s806
      %p808 = scmp.lt.s32.totalorder %s807, 1
      %s809 = scalar_select %p808, %s807, 1
      %s810 = scalar_lea.vmem %s5, %s809
      %s811 = sadd.s32 %s33, %s34
      %s812 = ssub.s32 %s811, 1
      %p813 = scmp.gt.s32.totalorder %s812, 0
      %s814 = scalar_select %p813, %s812, 0
      %p815 = scmp.lt.s32.totalorder %s814, 0
      %s816 = scalar_select %p815, %s814, 0
      %s817 = smul.u32 2, %s816
      %s818 = smul.u32 32, %s33
      %p819 = scmp.lt.s32.totalorder %s818, 31
      %s820 = scalar_select %p819, %s818, 31
      %s821 = smul.addr %s820, 8
      %s822 = scalar_lea.vmem %s18, %s821
      %s823 = smul.u32 32, %s33
      %p825 = scmp.eq.s32.totalorder %s34, 0
      // Predicated region
      $region93: #{tpu_custom_call.1} parent=91 // pred_check
        %p826 = pneg %p825
      $region94: #{tpu_custom_call.1} parent=91 // pred_check_branch
        %828 = sbr.rel (%p826) target = $region96
      $region95: #{tpu_custom_call.1} parent=91 // pred_region
        %vm829 = vcmask 64512
        %830 = vst.msk [vmem:[#allocation2] sm:$0xff] %vm829, 0.0
        %831 = vst.msk [vmem:[#allocation2 + $0x8] sm:$0xff] %vm829, 0.0
        %832 = vst.msk [vmem:[#allocation2 + $0x10] sm:$0xff] %vm829, 0.0
        %833 = vst.msk [vmem:[#allocation2 + $0x18] sm:$0xff] %vm829, 0.0
        %834 = vst.msk [vmem:[#allocation2 + $0x20] sm:$0xff] %vm829, 0.0
        %835 = vst.msk [vmem:[#allocation2 + $0x28] sm:$0xff] %vm829, 0.0
        %836 = vst.msk [vmem:[#allocation2 + $0x30] sm:$0xff] %vm829, 0.0
        %837 = vst.msk [vmem:[#allocation2 + $0x38] sm:$0xff] %vm829, 0.0
        %838 = vst.msk [vmem:[#allocation2 + $0x40] sm:$0xff] %vm829, 0.0
        %839 = vst.msk [vmem:[#allocation2 + $0x48] sm:$0xff] %vm829, 0.0
        %840 = vst.msk [vmem:[#allocation2 + $0x50] sm:$0xff] %vm829, 0.0
        %841 = vst.msk [vmem:[#allocation2 + $0x58] sm:$0xff] %vm829, 0.0
        %842 = vst.msk [vmem:[#allocation2 + $0x60] sm:$0xff] %vm829, 0.0
        %843 = vst.msk [vmem:[#allocation2 + $0x68] sm:$0xff] %vm829, 0.0
        %844 = vst.msk [vmem:[#allocation2 + $0x70] sm:$0xff] %vm829, 0.0
        %845 = vst.msk [vmem:[#allocation2 + $0x78] sm:$0xff] %vm829, 0.0
        %846 = vst.msk [vmem:[#allocation2 + $0x80] sm:$0xff] %vm829, 0.0
        %847 = vst.msk [vmem:[#allocation2 + $0x88] sm:$0xff] %vm829, 0.0
        %848 = vst.msk [vmem:[#allocation2 + $0x90] sm:$0xff] %vm829, 0.0
        %849 = vst.msk [vmem:[#allocation2 + $0x98] sm:$0xff] %vm829, 0.0
        %850 = vst.msk [vmem:[#allocation2 + $0xa0] sm:$0xff] %vm829, 0.0
        %851 = vst.msk [vmem:[#allocation2 + $0xa8] sm:$0xff] %vm829, 0.0
        %852 = vst.msk [vmem:[#allocation2 + $0xb0] sm:$0xff] %vm829, 0.0
        %853 = vst.msk [vmem:[#allocation2 + $0xb8] sm:$0xff] %vm829, 0.0
        %854 = vst.msk [vmem:[#allocation2 + $0xc0] sm:$0xff] %vm829, 0.0
        %855 = vst.msk [vmem:[#allocation2 + $0xc8] sm:$0xff] %vm829, 0.0
        %856 = vst.msk [vmem:[#allocation2 + $0xd0] sm:$0xff] %vm829, 0.0
        %857 = vst.msk [vmem:[#allocation2 + $0xd8] sm:$0xff] %vm829, 0.0
        %858 = vst.msk [vmem:[#allocation2 + $0xe0] sm:$0xff] %vm829, 0.0
        %859 = vst.msk [vmem:[#allocation2 + $0xe8] sm:$0xff] %vm829, 0.0
        %860 = vst.msk [vmem:[#allocation2 + $0xf0] sm:$0xff] %vm829, 0.0
        %861 = vst.msk [vmem:[#allocation2 + $0xf8] sm:$0xff] %vm829, 0.0
        %vm862 = vcmask 7168
        %863 = vst.msk [vmem:[#allocation3] sm:$0xff] %vm862, 0.0
        %864 = vst.msk [vmem:[#allocation3 + $0x8] sm:$0xff] %vm862, 0.0
        %865 = vst.msk [vmem:[#allocation3 + $0x10] sm:$0xff] %vm862, 0.0
        %866 = vst.msk [vmem:[#allocation3 + $0x18] sm:$0xff] %vm862, 0.0
        %867 = vst.msk [vmem:[#allocation3 + $0x20] sm:$0xff] %vm862, 0.0
        %868 = vst.msk [vmem:[#allocation3 + $0x28] sm:$0xff] %vm862, 0.0
        %869 = vst.msk [vmem:[#allocation3 + $0x30] sm:$0xff] %vm862, 0.0
        %870 = vst.msk [vmem:[#allocation3 + $0x38] sm:$0xff] %vm862, 0.0
        %871 = vst.msk [vmem:[#allocation3 + $0x40] sm:$0xff] %vm862, 0.0
        %872 = vst.msk [vmem:[#allocation3 + $0x48] sm:$0xff] %vm862, 0.0
        %873 = vst.msk [vmem:[#allocation3 + $0x50] sm:$0xff] %vm862, 0.0
        %874 = vst.msk [vmem:[#allocation3 + $0x58] sm:$0xff] %vm862, 0.0
        %875 = vst.msk [vmem:[#allocation3 + $0x60] sm:$0xff] %vm862, 0.0
        %876 = vst.msk [vmem:[#allocation3 + $0x68] sm:$0xff] %vm862, 0.0
        %877 = vst.msk [vmem:[#allocation3 + $0x70] sm:$0xff] %vm862, 0.0
        %878 = vst.msk [vmem:[#allocation3 + $0x78] sm:$0xff] %vm862, 0.0
        %879 = vst.msk [vmem:[#allocation3 + $0x80] sm:$0xff] %vm862, 0.0
        %880 = vst.msk [vmem:[#allocation3 + $0x88] sm:$0xff] %vm862, 0.0
        %881 = vst.msk [vmem:[#allocation3 + $0x90] sm:$0xff] %vm862, 0.0
        %882 = vst.msk [vmem:[#allocation3 + $0x98] sm:$0xff] %vm862, 0.0
        %883 = vst.msk [vmem:[#allocation3 + $0xa0] sm:$0xff] %vm862, 0.0
        %884 = vst.msk [vmem:[#allocation3 + $0xa8] sm:$0xff] %vm862, 0.0
        %885 = vst.msk [vmem:[#allocation3 + $0xb0] sm:$0xff] %vm862, 0.0
        %886 = vst.msk [vmem:[#allocation3 + $0xb8] sm:$0xff] %vm862, 0.0
        %887 = vst.msk [vmem:[#allocation3 + $0xc0] sm:$0xff] %vm862, 0.0
        %888 = vst.msk [vmem:[#allocation3 + $0xc8] sm:$0xff] %vm862, 0.0
        %889 = vst.msk [vmem:[#allocation3 + $0xd0] sm:$0xff] %vm862, 0.0
        %890 = vst.msk [vmem:[#allocation3 + $0xd8] sm:$0xff] %vm862, 0.0
        %891 = vst.msk [vmem:[#allocation3 + $0xe0] sm:$0xff] %vm862, 0.0
        %892 = vst.msk [vmem:[#allocation3 + $0xe8] sm:$0xff] %vm862, 0.0
        %893 = vst.msk [vmem:[#allocation3 + $0xf0] sm:$0xff] %vm862, 0.0
        %894 = vst.msk [vmem:[#allocation3 + $0xf8] sm:$0xff] %vm862, 0.0
      $region96: #{tpu_custom_call.1} parent=91 // pred_fallthru
        _
      %s895 = sadd.s32 %s33, %s34
      %s896 = ssub.s32 %s895, 1
      %p897 = scmp.ge.s32.totalorder %s896, 0
      %p898 = scmp.lt.s32.totalorder %s896, 1
      %p899 = pnand %p897, %p898
      %p900 = pneg %p899
      // Predicated region
      $region97: #{tpu_custom_call.1} parent=91 // pred_check
        _
      $region98: #{tpu_custom_call.1} parent=91 // pred_check_branch
        %902 = sbr.rel (%p899) target = $region100
      $region99: #{tpu_custom_call.1} parent=91 // pred_region
        %v903 = vld [vmem:[%s763] sm:$0xff]
        %v904 = vld [vmem:[%s763 + $0x8] sm:$0xff]
        %v905 = vld [vmem:[%s763 + $0x10] sm:$0xff]
        %v906 = vld [vmem:[%s763 + $0x18] sm:$0xff]
        %v907 = vld [vmem:[%s763 + $0x20] sm:$0xff]
        %v908 = vld [vmem:[%s763 + $0x28] sm:$0xff]
        %v909 = vld [vmem:[%s763 + $0x30] sm:$0xff]
        %v910 = vld [vmem:[%s763 + $0x38] sm:$0xff]
        %v911 = vld [vmem:[%s763 + $0x40] sm:$0xff]
        %v912 = vld [vmem:[%s763 + $0x48] sm:$0xff]
        %v913 = vld [vmem:[%s763 + $0x50] sm:$0xff]
        %v914 = vld [vmem:[%s763 + $0x58] sm:$0xff]
        %v915 = vld [vmem:[%s763 + $0x60] sm:$0xff]
        %v916 = vld [vmem:[%s763 + $0x68] sm:$0xff]
        %v917 = vld [vmem:[%s763 + $0x70] sm:$0xff]
        %v918 = vld [vmem:[%s763 + $0x78] sm:$0xff]
        %v919 = vld [vmem:[%s763 + $0x80] sm:$0xff]
        %v920 = vld [vmem:[%s763 + $0x88] sm:$0xff]
        %v921 = vld [vmem:[%s763 + $0x90] sm:$0xff]
        %v922 = vld [vmem:[%s763 + $0x98] sm:$0xff]
        %v923 = vld [vmem:[%s763 + $0xa0] sm:$0xff]
        %v924 = vld [vmem:[%s763 + $0xa8] sm:$0xff]
        %v925 = vld [vmem:[%s763 + $0xb0] sm:$0xff]
        %v926 = vld [vmem:[%s763 + $0xb8] sm:$0xff]
        %v927 = vld [vmem:[%s763 + $0xc0] sm:$0xff]
        %v928 = vld [vmem:[%s763 + $0xc8] sm:$0xff]
        %v929 = vld [vmem:[%s763 + $0xd0] sm:$0xff]
        %v930 = vld [vmem:[%s763 + $0xd8] sm:$0xff]
        %v931 = vld [vmem:[%s763 + $0xe0] sm:$0xff]
        %v932 = vld [vmem:[%s763 + $0xe8] sm:$0xff]
        %v933 = vld [vmem:[%s763 + $0xf0] sm:$0xff]
        %v934 = vld [vmem:[%s763 + $0xf8] sm:$0xff]
        %v935 = vld [vmem:[%s6] sm:$0x1]
        %v937 = vlaneseq
        %v938 = vshrl.u32 %v937, 7
        %v939 = vsub.s32 0, %v938
        %v940 = vrot.slane %v935, %v939
        %v942 = vmul.f32 %v903, %v940
        %v943 = vmul.f32 %v904, %v940
        %v944 = vmul.f32 %v905, %v940
        %v945 = vmul.f32 %v906, %v940
        %v946 = vmul.f32 %v907, %v940
        %v947 = vmul.f32 %v908, %v940
        %v948 = vmul.f32 %v909, %v940
        %v949 = vmul.f32 %v910, %v940
        %v950 = vmul.f32 %v911, %v940
        %v951 = vmul.f32 %v912, %v940
        %v952 = vmul.f32 %v913, %v940
        %v953 = vmul.f32 %v914, %v940
        %v954 = vmul.f32 %v915, %v940
        %v955 = vmul.f32 %v916, %v940
        %v956 = vmul.f32 %v917, %v940
        %v957 = vmul.f32 %v918, %v940
        %v958 = vmul.f32 %v919, %v940
        %v959 = vmul.f32 %v920, %v940
        %v960 = vmul.f32 %v921, %v940
        %v961 = vmul.f32 %v922, %v940
        %v962 = vmul.f32 %v923, %v940
        %v963 = vmul.f32 %v924, %v940
        %v964 = vmul.f32 %v925, %v940
        %v965 = vmul.f32 %v926, %v940
        %v966 = vmul.f32 %v927, %v940
        %v967 = vmul.f32 %v928, %v940
        %v968 = vmul.f32 %v929, %v940
        %v969 = vmul.f32 %v930, %v940
        %v970 = vmul.f32 %v931, %v940
        %v971 = vmul.f32 %v932, %v940
        %v972 = vmul.f32 %v933, %v940
        %v973 = vmul.f32 %v934, %v940
        %v974 = vld [vmem:[%s7] sm:$0x1]
        %v976 = vlaneseq
        %v977 = vshrl.u32 %v976, 7
        %v978 = vsub.s32 0, %v977
        %v979 = vrot.slane %v974, %v978
        %v981 = vadd.f32 %v942, %v979
        %v982 = vadd.f32 %v943, %v979
        %v983 = vadd.f32 %v944, %v979
        %v984 = vadd.f32 %v945, %v979
        %v985 = vadd.f32 %v946, %v979
        %v986 = vadd.f32 %v947, %v979
        %v987 = vadd.f32 %v948, %v979
        %v988 = vadd.f32 %v949, %v979
        %v989 = vadd.f32 %v950, %v979
        %v990 = vadd.f32 %v951, %v979
        %v991 = vadd.f32 %v952, %v979
        %v992 = vadd.f32 %v953, %v979
        %v993 = vadd.f32 %v954, %v979
        %v994 = vadd.f32 %v955, %v979
        %v995 = vadd.f32 %v956, %v979
        %v996 = vadd.f32 %v957, %v979
        %v997 = vadd.f32 %v958, %v979
        %v998 = vadd.f32 %v959, %v979
        %v999 = vadd.f32 %v960, %v979
        %v1000 = vadd.f32 %v961, %v979
        %v1001 = vadd.f32 %v962, %v979
        %v1002 = vadd.f32 %v963, %v979
        %v1003 = vadd.f32 %v964, %v979
        %v1004 = vadd.f32 %v965, %v979
        %v1005 = vadd.f32 %v966, %v979
        %v1006 = vadd.f32 %v967, %v979
        %v1007 = vadd.f32 %v968, %v979
        %v1008 = vadd.f32 %v969, %v979
        %v1009 = vadd.f32 %v970, %v979
        %v1010 = vadd.f32 %v971, %v979
        %v1011 = vadd.f32 %v972, %v979
        %v1012 = vadd.f32 %v973, %v979
        %vm1013 = vcmp.ge.f32.partialorder %v981, 0.0
        %vm1014 = vcmp.ge.f32.partialorder %v982, 0.0
        %vm1015 = vcmp.ge.f32.partialorder %v983, 0.0
        %vm1016 = vcmp.ge.f32.partialorder %v984, 0.0
        %vm1017 = vcmp.ge.f32.partialorder %v985, 0.0
        %vm1018 = vcmp.ge.f32.partialorder %v986, 0.0
        %vm1019 = vcmp.ge.f32.partialorder %v987, 0.0
        %vm1020 = vcmp.ge.f32.partialorder %v988, 0.0
        %vm1021 = vcmp.ge.f32.partialorder %v989, 0.0
        %vm1022 = vcmp.ge.f32.partialorder %v990, 0.0
        %vm1023 = vcmp.ge.f32.partialorder %v991, 0.0
        %vm1024 = vcmp.ge.f32.partialorder %v992, 0.0
        %vm1025 = vcmp.ge.f32.partialorder %v993, 0.0
        %vm1026 = vcmp.ge.f32.partialorder %v994, 0.0
        %vm1027 = vcmp.ge.f32.partialorder %v995, 0.0
        %vm1028 = vcmp.ge.f32.partialorder %v996, 0.0
        %vm1029 = vcmp.ge.f32.partialorder %v997, 0.0
        %vm1030 = vcmp.ge.f32.partialorder %v998, 0.0
        %vm1031 = vcmp.ge.f32.partialorder %v999, 0.0
        %vm1032 = vcmp.ge.f32.partialorder %v1000, 0.0
        %vm1033 = vcmp.ge.f32.partialorder %v1001, 0.0
        %vm1034 = vcmp.ge.f32.partialorder %v1002, 0.0
        %vm1035 = vcmp.ge.f32.partialorder %v1003, 0.0
        %vm1036 = vcmp.ge.f32.partialorder %v1004, 0.0
        %vm1037 = vcmp.ge.f32.partialorder %v1005, 0.0
        %vm1038 = vcmp.ge.f32.partialorder %v1006, 0.0
        %vm1039 = vcmp.ge.f32.partialorder %v1007, 0.0
        %vm1040 = vcmp.ge.f32.partialorder %v1008, 0.0
        %vm1041 = vcmp.ge.f32.partialorder %v1009, 0.0
        %vm1042 = vcmp.ge.f32.partialorder %v1010, 0.0
        %vm1043 = vcmp.ge.f32.partialorder %v1011, 0.0
        %vm1044 = vcmp.ge.f32.partialorder %v1012, 0.0
        %v1045 = vmul.f32 %v981, 0.1
        %v1046 = vmul.f32 %v982, 0.1
        %v1047 = vmul.f32 %v983, 0.1
        %v1048 = vmul.f32 %v984, 0.1
        %v1049 = vmul.f32 %v985, 0.1
        %v1050 = vmul.f32 %v986, 0.1
        %v1051 = vmul.f32 %v987, 0.1
        %v1052 = vmul.f32 %v988, 0.1
        %v1053 = vmul.f32 %v989, 0.1
        %v1054 = vmul.f32 %v990, 0.1
        %v1055 = vmul.f32 %v991, 0.1
        %v1056 = vmul.f32 %v992, 0.1
        %v1057 = vmul.f32 %v993, 0.1
        %v1058 = vmul.f32 %v994, 0.1
        %v1059 = vmul.f32 %v995, 0.1
        %v1060 = vmul.f32 %v996, 0.1
        %v1061 = vmul.f32 %v997, 0.1
        %v1062 = vmul.f32 %v998, 0.1
        %v1063 = vmul.f32 %v999, 0.1
        %v1064 = vmul.f32 %v1000, 0.1
        %v1065 = vmul.f32 %v1001, 0.1
        %v1066 = vmul.f32 %v1002, 0.1
        %v1067 = vmul.f32 %v1003, 0.1
        %v1068 = vmul.f32 %v1004, 0.1
        %v1069 = vmul.f32 %v1005, 0.1
        %v1070 = vmul.f32 %v1006, 0.1
        %v1071 = vmul.f32 %v1007, 0.1
        %v1072 = vmul.f32 %v1008, 0.1
        %v1073 = vmul.f32 %v1009, 0.1
        %v1074 = vmul.f32 %v1010, 0.1
        %v1075 = vmul.f32 %v1011, 0.1
        %v1076 = vmul.f32 %v1012, 0.1
        %v1077 = vsel %vm1013, %v981, %v1045
        %v1078 = vsel %vm1014, %v982, %v1046
        %v1079 = vsel %vm1015, %v983, %v1047
        %v1080 = vsel %vm1016, %v984, %v1048
        %v1081 = vsel %vm1017, %v985, %v1049
        %v1082 = vsel %vm1018, %v986, %v1050
        %v1083 = vsel %vm1019, %v987, %v1051
        %v1084 = vsel %vm1020, %v988, %v1052
        %v1085 = vsel %vm1021, %v989, %v1053
        %v1086 = vsel %vm1022, %v990, %v1054
        %v1087 = vsel %vm1023, %v991, %v1055
        %v1088 = vsel %vm1024, %v992, %v1056
        %v1089 = vsel %vm1025, %v993, %v1057
        %v1090 = vsel %vm1026, %v994, %v1058
        %v1091 = vsel %vm1027, %v995, %v1059
        %v1092 = vsel %vm1028, %v996, %v1060
        %v1093 = vsel %vm1029, %v997, %v1061
        %v1094 = vsel %vm1030, %v998, %v1062
        %v1095 = vsel %vm1031, %v999, %v1063
        %v1096 = vsel %vm1032, %v1000, %v1064
        %v1097 = vsel %vm1033, %v1001, %v1065
        %v1098 = vsel %vm1034, %v1002, %v1066
        %v1099 = vsel %vm1035, %v1003, %v1067
        %v1100 = vsel %vm1036, %v1004, %v1068
        %v1101 = vsel %vm1037, %v1005, %v1069
        %v1102 = vsel %vm1038, %v1006, %v1070
        %v1103 = vsel %vm1039, %v1007, %v1071
        %v1104 = vsel %vm1040, %v1008, %v1072
        %v1105 = vsel %vm1041, %v1009, %v1073
        %v1106 = vsel %vm1042, %v1010, %v1074
        %v1107 = vsel %vm1043, %v1011, %v1075
        %v1108 = vsel %vm1044, %v1012, %v1076
        %v1109 = vpack.c.bf16 %v1078, %v1077
        %v1110 = vpack.c.bf16 %v1080, %v1079
        %v1111 = vpack.c.bf16 %v1082, %v1081
        %v1112 = vpack.c.bf16 %v1084, %v1083
        %v1113 = vpack.c.bf16 %v1086, %v1085
        %v1114 = vpack.c.bf16 %v1088, %v1087
        %v1115 = vpack.c.bf16 %v1090, %v1089
        %v1116 = vpack.c.bf16 %v1092, %v1091
        %v1117 = vpack.c.bf16 %v1094, %v1093
        %v1118 = vpack.c.bf16 %v1096, %v1095
        %v1119 = vpack.c.bf16 %v1098, %v1097
        %v1120 = vpack.c.bf16 %v1100, %v1099
        %v1121 = vpack.c.bf16 %v1102, %v1101
        %v1122 = vpack.c.bf16 %v1104, %v1103
        %v1123 = vpack.c.bf16 %v1106, %v1105
        %v1124 = vpack.c.bf16 %v1108, %v1107
        %v1125 = vld [vmem:[%s8] sm:$0xf]
        %v1126 = vld [vmem:[%s8 + $0x4] sm:$0xf]
        %v1129 = vunpack.c.l.b16 %v1125
        %v1130 = vunpack.c.l.b16 %v1126
        %v1131 = vpack.c.b16 %v1130, %v1129
        %vm1133 = vcmask 130048
        %v1135 = vsel %vm1133, %v1109, 0
        %v1138 = vsel %vm1133, %v1110, 0
        %v1141 = vsel %vm1133, %v1111, 0
        %v1144 = vsel %vm1133, %v1112, 0
        %v1147 = vsel %vm1133, %v1113, 0
        %v1150 = vsel %vm1133, %v1114, 0
        %v1153 = vsel %vm1133, %v1115, 0
        %v1156 = vsel %vm1133, %v1116, 0
        %v1159 = vsel %vm1133, %v1117, 0
        %v1162 = vsel %vm1133, %v1118, 0
        %v1165 = vsel %vm1133, %v1119, 0
        %v1168 = vsel %vm1133, %v1120, 0
        %v1171 = vsel %vm1133, %v1121, 0
        %v1174 = vsel %vm1133, %v1122, 0
        %v1177 = vsel %vm1133, %v1123, 0
        %v1180 = vsel %vm1133, %v1124, 0
        %1182 = vmatprep.subr.bf16.mxu0 0
        %1183 = vmatpush1.bf16.msra.mxu0 0
        %1184 = vmatprep.subr.bf16.mxu0 0
        %1185 = vmatpush1.bf16.msra.mxu0 0
        %1186 = vmatprep.subr.bf16.mxu0 0
        %1187 = vmatpush1.bf16.msra.mxu0 0
        %1188 = vmatprep.subr.bf16.mxu0 0
        %1189 = vmatpush1.bf16.msra.mxu0 0
        %1190 = vmatprep.subr.bf16.mxu0 0
        %1191 = vmatpush1.bf16.msra.mxu0 0
        %1192 = vmatprep.subr.bf16.mxu0 0
        %1193 = vmatpush1.bf16.msra.mxu0 0
        %1194 = vmatprep.subr.bf16.mxu0 0
        %1195 = vmatpush1.bf16.msra.mxu0 0
        %1196 = vmatprep.subr.bf16.mxu0 0
        %1197 = vmatpush1.bf16.msra.mxu0 %v1131
        %1198 = vmatprep.subr.bf16.mxu0 0
        %1199 = vmatpush2.bf16.msra.mxu0 0
        %1200 = vmatprep.subr.bf16.mxu0 0
        %1201 = vmatpush2.bf16.msra.mxu0 0
        %1202 = vmatprep.subr.bf16.mxu0 0
        %1203 = vmatpush2.bf16.msra.mxu0 0
        %1204 = vmatprep.subr.bf16.mxu0 0
        %1205 = vmatpush2.bf16.msra.mxu0 0
        %1206 = vmatprep.subr.bf16.mxu0 0
        %1207 = vmatpush2.bf16.msra.mxu0 0
        %1208 = vmatprep.subr.bf16.mxu0 0
        %1209 = vmatpush2.bf16.msra.mxu0 0
        %1210 = vmatprep.subr.bf16.mxu0 0
        %1211 = vmatpush2.bf16.msra.mxu0 0
        %1212 = vmatprep.subr.bf16.mxu0 0
        %1213 = vmatpush2.bf16.msra.mxu0 0
        %1214 = vmatprep.mubr.bf16.mxu0 0
        %1215 = vmatmul.mubr.bf16.gmra.mxu0 %v1135
        %v1216 = vpop.f32.mrf.mxu0
        %v1217 = vadd.f32 0.0, %v1216
        %v1218 = vpop.f32.mrf.mxu0
        %v1219 = vpop.f32.mrf.mxu0
        %v1220 = vadd.f32 0.0, %v1219
        %v1221 = vpop.f32.mrf.mxu0
        %1222 = vmatprep.mubr.bf16.mxu0 0
        %1223 = vmatmul.mubr.bf16.gmra.mxu0 %v1138
        %v1224 = vpop.f32.mrf.mxu0
        %v1225 = vadd.f32 0.0, %v1224
        %v1226 = vpop.f32.mrf.mxu0
        %v1227 = vpop.f32.mrf.mxu0
        %v1228 = vadd.f32 0.0, %v1227
        %v1229 = vpop.f32.mrf.mxu0
        %1230 = vmatprep.mubr.bf16.mxu0 0
        %1231 = vmatmul.mubr.bf16.gmra.mxu0 %v1141
        %v1232 = vpop.f32.mrf.mxu0
        %v1233 = vadd.f32 0.0, %v1232
        %v1234 = vpop.f32.mrf.mxu0
        %v1235 = vpop.f32.mrf.mxu0
        %v1236 = vadd.f32 0.0, %v1235
        %v1237 = vpop.f32.mrf.mxu0
        %1238 = vmatprep.mubr.bf16.mxu0 0
        %1239 = vmatmul.mubr.bf16.gmra.mxu0 %v1144
        %v1240 = vpop.f32.mrf.mxu0
        %v1241 = vadd.f32 0.0, %v1240
        %v1242 = vpop.f32.mrf.mxu0
        %v1243 = vpop.f32.mrf.mxu0
        %v1244 = vadd.f32 0.0, %v1243
        %v1245 = vpop.f32.mrf.mxu0
        %1246 = vmatprep.mubr.bf16.mxu0 0
        %1247 = vmatmul.mubr.bf16.gmra.mxu0 %v1147
        %v1248 = vpop.f32.mrf.mxu0
        %v1249 = vadd.f32 0.0, %v1248
        %v1250 = vpop.f32.mrf.mxu0
        %v1251 = vpop.f32.mrf.mxu0
        %v1252 = vadd.f32 0.0, %v1251
        %v1253 = vpop.f32.mrf.mxu0
        %1254 = vmatprep.mubr.bf16.mxu0 0
        %1255 = vmatmul.mubr.bf16.gmra.mxu0 %v1150
        %v1256 = vpop.f32.mrf.mxu0
        %v1257 = vadd.f32 0.0, %v1256
        %v1258 = vpop.f32.mrf.mxu0
        %v1259 = vpop.f32.mrf.mxu0
        %v1260 = vadd.f32 0.0, %v1259
        %v1261 = vpop.f32.mrf.mxu0
        %1262 = vmatprep.mubr.bf16.mxu0 0
        %1263 = vmatmul.mubr.bf16.gmra.mxu0 %v1153
        %v1264 = vpop.f32.mrf.mxu0
        %v1265 = vadd.f32 0.0, %v1264
        %v1266 = vpop.f32.mrf.mxu0
        %v1267 = vpop.f32.mrf.mxu0
        %v1268 = vadd.f32 0.0, %v1267
        %v1269 = vpop.f32.mrf.mxu0
        %1270 = vmatprep.mubr.bf16.mxu0 0
        %1271 = vmatmul.mubr.bf16.gmra.mxu0 %v1156
        %v1272 = vpop.f32.mrf.mxu0
        %v1273 = vadd.f32 0.0, %v1272
        %v1274 = vpop.f32.mrf.mxu0
        %v1275 = vpop.f32.mrf.mxu0
        %v1276 = vadd.f32 0.0, %v1275
        %v1277 = vpop.f32.mrf.mxu0
        %1278 = vmatprep.mubr.bf16.mxu0 0
        %1279 = vmatmul.mubr.bf16.gmra.mxu0 %v1159
        %v1280 = vpop.f32.mrf.mxu0
        %v1281 = vadd.f32 0.0, %v1280
        %v1282 = vpop.f32.mrf.mxu0
        %v1283 = vpop.f32.mrf.mxu0
        %v1284 = vadd.f32 0.0, %v1283
        %v1285 = vpop.f32.mrf.mxu0
        %1286 = vmatprep.mubr.bf16.mxu0 0
        %1287 = vmatmul.mubr.bf16.gmra.mxu0 %v1162
        %v1288 = vpop.f32.mrf.mxu0
        %v1289 = vadd.f32 0.0, %v1288
        %v1290 = vpop.f32.mrf.mxu0
        %v1291 = vpop.f32.mrf.mxu0
        %v1292 = vadd.f32 0.0, %v1291
        %v1293 = vpop.f32.mrf.mxu0
        %1294 = vmatprep.mubr.bf16.mxu0 0
        %1295 = vmatmul.mubr.bf16.gmra.mxu0 %v1165
        %v1296 = vpop.f32.mrf.mxu0
        %v1297 = vadd.f32 0.0, %v1296
        %v1298 = vpop.f32.mrf.mxu0
        %v1299 = vpop.f32.mrf.mxu0
        %v1300 = vadd.f32 0.0, %v1299
        %v1301 = vpop.f32.mrf.mxu0
        %1302 = vmatprep.mubr.bf16.mxu0 0
        %1303 = vmatmul.mubr.bf16.gmra.mxu0 %v1168
        %v1304 = vpop.f32.mrf.mxu0
        %v1305 = vadd.f32 0.0, %v1304
        %v1306 = vpop.f32.mrf.mxu0
        %v1307 = vpop.f32.mrf.mxu0
        %v1308 = vadd.f32 0.0, %v1307
        %v1309 = vpop.f32.mrf.mxu0
        %1310 = vmatprep.mubr.bf16.mxu0 0
        %1311 = vmatmul.mubr.bf16.gmra.mxu0 %v1171
        %v1312 = vpop.f32.mrf.mxu0
        %v1313 = vadd.f32 0.0, %v1312
        %v1314 = vpop.f32.mrf.mxu0
        %v1315 = vpop.f32.mrf.mxu0
        %v1316 = vadd.f32 0.0, %v1315
        %v1317 = vpop.f32.mrf.mxu0
        %1318 = vmatprep.mubr.bf16.mxu0 0
        %1319 = vmatmul.mubr.bf16.gmra.mxu0 %v1174
        %v1320 = vpop.f32.mrf.mxu0
        %v1321 = vadd.f32 0.0, %v1320
        %v1322 = vpop.f32.mrf.mxu0
        %v1323 = vpop.f32.mrf.mxu0
        %v1324 = vadd.f32 0.0, %v1323
        %v1325 = vpop.f32.mrf.mxu0
        %1326 = vmatprep.mubr.bf16.mxu0 0
        %1327 = vmatmul.mubr.bf16.gmra.mxu0 %v1177
        %v1328 = vpop.f32.mrf.mxu0
        %v1329 = vadd.f32 0.0, %v1328
        %v1330 = vpop.f32.mrf.mxu0
        %v1331 = vpop.f32.mrf.mxu0
        %v1332 = vadd.f32 0.0, %v1331
        %v1333 = vpop.f32.mrf.mxu0
        %1334 = vmatprep.mubr.bf16.mxu0 0
        %1335 = vmatmul.mubr.bf16.gmra.mxu0 %v1180
        %v1336 = vpop.f32.mrf.mxu0
        %v1337 = vadd.f32 0.0, %v1336
        %v1338 = vpop.f32.mrf.mxu0
        %v1339 = vpop.f32.mrf.mxu0
        %v1340 = vadd.f32 0.0, %v1339
        %v1341 = vpop.f32.mrf.mxu0
        %1342 = vdwg.mxu0
        %v1343 = vld [vmem:[%s9] sm:$0x1]
        %v1345 = vlaneseq
        %v1346 = vshrl.u32 %v1345, 7
        %v1347 = vsub.s32 0, %v1346
        %v1348 = vrot.slane %v1343, %v1347
        %v1350 = vmul.f32 %v1217, %v1348
        %v1351 = vmul.f32 %v1220, %v1348
        %v1352 = vmul.f32 %v1225, %v1348
        %v1353 = vmul.f32 %v1228, %v1348
        %v1354 = vmul.f32 %v1233, %v1348
        %v1355 = vmul.f32 %v1236, %v1348
        %v1356 = vmul.f32 %v1241, %v1348
        %v1357 = vmul.f32 %v1244, %v1348
        %v1358 = vmul.f32 %v1249, %v1348
        %v1359 = vmul.f32 %v1252, %v1348
        %v1360 = vmul.f32 %v1257, %v1348
        %v1361 = vmul.f32 %v1260, %v1348
        %v1362 = vmul.f32 %v1265, %v1348
        %v1363 = vmul.f32 %v1268, %v1348
        %v1364 = vmul.f32 %v1273, %v1348
        %v1365 = vmul.f32 %v1276, %v1348
        %v1366 = vmul.f32 %v1281, %v1348
        %v1367 = vmul.f32 %v1284, %v1348
        %v1368 = vmul.f32 %v1289, %v1348
        %v1369 = vmul.f32 %v1292, %v1348
        %v1370 = vmul.f32 %v1297, %v1348
        %v1371 = vmul.f32 %v1300, %v1348
        %v1372 = vmul.f32 %v1305, %v1348
        %v1373 = vmul.f32 %v1308, %v1348
        %v1374 = vmul.f32 %v1313, %v1348
        %v1375 = vmul.f32 %v1316, %v1348
        %v1376 = vmul.f32 %v1321, %v1348
        %v1377 = vmul.f32 %v1324, %v1348
        %v1378 = vmul.f32 %v1329, %v1348
        %v1379 = vmul.f32 %v1332, %v1348
        %v1380 = vmul.f32 %v1337, %v1348
        %v1381 = vmul.f32 %v1340, %v1348
        %v1382 = vld [vmem:[%s10] sm:$0x1]
        %v1384 = vlaneseq
        %v1385 = vshrl.u32 %v1384, 7
        %v1386 = vsub.s32 0, %v1385
        %v1387 = vrot.slane %v1382, %v1386
        %v1389 = vadd.f32 %v1350, %v1387
        %v1390 = vadd.f32 %v1351, %v1387
        %v1391 = vadd.f32 %v1352, %v1387
        %v1392 = vadd.f32 %v1353, %v1387
        %v1393 = vadd.f32 %v1354, %v1387
        %v1394 = vadd.f32 %v1355, %v1387
        %v1395 = vadd.f32 %v1356, %v1387
        %v1396 = vadd.f32 %v1357, %v1387
        %v1397 = vadd.f32 %v1358, %v1387
        %v1398 = vadd.f32 %v1359, %v1387
        %v1399 = vadd.f32 %v1360, %v1387
        %v1400 = vadd.f32 %v1361, %v1387
        %v1401 = vadd.f32 %v1362, %v1387
        %v1402 = vadd.f32 %v1363, %v1387
        %v1403 = vadd.f32 %v1364, %v1387
        %v1404 = vadd.f32 %v1365, %v1387
        %v1405 = vadd.f32 %v1366, %v1387
        %v1406 = vadd.f32 %v1367, %v1387
        %v1407 = vadd.f32 %v1368, %v1387
        %v1408 = vadd.f32 %v1369, %v1387
        %v1409 = vadd.f32 %v1370, %v1387
        %v1410 = vadd.f32 %v1371, %v1387
        %v1411 = vadd.f32 %v1372, %v1387
        %v1412 = vadd.f32 %v1373, %v1387
        %v1413 = vadd.f32 %v1374, %v1387
        %v1414 = vadd.f32 %v1375, %v1387
        %v1415 = vadd.f32 %v1376, %v1387
        %v1416 = vadd.f32 %v1377, %v1387
        %v1417 = vadd.f32 %v1378, %v1387
        %v1418 = vadd.f32 %v1379, %v1387
        %v1419 = vadd.f32 %v1380, %v1387
        %v1420 = vadd.f32 %v1381, %v1387
        %vm1421 = vcmp.ge.f32.partialorder %v1389, 0.0
        %vm1422 = vcmp.ge.f32.partialorder %v1390, 0.0
        %vm1423 = vcmp.ge.f32.partialorder %v1391, 0.0
        %vm1424 = vcmp.ge.f32.partialorder %v1392, 0.0
        %vm1425 = vcmp.ge.f32.partialorder %v1393, 0.0
        %vm1426 = vcmp.ge.f32.partialorder %v1394, 0.0
        %vm1427 = vcmp.ge.f32.partialorder %v1395, 0.0
        %vm1428 = vcmp.ge.f32.partialorder %v1396, 0.0
        %vm1429 = vcmp.ge.f32.partialorder %v1397, 0.0
        %vm1430 = vcmp.ge.f32.partialorder %v1398, 0.0
        %vm1431 = vcmp.ge.f32.partialorder %v1399, 0.0
        %vm1432 = vcmp.ge.f32.partialorder %v1400, 0.0
        %vm1433 = vcmp.ge.f32.partialorder %v1401, 0.0
        %vm1434 = vcmp.ge.f32.partialorder %v1402, 0.0
        %vm1435 = vcmp.ge.f32.partialorder %v1403, 0.0
        %vm1436 = vcmp.ge.f32.partialorder %v1404, 0.0
        %vm1437 = vcmp.ge.f32.partialorder %v1405, 0.0
        %vm1438 = vcmp.ge.f32.partialorder %v1406, 0.0
        %vm1439 = vcmp.ge.f32.partialorder %v1407, 0.0
        %vm1440 = vcmp.ge.f32.partialorder %v1408, 0.0
        %vm1441 = vcmp.ge.f32.partialorder %v1409, 0.0
        %vm1442 = vcmp.ge.f32.partialorder %v1410, 0.0
        %vm1443 = vcmp.ge.f32.partialorder %v1411, 0.0
        %vm1444 = vcmp.ge.f32.partialorder %v1412, 0.0
        %vm1445 = vcmp.ge.f32.partialorder %v1413, 0.0
        %vm1446 = vcmp.ge.f32.partialorder %v1414, 0.0
        %vm1447 = vcmp.ge.f32.partialorder %v1415, 0.0
        %vm1448 = vcmp.ge.f32.partialorder %v1416, 0.0
        %vm1449 = vcmp.ge.f32.partialorder %v1417, 0.0
        %vm1450 = vcmp.ge.f32.partialorder %v1418, 0.0
        %vm1451 = vcmp.ge.f32.partialorder %v1419, 0.0
        %vm1452 = vcmp.ge.f32.partialorder %v1420, 0.0
        %v1453 = vmul.f32 %v1389, 0.1
        %v1454 = vmul.f32 %v1390, 0.1
        %v1455 = vmul.f32 %v1391, 0.1
        %v1456 = vmul.f32 %v1392, 0.1
        %v1457 = vmul.f32 %v1393, 0.1
        %v1458 = vmul.f32 %v1394, 0.1
        %v1459 = vmul.f32 %v1395, 0.1
        %v1460 = vmul.f32 %v1396, 0.1
        %v1461 = vmul.f32 %v1397, 0.1
        %v1462 = vmul.f32 %v1398, 0.1
        %v1463 = vmul.f32 %v1399, 0.1
        %v1464 = vmul.f32 %v1400, 0.1
        %v1465 = vmul.f32 %v1401, 0.1
        %v1466 = vmul.f32 %v1402, 0.1
        %v1467 = vmul.f32 %v1403, 0.1
        %v1468 = vmul.f32 %v1404, 0.1
        %v1469 = vmul.f32 %v1405, 0.1
        %v1470 = vmul.f32 %v1406, 0.1
        %v1471 = vmul.f32 %v1407, 0.1
        %v1472 = vmul.f32 %v1408, 0.1
        %v1473 = vmul.f32 %v1409, 0.1
        %v1474 = vmul.f32 %v1410, 0.1
        %v1475 = vmul.f32 %v1411, 0.1
        %v1476 = vmul.f32 %v1412, 0.1
        %v1477 = vmul.f32 %v1413, 0.1
        %v1478 = vmul.f32 %v1414, 0.1
        %v1479 = vmul.f32 %v1415, 0.1
        %v1480 = vmul.f32 %v1416, 0.1
        %v1481 = vmul.f32 %v1417, 0.1
        %v1482 = vmul.f32 %v1418, 0.1
        %v1483 = vmul.f32 %v1419, 0.1
        %v1484 = vmul.f32 %v1420, 0.1
        %v1485 = vsel %vm1421, %v1389, %v1453
        %v1486 = vsel %vm1422, %v1390, %v1454
        %v1487 = vsel %vm1423, %v1391, %v1455
        %v1488 = vsel %vm1424, %v1392, %v1456
        %v1489 = vsel %vm1425, %v1393, %v1457
        %v1490 = vsel %vm1426, %v1394, %v1458
        %v1491 = vsel %vm1427, %v1395, %v1459
        %v1492 = vsel %vm1428, %v1396, %v1460
        %v1493 = vsel %vm1429, %v1397, %v1461
        %v1494 = vsel %vm1430, %v1398, %v1462
        %v1495 = vsel %vm1431, %v1399, %v1463
        %v1496 = vsel %vm1432, %v1400, %v1464
        %v1497 = vsel %vm1433, %v1401, %v1465
        %v1498 = vsel %vm1434, %v1402, %v1466
        %v1499 = vsel %vm1435, %v1403, %v1467
        %v1500 = vsel %vm1436, %v1404, %v1468
        %v1501 = vsel %vm1437, %v1405, %v1469
        %v1502 = vsel %vm1438, %v1406, %v1470
        %v1503 = vsel %vm1439, %v1407, %v1471
        %v1504 = vsel %vm1440, %v1408, %v1472
        %v1505 = vsel %vm1441, %v1409, %v1473
        %v1506 = vsel %vm1442, %v1410, %v1474
        %v1507 = vsel %vm1443, %v1411, %v1475
        %v1508 = vsel %vm1444, %v1412, %v1476
        %v1509 = vsel %vm1445, %v1413, %v1477
        %v1510 = vsel %vm1446, %v1414, %v1478
        %v1511 = vsel %vm1447, %v1415, %v1479
        %v1512 = vsel %vm1448, %v1416, %v1480
        %v1513 = vsel %vm1449, %v1417, %v1481
        %v1514 = vsel %vm1450, %v1418, %v1482
        %v1515 = vsel %vm1451, %v1419, %v1483
        %v1516 = vsel %vm1452, %v1420, %v1484
        %v1517 = vpack.c.bf16 %v1486, %v1485
        %v1518 = vpack.c.bf16 %v1488, %v1487
        %v1519 = vpack.c.bf16 %v1490, %v1489
        %v1520 = vpack.c.bf16 %v1492, %v1491
        %v1521 = vpack.c.bf16 %v1494, %v1493
        %v1522 = vpack.c.bf16 %v1496, %v1495
        %v1523 = vpack.c.bf16 %v1498, %v1497
        %v1524 = vpack.c.bf16 %v1500, %v1499
        %v1525 = vpack.c.bf16 %v1502, %v1501
        %v1526 = vpack.c.bf16 %v1504, %v1503
        %v1527 = vpack.c.bf16 %v1506, %v1505
        %v1528 = vpack.c.bf16 %v1508, %v1507
        %v1529 = vpack.c.bf16 %v1510, %v1509
        %v1530 = vpack.c.bf16 %v1512, %v1511
        %v1531 = vpack.c.bf16 %v1514, %v1513
        %v1532 = vpack.c.bf16 %v1516, %v1515
        %v1533 = vld [vmem:[%s11] sm:$0xf]
        %vm1534 = vcmask 64512
        %v1536 = vsel %vm1534, %v1517, 0
        %v1539 = vsel %vm1534, %v1518, 0
        %v1542 = vsel %vm1534, %v1519, 0
        %v1545 = vsel %vm1534, %v1520, 0
        %v1548 = vsel %vm1534, %v1521, 0
        %v1551 = vsel %vm1534, %v1522, 0
        %v1554 = vsel %vm1534, %v1523, 0
        %v1557 = vsel %vm1534, %v1524, 0
        %v1560 = vsel %vm1534, %v1525, 0
        %v1563 = vsel %vm1534, %v1526, 0
        %v1566 = vsel %vm1534, %v1527, 0
        %v1569 = vsel %vm1534, %v1528, 0
        %v1572 = vsel %vm1534, %v1529, 0
        %v1575 = vsel %vm1534, %v1530, 0
        %v1578 = vsel %vm1534, %v1531, 0
        %v1581 = vsel %vm1534, %v1532, 0
        %vm1583 = vcmask 1043456
        %v1585 = vsel %vm1583, %v1533, 0
        %1587 = vmatprep.subr.bf16.mxu0 0
        %1588 = vmatpush1.bf16.msra.mxu0 0
        %1589 = vmatprep.subr.bf16.mxu0 0
        %1590 = vmatpush1.bf16.msra.mxu0 0
        %1591 = vmatprep.subr.bf16.mxu0 0
        %1592 = vmatpush1.bf16.msra.mxu0 0
        %1593 = vmatprep.subr.bf16.mxu0 0
        %1594 = vmatpush1.bf16.msra.mxu0 0
        %1595 = vmatprep.subr.bf16.mxu0 0
        %1596 = vmatpush1.bf16.msra.mxu0 0
        %1597 = vmatprep.subr.bf16.mxu0 0
        %1598 = vmatpush1.bf16.msra.mxu0 0
        %1599 = vmatprep.subr.bf16.mxu0 0
        %1600 = vmatpush1.bf16.msra.mxu0 0
        %1601 = vmatprep.subr.bf16.mxu0 0
        %1602 = vmatpush1.bf16.msra.mxu0 %v1585
        %1603 = vmatprep.subr.bf16.mxu0 0
        %1604 = vmatpush2.bf16.msra.mxu0 0
        %1605 = vmatprep.subr.bf16.mxu0 0
        %1606 = vmatpush2.bf16.msra.mxu0 0
        %1607 = vmatprep.subr.bf16.mxu0 0
        %1608 = vmatpush2.bf16.msra.mxu0 0
        %1609 = vmatprep.subr.bf16.mxu0 0
        %1610 = vmatpush2.bf16.msra.mxu0 0
        %1611 = vmatprep.subr.bf16.mxu0 0
        %1612 = vmatpush2.bf16.msra.mxu0 0
        %1613 = vmatprep.subr.bf16.mxu0 0
        %1614 = vmatpush2.bf16.msra.mxu0 0
        %1615 = vmatprep.subr.bf16.mxu0 0
        %1616 = vmatpush2.bf16.msra.mxu0 0
        %1617 = vmatprep.subr.bf16.mxu0 0
        %1618 = vmatpush2.bf16.msra.mxu0 0
        %1619 = vmatprep.mubr.bf16.mxu0 0
        %1620 = vmatmul.mubr.bf16.gmra.mxu0 %v1536
        %v1621 = vpop.f32.mrf.mxu0
        %v1622 = vadd.f32 0.0, %v1621
        %v1623 = vpop.f32.mrf.mxu0
        %v1624 = vpop.f32.mrf.mxu0
        %v1625 = vadd.f32 0.0, %v1624
        %v1626 = vpop.f32.mrf.mxu0
        %1627 = vmatprep.mubr.bf16.mxu0 0
        %1628 = vmatmul.mubr.bf16.gmra.mxu0 %v1539
        %v1629 = vpop.f32.mrf.mxu0
        %v1630 = vadd.f32 0.0, %v1629
        %v1631 = vpop.f32.mrf.mxu0
        %v1632 = vpop.f32.mrf.mxu0
        %v1633 = vadd.f32 0.0, %v1632
        %v1634 = vpop.f32.mrf.mxu0
        %1635 = vmatprep.mubr.bf16.mxu0 0
        %1636 = vmatmul.mubr.bf16.gmra.mxu0 %v1542
        %v1637 = vpop.f32.mrf.mxu0
        %v1638 = vadd.f32 0.0, %v1637
        %v1639 = vpop.f32.mrf.mxu0
        %v1640 = vpop.f32.mrf.mxu0
        %v1641 = vadd.f32 0.0, %v1640
        %v1642 = vpop.f32.mrf.mxu0
        %1643 = vmatprep.mubr.bf16.mxu0 0
        %1644 = vmatmul.mubr.bf16.gmra.mxu0 %v1545
        %v1645 = vpop.f32.mrf.mxu0
        %v1646 = vadd.f32 0.0, %v1645
        %v1647 = vpop.f32.mrf.mxu0
        %v1648 = vpop.f32.mrf.mxu0
        %v1649 = vadd.f32 0.0, %v1648
        %v1650 = vpop.f32.mrf.mxu0
        %1651 = vmatprep.mubr.bf16.mxu0 0
        %1652 = vmatmul.mubr.bf16.gmra.mxu0 %v1548
        %v1653 = vpop.f32.mrf.mxu0
        %v1654 = vadd.f32 0.0, %v1653
        %v1655 = vpop.f32.mrf.mxu0
        %v1656 = vpop.f32.mrf.mxu0
        %v1657 = vadd.f32 0.0, %v1656
        %v1658 = vpop.f32.mrf.mxu0
        %1659 = vmatprep.mubr.bf16.mxu0 0
        %1660 = vmatmul.mubr.bf16.gmra.mxu0 %v1551
        %v1661 = vpop.f32.mrf.mxu0
        %v1662 = vadd.f32 0.0, %v1661
        %v1663 = vpop.f32.mrf.mxu0
        %v1664 = vpop.f32.mrf.mxu0
        %v1665 = vadd.f32 0.0, %v1664
        %v1666 = vpop.f32.mrf.mxu0
        %1667 = vmatprep.mubr.bf16.mxu0 0
        %1668 = vmatmul.mubr.bf16.gmra.mxu0 %v1554
        %v1669 = vpop.f32.mrf.mxu0
        %v1670 = vadd.f32 0.0, %v1669
        %v1671 = vpop.f32.mrf.mxu0
        %v1672 = vpop.f32.mrf.mxu0
        %v1673 = vadd.f32 0.0, %v1672
        %v1674 = vpop.f32.mrf.mxu0
        %1675 = vmatprep.mubr.bf16.mxu0 0
        %1676 = vmatmul.mubr.bf16.gmra.mxu0 %v1557
        %v1677 = vpop.f32.mrf.mxu0
        %v1678 = vadd.f32 0.0, %v1677
        %v1679 = vpop.f32.mrf.mxu0
        %v1680 = vpop.f32.mrf.mxu0
        %v1681 = vadd.f32 0.0, %v1680
        %v1682 = vpop.f32.mrf.mxu0
        %1683 = vmatprep.mubr.bf16.mxu0 0
        %1684 = vmatmul.mubr.bf16.gmra.mxu0 %v1560
        %v1685 = vpop.f32.mrf.mxu0
        %v1686 = vadd.f32 0.0, %v1685
        %v1687 = vpop.f32.mrf.mxu0
        %v1688 = vpop.f32.mrf.mxu0
        %v1689 = vadd.f32 0.0, %v1688
        %v1690 = vpop.f32.mrf.mxu0
        %1691 = vmatprep.mubr.bf16.mxu0 0
        %1692 = vmatmul.mubr.bf16.gmra.mxu0 %v1563
        %v1693 = vpop.f32.mrf.mxu0
        %v1694 = vadd.f32 0.0, %v1693
        %v1695 = vpop.f32.mrf.mxu0
        %v1696 = vpop.f32.mrf.mxu0
        %v1697 = vadd.f32 0.0, %v1696
        %v1698 = vpop.f32.mrf.mxu0
        %1699 = vmatprep.mubr.bf16.mxu0 0
        %1700 = vmatmul.mubr.bf16.gmra.mxu0 %v1566
        %v1701 = vpop.f32.mrf.mxu0
        %v1702 = vadd.f32 0.0, %v1701
        %v1703 = vpop.f32.mrf.mxu0
        %v1704 = vpop.f32.mrf.mxu0
        %v1705 = vadd.f32 0.0, %v1704
        %v1706 = vpop.f32.mrf.mxu0
        %1707 = vmatprep.mubr.bf16.mxu0 0
        %1708 = vmatmul.mubr.bf16.gmra.mxu0 %v1569
        %v1709 = vpop.f32.mrf.mxu0
        %v1710 = vadd.f32 0.0, %v1709
        %v1711 = vpop.f32.mrf.mxu0
        %v1712 = vpop.f32.mrf.mxu0
        %v1713 = vadd.f32 0.0, %v1712
        %v1714 = vpop.f32.mrf.mxu0
        %1715 = vmatprep.mubr.bf16.mxu0 0
        %1716 = vmatmul.mubr.bf16.gmra.mxu0 %v1572
        %v1717 = vpop.f32.mrf.mxu0
        %v1718 = vadd.f32 0.0, %v1717
        %v1719 = vpop.f32.mrf.mxu0
        %v1720 = vpop.f32.mrf.mxu0
        %v1721 = vadd.f32 0.0, %v1720
        %v1722 = vpop.f32.mrf.mxu0
        %1723 = vmatprep.mubr.bf16.mxu0 0
        %1724 = vmatmul.mubr.bf16.gmra.mxu0 %v1575
        %v1725 = vpop.f32.mrf.mxu0
        %v1726 = vadd.f32 0.0, %v1725
        %v1727 = vpop.f32.mrf.mxu0
        %v1728 = vpop.f32.mrf.mxu0
        %v1729 = vadd.f32 0.0, %v1728
        %v1730 = vpop.f32.mrf.mxu0
        %1731 = vmatprep.mubr.bf16.mxu0 0
        %1732 = vmatmul.mubr.bf16.gmra.mxu0 %v1578
        %v1733 = vpop.f32.mrf.mxu0
        %v1734 = vadd.f32 0.0, %v1733
        %v1735 = vpop.f32.mrf.mxu0
        %v1736 = vpop.f32.mrf.mxu0
        %v1737 = vadd.f32 0.0, %v1736
        %v1738 = vpop.f32.mrf.mxu0
        %1739 = vmatprep.mubr.bf16.mxu0 0
        %1740 = vmatmul.mubr.bf16.gmra.mxu0 %v1581
        %v1741 = vpop.f32.mrf.mxu0
        %v1742 = vadd.f32 0.0, %v1741
        %v1743 = vpop.f32.mrf.mxu0
        %v1744 = vpop.f32.mrf.mxu0
        %v1745 = vadd.f32 0.0, %v1744
        %v1746 = vpop.f32.mrf.mxu0
        %1747 = vdwg.mxu0
        %v1748 = vpack.c.bf16 %v1625, %v1622
        %v1749 = vpack.c.bf16 %v1633, %v1630
        %v1750 = vpack.c.bf16 %v1641, %v1638
        %v1751 = vpack.c.bf16 %v1649, %v1646
        %v1752 = vpack.c.bf16 %v1657, %v1654
        %v1753 = vpack.c.bf16 %v1665, %v1662
        %v1754 = vpack.c.bf16 %v1673, %v1670
        %v1755 = vpack.c.bf16 %v1681, %v1678
        %v1756 = vpack.c.bf16 %v1689, %v1686
        %v1757 = vpack.c.bf16 %v1697, %v1694
        %v1758 = vpack.c.bf16 %v1705, %v1702
        %v1759 = vpack.c.bf16 %v1713, %v1710
        %v1760 = vpack.c.bf16 %v1721, %v1718
        %v1761 = vpack.c.bf16 %v1729, %v1726
        %v1762 = vpack.c.bf16 %v1737, %v1734
        %v1763 = vpack.c.bf16 %v1745, %v1742
        %v1764 = vld [vmem:[%s775] sm:$0xff]
        %v1765 = vld [vmem:[%s775 + $0x8] sm:$0xff]
        %v1766 = vld [vmem:[%s775 + $0x10] sm:$0xff]
        %v1767 = vld [vmem:[%s775 + $0x18] sm:$0xff]
        %v1768 = vld [vmem:[%s775 + $0x20] sm:$0xff]
        %v1769 = vld [vmem:[%s775 + $0x28] sm:$0xff]
        %v1770 = vld [vmem:[%s775 + $0x30] sm:$0xff]
        %v1771 = vld [vmem:[%s775 + $0x38] sm:$0xff]
        %v1772 = vld [vmem:[%s775 + $0x40] sm:$0xff]
        %v1773 = vld [vmem:[%s775 + $0x48] sm:$0xff]
        %v1774 = vld [vmem:[%s775 + $0x50] sm:$0xff]
        %v1775 = vld [vmem:[%s775 + $0x58] sm:$0xff]
        %v1776 = vld [vmem:[%s775 + $0x60] sm:$0xff]
        %v1777 = vld [vmem:[%s775 + $0x68] sm:$0xff]
        %v1778 = vld [vmem:[%s775 + $0x70] sm:$0xff]
        %v1779 = vld [vmem:[%s775 + $0x78] sm:$0xff]
        %v1780 = vld [vmem:[%s775 + $0x80] sm:$0xff]
        %v1781 = vld [vmem:[%s775 + $0x88] sm:$0xff]
        %v1782 = vld [vmem:[%s775 + $0x90] sm:$0xff]
        %v1783 = vld [vmem:[%s775 + $0x98] sm:$0xff]
        %v1784 = vld [vmem:[%s775 + $0xa0] sm:$0xff]
        %v1785 = vld [vmem:[%s775 + $0xa8] sm:$0xff]
        %v1786 = vld [vmem:[%s775 + $0xb0] sm:$0xff]
        %v1787 = vld [vmem:[%s775 + $0xb8] sm:$0xff]
        %v1788 = vld [vmem:[%s775 + $0xc0] sm:$0xff]
        %v1789 = vld [vmem:[%s775 + $0xc8] sm:$0xff]
        %v1790 = vld [vmem:[%s775 + $0xd0] sm:$0xff]
        %v1791 = vld [vmem:[%s775 + $0xd8] sm:$0xff]
        %v1792 = vld [vmem:[%s775 + $0xe0] sm:$0xff]
        %v1793 = vld [vmem:[%s775 + $0xe8] sm:$0xff]
        %v1794 = vld [vmem:[%s775 + $0xf0] sm:$0xff]
        %v1795 = vld [vmem:[%s775 + $0xf8] sm:$0xff]
        %v1796 = vld [vmem:[%s787] sm:$0xff]
        %v1797 = vld [vmem:[%s787 + $0x8] sm:$0xff]
        %v1799 = vsel %vm1534, %v1764, 0
        %v1802 = vsel %vm1534, %v1765, 0
        %v1805 = vsel %vm1534, %v1766, 0
        %v1808 = vsel %vm1534, %v1767, 0
        %v1811 = vsel %vm1534, %v1768, 0
        %v1814 = vsel %vm1534, %v1769, 0
        %v1817 = vsel %vm1534, %v1770, 0
        %v1820 = vsel %vm1534, %v1771, 0
        %v1823 = vsel %vm1534, %v1772, 0
        %v1826 = vsel %vm1534, %v1773, 0
        %v1829 = vsel %vm1534, %v1774, 0
        %v1832 = vsel %vm1534, %v1775, 0
        %v1835 = vsel %vm1534, %v1776, 0
        %v1838 = vsel %vm1534, %v1777, 0
        %v1841 = vsel %vm1534, %v1778, 0
        %v1844 = vsel %vm1534, %v1779, 0
        %v1847 = vsel %vm1534, %v1780, 0
        %v1850 = vsel %vm1534, %v1781, 0
        %v1853 = vsel %vm1534, %v1782, 0
        %v1856 = vsel %vm1534, %v1783, 0
        %v1859 = vsel %vm1534, %v1784, 0
        %v1862 = vsel %vm1534, %v1785, 0
        %v1865 = vsel %vm1534, %v1786, 0
        %v1868 = vsel %vm1534, %v1787, 0
        %v1871 = vsel %vm1534, %v1788, 0
        %v1874 = vsel %vm1534, %v1789, 0
        %v1877 = vsel %vm1534, %v1790, 0
        %v1880 = vsel %vm1534, %v1791, 0
        %v1883 = vsel %vm1534, %v1792, 0
        %v1886 = vsel %vm1534, %v1793, 0
        %v1889 = vsel %vm1534, %v1794, 0
        %v1892 = vsel %vm1534, %v1795, 0
        %1894 = vmatprep.subr.mxu0 0.0
        %1895 = vmatpush1.msra.mxu0 0.0
        %1896 = vmatprep.subr.mxu0 0.0
        %1897 = vmatpush1.msra.mxu0 0.0
        %1898 = vmatprep.subr.mxu0 0.0
        %1899 = vmatpush1.msra.mxu0 0.0
        %1900 = vmatprep.subr.mxu0 0.0
        %1901 = vmatpush1.msra.mxu0 0.0
        %1902 = vmatprep.subr.mxu0 0.0
        %1903 = vmatpush1.msra.mxu0 0.0
        %1904 = vmatprep.subr.mxu0 0.0
        %1905 = vmatpush1.msra.mxu0 0.0
        %1906 = vmatprep.subr.mxu0 0.0
        %1907 = vmatpush1.msra.mxu0 0.0
        %1908 = vmatprep.subr.mxu0 0.0
        %1909 = vmatpush1.msra.mxu0 0.0
        %1910 = vmatprep.subr.mxu0 0.0
        %1911 = vmatpush1.msra.mxu0 0.0
        %1912 = vmatprep.subr.mxu0 0.0
        %1913 = vmatpush1.msra.mxu0 0.0
        %1914 = vmatprep.subr.mxu0 0.0
        %1915 = vmatpush1.msra.mxu0 0.0
        %1916 = vmatprep.subr.mxu0 0.0
        %1917 = vmatpush1.msra.mxu0 0.0
        %1918 = vmatprep.subr.mxu0 0.0
        %1919 = vmatpush1.msra.mxu0 0.0
        %1920 = vmatprep.subr.mxu0 0.0
        %1921 = vmatpush1.msra.mxu0 0.0
        %1922 = vmatprep.subr.mxu0 0.0
        %1923 = vmatpush1.msra.mxu0 0.0
        %1924 = vmatprep.subr.mxu0 %v1797
        %1925 = vmatpush1.msra.mxu0 %v1796
        %1926 = vmatprep.subr.mxu0 0.0
        %1927 = vmatpush2.msra.mxu0 0.0
        %1928 = vmatprep.subr.mxu0 0.0
        %1929 = vmatpush2.msra.mxu0 0.0
        %1930 = vmatprep.subr.mxu0 0.0
        %1931 = vmatpush2.msra.mxu0 0.0
        %1932 = vmatprep.subr.mxu0 0.0
        %1933 = vmatpush2.msra.mxu0 0.0
        %1934 = vmatprep.subr.mxu0 0.0
        %1935 = vmatpush2.msra.mxu0 0.0
        %1936 = vmatprep.subr.mxu0 0.0
        %1937 = vmatpush2.msra.mxu0 0.0
        %1938 = vmatprep.subr.mxu0 0.0
        %1939 = vmatpush2.msra.mxu0 0.0
        %1940 = vmatprep.subr.mxu0 0.0
        %1941 = vmatpush2.msra.mxu0 0.0
        %1942 = vmatprep.subr.mxu0 0.0
        %1943 = vmatpush2.msra.mxu0 0.0
        %1944 = vmatprep.subr.mxu0 0.0
        %1945 = vmatpush2.msra.mxu0 0.0
        %1946 = vmatprep.subr.mxu0 0.0
        %1947 = vmatpush2.msra.mxu0 0.0
        %1948 = vmatprep.subr.mxu0 0.0
        %1949 = vmatpush2.msra.mxu0 0.0
        %1950 = vmatprep.subr.mxu0 0.0
        %1951 = vmatpush2.msra.mxu0 0.0
        %1952 = vmatprep.subr.mxu0 0.0
        %1953 = vmatpush2.msra.mxu0 0.0
        %1954 = vmatprep.subr.mxu0 0.0
        %1955 = vmatpush2.msra.mxu0 0.0
        %1956 = vmatprep.subr.mxu0 0.0
        %1957 = vmatpush2.msra.mxu0 0.0
        %1958 = vmatprep.mubr.f32.mxu0 0.0
        %1959 = vmatmul.mubr.f32.gmra.mxu0 %v1799
        %v1960 = vpop.f32.mrf.mxu0
        %v1961 = vadd.f32 0.0, %v1960
        %v1962 = vpop.f32.mrf.mxu0
        %v1963 = vadd.f32 0.0, %v1962
        %1964 = vmatprep.mubr.f32.mxu0 0.0
        %1965 = vmatmul.mubr.f32.gmra.mxu0 %v1802
        %v1966 = vpop.f32.mrf.mxu0
        %v1967 = vadd.f32 0.0, %v1966
        %v1968 = vpop.f32.mrf.mxu0
        %v1969 = vadd.f32 0.0, %v1968
        %1970 = vmatprep.mubr.f32.mxu0 0.0
        %1971 = vmatmul.mubr.f32.gmra.mxu0 %v1805
        %v1972 = vpop.f32.mrf.mxu0
        %v1973 = vadd.f32 0.0, %v1972
        %v1974 = vpop.f32.mrf.mxu0
        %v1975 = vadd.f32 0.0, %v1974
        %1976 = vmatprep.mubr.f32.mxu0 0.0
        %1977 = vmatmul.mubr.f32.gmra.mxu0 %v1808
        %v1978 = vpop.f32.mrf.mxu0
        %v1979 = vadd.f32 0.0, %v1978
        %v1980 = vpop.f32.mrf.mxu0
        %v1981 = vadd.f32 0.0, %v1980
        %1982 = vmatprep.mubr.f32.mxu0 0.0
        %1983 = vmatmul.mubr.f32.gmra.mxu0 %v1811
        %v1984 = vpop.f32.mrf.mxu0
        %v1985 = vadd.f32 0.0, %v1984
        %v1986 = vpop.f32.mrf.mxu0
        %v1987 = vadd.f32 0.0, %v1986
        %1988 = vmatprep.mubr.f32.mxu0 0.0
        %1989 = vmatmul.mubr.f32.gmra.mxu0 %v1814
        %v1990 = vpop.f32.mrf.mxu0
        %v1991 = vadd.f32 0.0, %v1990
        %v1992 = vpop.f32.mrf.mxu0
        %v1993 = vadd.f32 0.0, %v1992
        %1994 = vmatprep.mubr.f32.mxu0 0.0
        %1995 = vmatmul.mubr.f32.gmra.mxu0 %v1817
        %v1996 = vpop.f32.mrf.mxu0
        %v1997 = vadd.f32 0.0, %v1996
        %v1998 = vpop.f32.mrf.mxu0
        %v1999 = vadd.f32 0.0, %v1998
        %2000 = vmatprep.mubr.f32.mxu0 0.0
        %2001 = vmatmul.mubr.f32.gmra.mxu0 %v1820
        %v2002 = vpop.f32.mrf.mxu0
        %v2003 = vadd.f32 0.0, %v2002
        %v2004 = vpop.f32.mrf.mxu0
        %v2005 = vadd.f32 0.0, %v2004
        %2006 = vmatprep.mubr.f32.mxu0 0.0
        %2007 = vmatmul.mubr.f32.gmra.mxu0 %v1823
        %v2008 = vpop.f32.mrf.mxu0
        %v2009 = vadd.f32 0.0, %v2008
        %v2010 = vpop.f32.mrf.mxu0
        %v2011 = vadd.f32 0.0, %v2010
        %2012 = vmatprep.mubr.f32.mxu0 0.0
        %2013 = vmatmul.mubr.f32.gmra.mxu0 %v1826
        %v2014 = vpop.f32.mrf.mxu0
        %v2015 = vadd.f32 0.0, %v2014
        %v2016 = vpop.f32.mrf.mxu0
        %v2017 = vadd.f32 0.0, %v2016
        %2018 = vmatprep.mubr.f32.mxu0 0.0
        %2019 = vmatmul.mubr.f32.gmra.mxu0 %v1829
        %v2020 = vpop.f32.mrf.mxu0
        %v2021 = vadd.f32 0.0, %v2020
        %v2022 = vpop.f32.mrf.mxu0
        %v2023 = vadd.f32 0.0, %v2022
        %2024 = vmatprep.mubr.f32.mxu0 0.0
        %2025 = vmatmul.mubr.f32.gmra.mxu0 %v1832
        %v2026 = vpop.f32.mrf.mxu0
        %v2027 = vadd.f32 0.0, %v2026
        %v2028 = vpop.f32.mrf.mxu0
        %v2029 = vadd.f32 0.0, %v2028
        %2030 = vmatprep.mubr.f32.mxu0 0.0
        %2031 = vmatmul.mubr.f32.gmra.mxu0 %v1835
        %v2032 = vpop.f32.mrf.mxu0
        %v2033 = vadd.f32 0.0, %v2032
        %v2034 = vpop.f32.mrf.mxu0
        %v2035 = vadd.f32 0.0, %v2034
        %2036 = vmatprep.mubr.f32.mxu0 0.0
        %2037 = vmatmul.mubr.f32.gmra.mxu0 %v1838
        %v2038 = vpop.f32.mrf.mxu0
        %v2039 = vadd.f32 0.0, %v2038
        %v2040 = vpop.f32.mrf.mxu0
        %v2041 = vadd.f32 0.0, %v2040
        %2042 = vmatprep.mubr.f32.mxu0 0.0
        %2043 = vmatmul.mubr.f32.gmra.mxu0 %v1841
        %v2044 = vpop.f32.mrf.mxu0
        %v2045 = vadd.f32 0.0, %v2044
        %v2046 = vpop.f32.mrf.mxu0
        %v2047 = vadd.f32 0.0, %v2046
        %2048 = vmatprep.mubr.f32.mxu0 0.0
        %2049 = vmatmul.mubr.f32.gmra.mxu0 %v1844
        %v2050 = vpop.f32.mrf.mxu0
        %v2051 = vadd.f32 0.0, %v2050
        %v2052 = vpop.f32.mrf.mxu0
        %v2053 = vadd.f32 0.0, %v2052
        %2054 = vmatprep.mubr.f32.mxu0 0.0
        %2055 = vmatmul.mubr.f32.gmra.mxu0 %v1847
        %v2056 = vpop.f32.mrf.mxu0
        %v2057 = vadd.f32 0.0, %v2056
        %v2058 = vpop.f32.mrf.mxu0
        %v2059 = vadd.f32 0.0, %v2058
        %2060 = vmatprep.mubr.f32.mxu0 0.0
        %2061 = vmatmul.mubr.f32.gmra.mxu0 %v1850
        %v2062 = vpop.f32.mrf.mxu0
        %v2063 = vadd.f32 0.0, %v2062
        %v2064 = vpop.f32.mrf.mxu0
        %v2065 = vadd.f32 0.0, %v2064
        %2066 = vmatprep.mubr.f32.mxu0 0.0
        %2067 = vmatmul.mubr.f32.gmra.mxu0 %v1853
        %v2068 = vpop.f32.mrf.mxu0
        %v2069 = vadd.f32 0.0, %v2068
        %v2070 = vpop.f32.mrf.mxu0
        %v2071 = vadd.f32 0.0, %v2070
        %2072 = vmatprep.mubr.f32.mxu0 0.0
        %2073 = vmatmul.mubr.f32.gmra.mxu0 %v1856
        %v2074 = vpop.f32.mrf.mxu0
        %v2075 = vadd.f32 0.0, %v2074
        %v2076 = vpop.f32.mrf.mxu0
        %v2077 = vadd.f32 0.0, %v2076
        %2078 = vmatprep.mubr.f32.mxu0 0.0
        %2079 = vmatmul.mubr.f32.gmra.mxu0 %v1859
        %v2080 = vpop.f32.mrf.mxu0
        %v2081 = vadd.f32 0.0, %v2080
        %v2082 = vpop.f32.mrf.mxu0
        %v2083 = vadd.f32 0.0, %v2082
        %2084 = vmatprep.mubr.f32.mxu0 0.0
        %2085 = vmatmul.mubr.f32.gmra.mxu0 %v1862
        %v2086 = vpop.f32.mrf.mxu0
        %v2087 = vadd.f32 0.0, %v2086
        %v2088 = vpop.f32.mrf.mxu0
        %v2089 = vadd.f32 0.0, %v2088
        %2090 = vmatprep.mubr.f32.mxu0 0.0
        %2091 = vmatmul.mubr.f32.gmra.mxu0 %v1865
        %v2092 = vpop.f32.mrf.mxu0
        %v2093 = vadd.f32 0.0, %v2092
        %v2094 = vpop.f32.mrf.mxu0
        %v2095 = vadd.f32 0.0, %v2094
        %2096 = vmatprep.mubr.f32.mxu0 0.0
        %2097 = vmatmul.mubr.f32.gmra.mxu0 %v1868
        %v2098 = vpop.f32.mrf.mxu0
        %v2099 = vadd.f32 0.0, %v2098
        %v2100 = vpop.f32.mrf.mxu0
        %v2101 = vadd.f32 0.0, %v2100
        %2102 = vmatprep.mubr.f32.mxu0 0.0
        %2103 = vmatmul.mubr.f32.gmra.mxu0 %v1871
        %v2104 = vpop.f32.mrf.mxu0
        %v2105 = vadd.f32 0.0, %v2104
        %v2106 = vpop.f32.mrf.mxu0
        %v2107 = vadd.f32 0.0, %v2106
        %2108 = vmatprep.mubr.f32.mxu0 0.0
        %2109 = vmatmul.mubr.f32.gmra.mxu0 %v1874
        %v2110 = vpop.f32.mrf.mxu0
        %v2111 = vadd.f32 0.0, %v2110
        %v2112 = vpop.f32.mrf.mxu0
        %v2113 = vadd.f32 0.0, %v2112
        %2114 = vmatprep.mubr.f32.mxu0 0.0
        %2115 = vmatmul.mubr.f32.gmra.mxu0 %v1877
        %v2116 = vpop.f32.mrf.mxu0
        %v2117 = vadd.f32 0.0, %v2116
        %v2118 = vpop.f32.mrf.mxu0
        %v2119 = vadd.f32 0.0, %v2118
        %2120 = vmatprep.mubr.f32.mxu0 0.0
        %2121 = vmatmul.mubr.f32.gmra.mxu0 %v1880
        %v2122 = vpop.f32.mrf.mxu0
        %v2123 = vadd.f32 0.0, %v2122
        %v2124 = vpop.f32.mrf.mxu0
        %v2125 = vadd.f32 0.0, %v2124
        %2126 = vmatprep.mubr.f32.mxu0 0.0
        %2127 = vmatmul.mubr.f32.gmra.mxu0 %v1883
        %v2128 = vpop.f32.mrf.mxu0
        %v2129 = vadd.f32 0.0, %v2128
        %v2130 = vpop.f32.mrf.mxu0
        %v2131 = vadd.f32 0.0, %v2130
        %2132 = vmatprep.mubr.f32.mxu0 0.0
        %2133 = vmatmul.mubr.f32.gmra.mxu0 %v1886
        %v2134 = vpop.f32.mrf.mxu0
        %v2135 = vadd.f32 0.0, %v2134
        %v2136 = vpop.f32.mrf.mxu0
        %v2137 = vadd.f32 0.0, %v2136
        %2138 = vmatprep.mubr.f32.mxu0 0.0
        %2139 = vmatmul.mubr.f32.gmra.mxu0 %v1889
        %v2140 = vpop.f32.mrf.mxu0
        %v2141 = vadd.f32 0.0, %v2140
        %v2142 = vpop.f32.mrf.mxu0
        %v2143 = vadd.f32 0.0, %v2142
        %2144 = vmatprep.mubr.f32.mxu0 0.0
        %2145 = vmatmul.mubr.f32.gmra.mxu0 %v1892
        %v2146 = vpop.f32.mrf.mxu0
        %v2147 = vadd.f32 0.0, %v2146
        %v2148 = vpop.f32.mrf.mxu0
        %v2149 = vadd.f32 0.0, %v2148
        %2150 = vdwg.mxu0
        %v2151 = vld [vmem:[%s799] sm:$0xff]
        %v2152 = vld [vmem:[%s799 + $0x8] sm:$0xff]
        %v2153 = vld [vmem:[%s799 + $0x10] sm:$0xff]
        %v2154 = vld [vmem:[%s799 + $0x18] sm:$0xff]
        %v2155 = vld [vmem:[%s799 + $0x20] sm:$0xff]
        %v2156 = vld [vmem:[%s799 + $0x28] sm:$0xff]
        %v2157 = vld [vmem:[%s799 + $0x30] sm:$0xff]
        %v2158 = vld [vmem:[%s799 + $0x38] sm:$0xff]
        %v2159 = vld [vmem:[%s799 + $0x40] sm:$0xff]
        %v2160 = vld [vmem:[%s799 + $0x48] sm:$0xff]
        %v2161 = vld [vmem:[%s799 + $0x50] sm:$0xff]
        %v2162 = vld [vmem:[%s799 + $0x58] sm:$0xff]
        %v2163 = vld [vmem:[%s799 + $0x60] sm:$0xff]
        %v2164 = vld [vmem:[%s799 + $0x68] sm:$0xff]
        %v2165 = vld [vmem:[%s799 + $0x70] sm:$0xff]
        %v2166 = vld [vmem:[%s799 + $0x78] sm:$0xff]
        %v2167 = vld [vmem:[%s799 + $0x80] sm:$0xff]
        %v2168 = vld [vmem:[%s799 + $0x88] sm:$0xff]
        %v2169 = vld [vmem:[%s799 + $0x90] sm:$0xff]
        %v2170 = vld [vmem:[%s799 + $0x98] sm:$0xff]
        %v2171 = vld [vmem:[%s799 + $0xa0] sm:$0xff]
        %v2172 = vld [vmem:[%s799 + $0xa8] sm:$0xff]
        %v2173 = vld [vmem:[%s799 + $0xb0] sm:$0xff]
        %v2174 = vld [vmem:[%s799 + $0xb8] sm:$0xff]
        %v2175 = vld [vmem:[%s799 + $0xc0] sm:$0xff]
        %v2176 = vld [vmem:[%s799 + $0xc8] sm:$0xff]
        %v2177 = vld [vmem:[%s799 + $0xd0] sm:$0xff]
        %v2178 = vld [vmem:[%s799 + $0xd8] sm:$0xff]
        %v2179 = vld [vmem:[%s799 + $0xe0] sm:$0xff]
        %v2180 = vld [vmem:[%s799 + $0xe8] sm:$0xff]
        %v2181 = vld [vmem:[%s799 + $0xf0] sm:$0xff]
        %v2182 = vld [vmem:[%s799 + $0xf8] sm:$0xff]
        %v2183 = vld [vmem:[%s810] sm:$0x3]
        %2184 = vset.pattern.permute.xlu0 0
        %2185 = vperm.xlu0 %2184, %v2151
        %v2186 = vpop.permute.xlu0 %2185
        %2187 = vset.pattern.permute.xlu0 0
        %2188 = vperm.xlu0 %2187, %v2152
        %v2189 = vpop.permute.xlu0 %2188
        %2190 = vset.pattern.permute.xlu0 0
        %2191 = vperm.xlu0 %2190, %v2153
        %v2192 = vpop.permute.xlu0 %2191
        %2193 = vset.pattern.permute.xlu0 0
        %2194 = vperm.xlu0 %2193, %v2154
        %v2195 = vpop.permute.xlu0 %2194
        %2196 = vset.pattern.permute.xlu0 0
        %2197 = vperm.xlu0 %2196, %v2155
        %v2198 = vpop.permute.xlu0 %2197
        %2199 = vset.pattern.permute.xlu0 0
        %2200 = vperm.xlu0 %2199, %v2156
        %v2201 = vpop.permute.xlu0 %2200
        %2202 = vset.pattern.permute.xlu0 0
        %2203 = vperm.xlu0 %2202, %v2157
        %v2204 = vpop.permute.xlu0 %2203
        %2205 = vset.pattern.permute.xlu0 0
        %2206 = vperm.xlu0 %2205, %v2158
        %v2207 = vpop.permute.xlu0 %2206
        %2208 = vset.pattern.permute.xlu0 0
        %2209 = vperm.xlu0 %2208, %v2159
        %v2210 = vpop.permute.xlu0 %2209
        %2211 = vset.pattern.permute.xlu0 0
        %2212 = vperm.xlu0 %2211, %v2160
        %v2213 = vpop.permute.xlu0 %2212
        %2214 = vset.pattern.permute.xlu0 0
        %2215 = vperm.xlu0 %2214, %v2161
        %v2216 = vpop.permute.xlu0 %2215
        %2217 = vset.pattern.permute.xlu0 0
        %2218 = vperm.xlu0 %2217, %v2162
        %v2219 = vpop.permute.xlu0 %2218
        %2220 = vset.pattern.permute.xlu0 0
        %2221 = vperm.xlu0 %2220, %v2163
        %v2222 = vpop.permute.xlu0 %2221
        %2223 = vset.pattern.permute.xlu0 0
        %2224 = vperm.xlu0 %2223, %v2164
        %v2225 = vpop.permute.xlu0 %2224
        %2226 = vset.pattern.permute.xlu0 0
        %2227 = vperm.xlu0 %2226, %v2165
        %v2228 = vpop.permute.xlu0 %2227
        %2229 = vset.pattern.permute.xlu0 0
        %2230 = vperm.xlu0 %2229, %v2166
        %v2231 = vpop.permute.xlu0 %2230
        %2232 = vset.pattern.permute.xlu0 0
        %2233 = vperm.xlu0 %2232, %v2167
        %v2234 = vpop.permute.xlu0 %2233
        %2235 = vset.pattern.permute.xlu0 0
        %2236 = vperm.xlu0 %2235, %v2168
        %v2237 = vpop.permute.xlu0 %2236
        %2238 = vset.pattern.permute.xlu0 0
        %2239 = vperm.xlu0 %2238, %v2169
        %v2240 = vpop.permute.xlu0 %2239
        %2241 = vset.pattern.permute.xlu0 0
        %2242 = vperm.xlu0 %2241, %v2170
        %v2243 = vpop.permute.xlu0 %2242
        %2244 = vset.pattern.permute.xlu0 0
        %2245 = vperm.xlu0 %2244, %v2171
        %v2246 = vpop.permute.xlu0 %2245
        %2247 = vset.pattern.permute.xlu0 0
        %2248 = vperm.xlu0 %2247, %v2172
        %v2249 = vpop.permute.xlu0 %2248
        %2250 = vset.pattern.permute.xlu0 0
        %2251 = vperm.xlu0 %2250, %v2173
        %v2252 = vpop.permute.xlu0 %2251
        %2253 = vset.pattern.permute.xlu0 0
        %2254 = vperm.xlu0 %2253, %v2174
        %v2255 = vpop.permute.xlu0 %2254
        %2256 = vset.pattern.permute.xlu0 0
        %2257 = vperm.xlu0 %2256, %v2175
        %v2258 = vpop.permute.xlu0 %2257
        %2259 = vset.pattern.permute.xlu0 0
        %2260 = vperm.xlu0 %2259, %v2176
        %v2261 = vpop.permute.xlu0 %2260
        %2262 = vset.pattern.permute.xlu0 0
        %2263 = vperm.xlu0 %2262, %v2177
        %v2264 = vpop.permute.xlu0 %2263
        %2265 = vset.pattern.permute.xlu0 0
        %2266 = vperm.xlu0 %2265, %v2178
        %v2267 = vpop.permute.xlu0 %2266
        %2268 = vset.pattern.permute.xlu0 0
        %2269 = vperm.xlu0 %2268, %v2179
        %v2270 = vpop.permute.xlu0 %2269
        %2271 = vset.pattern.permute.xlu0 0
        %2272 = vperm.xlu0 %2271, %v2180
        %v2273 = vpop.permute.xlu0 %2272
        %2274 = vset.pattern.permute.xlu0 0
        %2275 = vperm.xlu0 %2274, %v2181
        %v2276 = vpop.permute.xlu0 %2275
        %2277 = vset.pattern.permute.xlu0 0
        %2278 = vperm.xlu0 %2277, %v2182
        %v2279 = vpop.permute.xlu0 %2278
        %v2280 = vlaneseq
        %v2281 = vshrl.u32 %v2280, 7
        %v2282 = vsub.s32 0, %v2281
        %v2283 = vrot.slane %v2183, %v2282
        %v2284 = vlaneseq
        %v2285 = vshrl.u32 %v2284, 7
        %v2286 = vsub.s32 1, %v2285
        %v2287 = vrot.slane %v2183, %v2286
        %v2288 = vsub.s32 %v2186, %v2283
        %v2289 = vsub.s32 %v2186, %v2287
        %v2290 = vsub.s32 %v2189, %v2283
        %v2291 = vsub.s32 %v2189, %v2287
        %v2292 = vsub.s32 %v2192, %v2283
        %v2293 = vsub.s32 %v2192, %v2287
        %v2294 = vsub.s32 %v2195, %v2283
        %v2295 = vsub.s32 %v2195, %v2287
        %v2296 = vsub.s32 %v2198, %v2283
        %v2297 = vsub.s32 %v2198, %v2287
        %v2298 = vsub.s32 %v2201, %v2283
        %v2299 = vsub.s32 %v2201, %v2287
        %v2300 = vsub.s32 %v2204, %v2283
        %v2301 = vsub.s32 %v2204, %v2287
        %v2302 = vsub.s32 %v2207, %v2283
        %v2303 = vsub.s32 %v2207, %v2287
        %v2304 = vsub.s32 %v2210, %v2283
        %v2305 = vsub.s32 %v2210, %v2287
        %v2306 = vsub.s32 %v2213, %v2283
        %v2307 = vsub.s32 %v2213, %v2287
        %v2308 = vsub.s32 %v2216, %v2283
        %v2309 = vsub.s32 %v2216, %v2287
        %v2310 = vsub.s32 %v2219, %v2283
        %v2311 = vsub.s32 %v2219, %v2287
        %v2312 = vsub.s32 %v2222, %v2283
        %v2313 = vsub.s32 %v2222, %v2287
        %v2314 = vsub.s32 %v2225, %v2283
        %v2315 = vsub.s32 %v2225, %v2287
        %v2316 = vsub.s32 %v2228, %v2283
        %v2317 = vsub.s32 %v2228, %v2287
        %v2318 = vsub.s32 %v2231, %v2283
        %v2319 = vsub.s32 %v2231, %v2287
        %v2320 = vsub.s32 %v2234, %v2283
        %v2321 = vsub.s32 %v2234, %v2287
        %v2322 = vsub.s32 %v2237, %v2283
        %v2323 = vsub.s32 %v2237, %v2287
        %v2324 = vsub.s32 %v2240, %v2283
        %v2325 = vsub.s32 %v2240, %v2287
        %v2326 = vsub.s32 %v2243, %v2283
        %v2327 = vsub.s32 %v2243, %v2287
        %v2328 = vsub.s32 %v2246, %v2283
        %v2329 = vsub.s32 %v2246, %v2287
        %v2330 = vsub.s32 %v2249, %v2283
        %v2331 = vsub.s32 %v2249, %v2287
        %v2332 = vsub.s32 %v2252, %v2283
        %v2333 = vsub.s32 %v2252, %v2287
        %v2334 = vsub.s32 %v2255, %v2283
        %v2335 = vsub.s32 %v2255, %v2287
        %v2336 = vsub.s32 %v2258, %v2283
        %v2337 = vsub.s32 %v2258, %v2287
        %v2338 = vsub.s32 %v2261, %v2283
        %v2339 = vsub.s32 %v2261, %v2287
        %v2340 = vsub.s32 %v2264, %v2283
        %v2341 = vsub.s32 %v2264, %v2287
        %v2342 = vsub.s32 %v2267, %v2283
        %v2343 = vsub.s32 %v2267, %v2287
        %v2344 = vsub.s32 %v2270, %v2283
        %v2345 = vsub.s32 %v2270, %v2287
        %v2346 = vsub.s32 %v2273, %v2283
        %v2347 = vsub.s32 %v2273, %v2287
        %v2348 = vsub.s32 %v2276, %v2283
        %v2349 = vsub.s32 %v2276, %v2287
        %v2350 = vsub.s32 %v2279, %v2283
        %v2351 = vsub.s32 %v2279, %v2287
        %vm2352 = vcmp.le.f32.partialorder %v1961, 36.0
        %vm2353 = vcmp.le.f32.partialorder %v1963, 36.0
        %vm2354 = vcmp.le.f32.partialorder %v1967, 36.0
        %vm2355 = vcmp.le.f32.partialorder %v1969, 36.0
        %vm2356 = vcmp.le.f32.partialorder %v1973, 36.0
        %vm2357 = vcmp.le.f32.partialorder %v1975, 36.0
        %vm2358 = vcmp.le.f32.partialorder %v1979, 36.0
        %vm2359 = vcmp.le.f32.partialorder %v1981, 36.0
        %vm2360 = vcmp.le.f32.partialorder %v1985, 36.0
        %vm2361 = vcmp.le.f32.partialorder %v1987, 36.0
        %vm2362 = vcmp.le.f32.partialorder %v1991, 36.0
        %vm2363 = vcmp.le.f32.partialorder %v1993, 36.0
        %vm2364 = vcmp.le.f32.partialorder %v1997, 36.0
        %vm2365 = vcmp.le.f32.partialorder %v1999, 36.0
        %vm2366 = vcmp.le.f32.partialorder %v2003, 36.0
        %vm2367 = vcmp.le.f32.partialorder %v2005, 36.0
        %vm2368 = vcmp.le.f32.partialorder %v2009, 36.0
        %vm2369 = vcmp.le.f32.partialorder %v2011, 36.0
        %vm2370 = vcmp.le.f32.partialorder %v2015, 36.0
        %vm2371 = vcmp.le.f32.partialorder %v2017, 36.0
        %vm2372 = vcmp.le.f32.partialorder %v2021, 36.0
        %vm2373 = vcmp.le.f32.partialorder %v2023, 36.0
        %vm2374 = vcmp.le.f32.partialorder %v2027, 36.0
        %vm2375 = vcmp.le.f32.partialorder %v2029, 36.0
        %vm2376 = vcmp.le.f32.partialorder %v2033, 36.0
        %vm2377 = vcmp.le.f32.partialorder %v2035, 36.0
        %vm2378 = vcmp.le.f32.partialorder %v2039, 36.0
        %vm2379 = vcmp.le.f32.partialorder %v2041, 36.0
        %vm2380 = vcmp.le.f32.partialorder %v2045, 36.0
        %vm2381 = vcmp.le.f32.partialorder %v2047, 36.0
        %vm2382 = vcmp.le.f32.partialorder %v2051, 36.0
        %vm2383 = vcmp.le.f32.partialorder %v2053, 36.0
        %vm2384 = vcmp.le.f32.partialorder %v2057, 36.0
        %vm2385 = vcmp.le.f32.partialorder %v2059, 36.0
        %vm2386 = vcmp.le.f32.partialorder %v2063, 36.0
        %vm2387 = vcmp.le.f32.partialorder %v2065, 36.0
        %vm2388 = vcmp.le.f32.partialorder %v2069, 36.0
        %vm2389 = vcmp.le.f32.partialorder %v2071, 36.0
        %vm2390 = vcmp.le.f32.partialorder %v2075, 36.0
        %vm2391 = vcmp.le.f32.partialorder %v2077, 36.0
        %vm2392 = vcmp.le.f32.partialorder %v2081, 36.0
        %vm2393 = vcmp.le.f32.partialorder %v2083, 36.0
        %vm2394 = vcmp.le.f32.partialorder %v2087, 36.0
        %vm2395 = vcmp.le.f32.partialorder %v2089, 36.0
        %vm2396 = vcmp.le.f32.partialorder %v2093, 36.0
        %vm2397 = vcmp.le.f32.partialorder %v2095, 36.0
        %vm2398 = vcmp.le.f32.partialorder %v2099, 36.0
        %vm2399 = vcmp.le.f32.partialorder %v2101, 36.0
        %vm2400 = vcmp.le.f32.partialorder %v2105, 36.0
        %vm2401 = vcmp.le.f32.partialorder %v2107, 36.0
        %vm2402 = vcmp.le.f32.partialorder %v2111, 36.0
        %vm2403 = vcmp.le.f32.partialorder %v2113, 36.0
        %vm2404 = vcmp.le.f32.partialorder %v2117, 36.0
        %vm2405 = vcmp.le.f32.partialorder %v2119, 36.0
        %vm2406 = vcmp.le.f32.partialorder %v2123, 36.0
        %vm2407 = vcmp.le.f32.partialorder %v2125, 36.0
        %vm2408 = vcmp.le.f32.partialorder %v2129, 36.0
        %vm2409 = vcmp.le.f32.partialorder %v2131, 36.0
        %vm2410 = vcmp.le.f32.partialorder %v2135, 36.0
        %vm2411 = vcmp.le.f32.partialorder %v2137, 36.0
        %vm2412 = vcmp.le.f32.partialorder %v2141, 36.0
        %vm2413 = vcmp.le.f32.partialorder %v2143, 36.0
        %vm2414 = vcmp.le.f32.partialorder %v2147, 36.0
        %vm2415 = vcmp.le.f32.partialorder %v2149, 36.0
        %vm2416 = vcmp.lt.s32.totalorder %v2288, 0
        %v2417 = vsub.s32 0, %v2288
        %v2418 = vsel %vm2416, %v2417, %v2288
        %vm2419 = vcmp.lt.s32.totalorder %v2289, 0
        %v2420 = vsub.s32 0, %v2289
        %v2421 = vsel %vm2419, %v2420, %v2289
        %vm2422 = vcmp.lt.s32.totalorder %v2290, 0
        %v2423 = vsub.s32 0, %v2290
        %v2424 = vsel %vm2422, %v2423, %v2290
        %vm2425 = vcmp.lt.s32.totalorder %v2291, 0
        %v2426 = vsub.s32 0, %v2291
        %v2427 = vsel %vm2425, %v2426, %v2291
        %vm2428 = vcmp.lt.s32.totalorder %v2292, 0
        %v2429 = vsub.s32 0, %v2292
        %v2430 = vsel %vm2428, %v2429, %v2292
        %vm2431 = vcmp.lt.s32.totalorder %v2293, 0
        %v2432 = vsub.s32 0, %v2293
        %v2433 = vsel %vm2431, %v2432, %v2293
        %vm2434 = vcmp.lt.s32.totalorder %v2294, 0
        %v2435 = vsub.s32 0, %v2294
        %v2436 = vsel %vm2434, %v2435, %v2294
        %vm2437 = vcmp.lt.s32.totalorder %v2295, 0
        %v2438 = vsub.s32 0, %v2295
        %v2439 = vsel %vm2437, %v2438, %v2295
        %vm2440 = vcmp.lt.s32.totalorder %v2296, 0
        %v2441 = vsub.s32 0, %v2296
        %v2442 = vsel %vm2440, %v2441, %v2296
        %vm2443 = vcmp.lt.s32.totalorder %v2297, 0
        %v2444 = vsub.s32 0, %v2297
        %v2445 = vsel %vm2443, %v2444, %v2297
        %vm2446 = vcmp.lt.s32.totalorder %v2298, 0
        %v2447 = vsub.s32 0, %v2298
        %v2448 = vsel %vm2446, %v2447, %v2298
        %vm2449 = vcmp.lt.s32.totalorder %v2299, 0
        %v2450 = vsub.s32 0, %v2299
        %v2451 = vsel %vm2449, %v2450, %v2299
        %vm2452 = vcmp.lt.s32.totalorder %v2300, 0
        %v2453 = vsub.s32 0, %v2300
        %v2454 = vsel %vm2452, %v2453, %v2300
        %vm2455 = vcmp.lt.s32.totalorder %v2301, 0
        %v2456 = vsub.s32 0, %v2301
        %v2457 = vsel %vm2455, %v2456, %v2301
        %vm2458 = vcmp.lt.s32.totalorder %v2302, 0
        %v2459 = vsub.s32 0, %v2302
        %v2460 = vsel %vm2458, %v2459, %v2302
        %vm2461 = vcmp.lt.s32.totalorder %v2303, 0
        %v2462 = vsub.s32 0, %v2303
        %v2463 = vsel %vm2461, %v2462, %v2303
        %vm2464 = vcmp.lt.s32.totalorder %v2304, 0
        %v2465 = vsub.s32 0, %v2304
        %v2466 = vsel %vm2464, %v2465, %v2304
        %vm2467 = vcmp.lt.s32.totalorder %v2305, 0
        %v2468 = vsub.s32 0, %v2305
        %v2469 = vsel %vm2467, %v2468, %v2305
        %vm2470 = vcmp.lt.s32.totalorder %v2306, 0
        %v2471 = vsub.s32 0, %v2306
        %v2472 = vsel %vm2470, %v2471, %v2306
        %vm2473 = vcmp.lt.s32.totalorder %v2307, 0
        %v2474 = vsub.s32 0, %v2307
        %v2475 = vsel %vm2473, %v2474, %v2307
        %vm2476 = vcmp.lt.s32.totalorder %v2308, 0
        %v2477 = vsub.s32 0, %v2308
        %v2478 = vsel %vm2476, %v2477, %v2308
        %vm2479 = vcmp.lt.s32.totalorder %v2309, 0
        %v2480 = vsub.s32 0, %v2309
        %v2481 = vsel %vm2479, %v2480, %v2309
        %vm2482 = vcmp.lt.s32.totalorder %v2310, 0
        %v2483 = vsub.s32 0, %v2310
        %v2484 = vsel %vm2482, %v2483, %v2310
        %vm2485 = vcmp.lt.s32.totalorder %v2311, 0
        %v2486 = vsub.s32 0, %v2311
        %v2487 = vsel %vm2485, %v2486, %v2311
        %vm2488 = vcmp.lt.s32.totalorder %v2312, 0
        %v2489 = vsub.s32 0, %v2312
        %v2490 = vsel %vm2488, %v2489, %v2312
        %vm2491 = vcmp.lt.s32.totalorder %v2313, 0
        %v2492 = vsub.s32 0, %v2313
        %v2493 = vsel %vm2491, %v2492, %v2313
        %vm2494 = vcmp.lt.s32.totalorder %v2314, 0
        %v2495 = vsub.s32 0, %v2314
        %v2496 = vsel %vm2494, %v2495, %v2314
        %vm2497 = vcmp.lt.s32.totalorder %v2315, 0
        %v2498 = vsub.s32 0, %v2315
        %v2499 = vsel %vm2497, %v2498, %v2315
        %vm2500 = vcmp.lt.s32.totalorder %v2316, 0
        %v2501 = vsub.s32 0, %v2316
        %v2502 = vsel %vm2500, %v2501, %v2316
        %vm2503 = vcmp.lt.s32.totalorder %v2317, 0
        %v2504 = vsub.s32 0, %v2317
        %v2505 = vsel %vm2503, %v2504, %v2317
        %vm2506 = vcmp.lt.s32.totalorder %v2318, 0
        %v2507 = vsub.s32 0, %v2318
        %v2508 = vsel %vm2506, %v2507, %v2318
        %vm2509 = vcmp.lt.s32.totalorder %v2319, 0
        %v2510 = vsub.s32 0, %v2319
        %v2511 = vsel %vm2509, %v2510, %v2319
        %vm2512 = vcmp.lt.s32.totalorder %v2320, 0
        %v2513 = vsub.s32 0, %v2320
        %v2514 = vsel %vm2512, %v2513, %v2320
        %vm2515 = vcmp.lt.s32.totalorder %v2321, 0
        %v2516 = vsub.s32 0, %v2321
        %v2517 = vsel %vm2515, %v2516, %v2321
        %vm2518 = vcmp.lt.s32.totalorder %v2322, 0
        %v2519 = vsub.s32 0, %v2322
        %v2520 = vsel %vm2518, %v2519, %v2322
        %vm2521 = vcmp.lt.s32.totalorder %v2323, 0
        %v2522 = vsub.s32 0, %v2323
        %v2523 = vsel %vm2521, %v2522, %v2323
        %vm2524 = vcmp.lt.s32.totalorder %v2324, 0
        %v2525 = vsub.s32 0, %v2324
        %v2526 = vsel %vm2524, %v2525, %v2324
        %vm2527 = vcmp.lt.s32.totalorder %v2325, 0
        %v2528 = vsub.s32 0, %v2325
        %v2529 = vsel %vm2527, %v2528, %v2325
        %vm2530 = vcmp.lt.s32.totalorder %v2326, 0
        %v2531 = vsub.s32 0, %v2326
        %v2532 = vsel %vm2530, %v2531, %v2326
        %vm2533 = vcmp.lt.s32.totalorder %v2327, 0
        %v2534 = vsub.s32 0, %v2327
        %v2535 = vsel %vm2533, %v2534, %v2327
        %vm2536 = vcmp.lt.s32.totalorder %v2328, 0
        %v2537 = vsub.s32 0, %v2328
        %v2538 = vsel %vm2536, %v2537, %v2328
        %vm2539 = vcmp.lt.s32.totalorder %v2329, 0
        %v2540 = vsub.s32 0, %v2329
        %v2541 = vsel %vm2539, %v2540, %v2329
        %vm2542 = vcmp.lt.s32.totalorder %v2330, 0
        %v2543 = vsub.s32 0, %v2330
        %v2544 = vsel %vm2542, %v2543, %v2330
        %vm2545 = vcmp.lt.s32.totalorder %v2331, 0
        %v2546 = vsub.s32 0, %v2331
        %v2547 = vsel %vm2545, %v2546, %v2331
        %vm2548 = vcmp.lt.s32.totalorder %v2332, 0
        %v2549 = vsub.s32 0, %v2332
        %v2550 = vsel %vm2548, %v2549, %v2332
        %vm2551 = vcmp.lt.s32.totalorder %v2333, 0
        %v2552 = vsub.s32 0, %v2333
        %v2553 = vsel %vm2551, %v2552, %v2333
        %vm2554 = vcmp.lt.s32.totalorder %v2334, 0
        %v2555 = vsub.s32 0, %v2334
        %v2556 = vsel %vm2554, %v2555, %v2334
        %vm2557 = vcmp.lt.s32.totalorder %v2335, 0
        %v2558 = vsub.s32 0, %v2335
        %v2559 = vsel %vm2557, %v2558, %v2335
        %vm2560 = vcmp.lt.s32.totalorder %v2336, 0
        %v2561 = vsub.s32 0, %v2336
        %v2562 = vsel %vm2560, %v2561, %v2336
        %vm2563 = vcmp.lt.s32.totalorder %v2337, 0
        %v2564 = vsub.s32 0, %v2337
        %v2565 = vsel %vm2563, %v2564, %v2337
        %vm2566 = vcmp.lt.s32.totalorder %v2338, 0
        %v2567 = vsub.s32 0, %v2338
        %v2568 = vsel %vm2566, %v2567, %v2338
        %vm2569 = vcmp.lt.s32.totalorder %v2339, 0
        %v2570 = vsub.s32 0, %v2339
        %v2571 = vsel %vm2569, %v2570, %v2339
        %vm2572 = vcmp.lt.s32.totalorder %v2340, 0
        %v2573 = vsub.s32 0, %v2340
        %v2574 = vsel %vm2572, %v2573, %v2340
        %vm2575 = vcmp.lt.s32.totalorder %v2341, 0
        %v2576 = vsub.s32 0, %v2341
        %v2577 = vsel %vm2575, %v2576, %v2341
        %vm2578 = vcmp.lt.s32.totalorder %v2342, 0
        %v2579 = vsub.s32 0, %v2342
        %v2580 = vsel %vm2578, %v2579, %v2342
        %vm2581 = vcmp.lt.s32.totalorder %v2343, 0
        %v2582 = vsub.s32 0, %v2343
        %v2583 = vsel %vm2581, %v2582, %v2343
        %vm2584 = vcmp.lt.s32.totalorder %v2344, 0
        %v2585 = vsub.s32 0, %v2344
        %v2586 = vsel %vm2584, %v2585, %v2344
        %vm2587 = vcmp.lt.s32.totalorder %v2345, 0
        %v2588 = vsub.s32 0, %v2345
        %v2589 = vsel %vm2587, %v2588, %v2345
        %vm2590 = vcmp.lt.s32.totalorder %v2346, 0
        %v2591 = vsub.s32 0, %v2346
        %v2592 = vsel %vm2590, %v2591, %v2346
        %vm2593 = vcmp.lt.s32.totalorder %v2347, 0
        %v2594 = vsub.s32 0, %v2347
        %v2595 = vsel %vm2593, %v2594, %v2347
        %vm2596 = vcmp.lt.s32.totalorder %v2348, 0
        %v2597 = vsub.s32 0, %v2348
        %v2598 = vsel %vm2596, %v2597, %v2348
        %vm2599 = vcmp.lt.s32.totalorder %v2349, 0
        %v2600 = vsub.s32 0, %v2349
        %v2601 = vsel %vm2599, %v2600, %v2349
        %vm2602 = vcmp.lt.s32.totalorder %v2350, 0
        %v2603 = vsub.s32 0, %v2350
        %v2604 = vsel %vm2602, %v2603, %v2350
        %vm2605 = vcmp.lt.s32.totalorder %v2351, 0
        %v2606 = vsub.s32 0, %v2351
        %v2607 = vsel %vm2605, %v2606, %v2351
        %vm2608 = vcmp.le.s32.totalorder %v2418, 11
        %vm2609 = vcmp.le.s32.totalorder %v2421, 11
        %vm2610 = vcmp.le.s32.totalorder %v2424, 11
        %vm2611 = vcmp.le.s32.totalorder %v2427, 11
        %vm2612 = vcmp.le.s32.totalorder %v2430, 11
        %vm2613 = vcmp.le.s32.totalorder %v2433, 11
        %vm2614 = vcmp.le.s32.totalorder %v2436, 11
        %vm2615 = vcmp.le.s32.totalorder %v2439, 11
        %vm2616 = vcmp.le.s32.totalorder %v2442, 11
        %vm2617 = vcmp.le.s32.totalorder %v2445, 11
        %vm2618 = vcmp.le.s32.totalorder %v2448, 11
        %vm2619 = vcmp.le.s32.totalorder %v2451, 11
        %vm2620 = vcmp.le.s32.totalorder %v2454, 11
        %vm2621 = vcmp.le.s32.totalorder %v2457, 11
        %vm2622 = vcmp.le.s32.totalorder %v2460, 11
        %vm2623 = vcmp.le.s32.totalorder %v2463, 11
        %vm2624 = vcmp.le.s32.totalorder %v2466, 11
        %vm2625 = vcmp.le.s32.totalorder %v2469, 11
        %vm2626 = vcmp.le.s32.totalorder %v2472, 11
        %vm2627 = vcmp.le.s32.totalorder %v2475, 11
        %vm2628 = vcmp.le.s32.totalorder %v2478, 11
        %vm2629 = vcmp.le.s32.totalorder %v2481, 11
        %vm2630 = vcmp.le.s32.totalorder %v2484, 11
        %vm2631 = vcmp.le.s32.totalorder %v2487, 11
        %vm2632 = vcmp.le.s32.totalorder %v2490, 11
        %vm2633 = vcmp.le.s32.totalorder %v2493, 11
        %vm2634 = vcmp.le.s32.totalorder %v2496, 11
        %vm2635 = vcmp.le.s32.totalorder %v2499, 11
        %vm2636 = vcmp.le.s32.totalorder %v2502, 11
        %vm2637 = vcmp.le.s32.totalorder %v2505, 11
        %vm2638 = vcmp.le.s32.totalorder %v2508, 11
        %vm2639 = vcmp.le.s32.totalorder %v2511, 11
        %vm2640 = vcmp.le.s32.totalorder %v2514, 11
        %vm2641 = vcmp.le.s32.totalorder %v2517, 11
        %vm2642 = vcmp.le.s32.totalorder %v2520, 11
        %vm2643 = vcmp.le.s32.totalorder %v2523, 11
        %vm2644 = vcmp.le.s32.totalorder %v2526, 11
        %vm2645 = vcmp.le.s32.totalorder %v2529, 11
        %vm2646 = vcmp.le.s32.totalorder %v2532, 11
        %vm2647 = vcmp.le.s32.totalorder %v2535, 11
        %vm2648 = vcmp.le.s32.totalorder %v2538, 11
        %vm2649 = vcmp.le.s32.totalorder %v2541, 11
        %vm2650 = vcmp.le.s32.totalorder %v2544, 11
        %vm2651 = vcmp.le.s32.totalorder %v2547, 11
        %vm2652 = vcmp.le.s32.totalorder %v2550, 11
        %vm2653 = vcmp.le.s32.totalorder %v2553, 11
        %vm2654 = vcmp.le.s32.totalorder %v2556, 11
        %vm2655 = vcmp.le.s32.totalorder %v2559, 11
        %vm2656 = vcmp.le.s32.totalorder %v2562, 11
        %vm2657 = vcmp.le.s32.totalorder %v2565, 11
        %vm2658 = vcmp.le.s32.totalorder %v2568, 11
        %vm2659 = vcmp.le.s32.totalorder %v2571, 11
        %vm2660 = vcmp.le.s32.totalorder %v2574, 11
        %vm2661 = vcmp.le.s32.totalorder %v2577, 11
        %vm2662 = vcmp.le.s32.totalorder %v2580, 11
        %vm2663 = vcmp.le.s32.totalorder %v2583, 11
        %vm2664 = vcmp.le.s32.totalorder %v2586, 11
        %vm2665 = vcmp.le.s32.totalorder %v2589, 11
        %vm2666 = vcmp.le.s32.totalorder %v2592, 11
        %vm2667 = vcmp.le.s32.totalorder %v2595, 11
        %vm2668 = vcmp.le.s32.totalorder %v2598, 11
        %vm2669 = vcmp.le.s32.totalorder %v2601, 11
        %vm2670 = vcmp.le.s32.totalorder %v2604, 11
        %vm2671 = vcmp.le.s32.totalorder %v2607, 11
        %vm2672 = vmand %vm2352, %vm2608
        %vm2673 = vmand %vm2353, %vm2609
        %vm2674 = vmand %vm2354, %vm2610
        %vm2675 = vmand %vm2355, %vm2611
        %vm2676 = vmand %vm2356, %vm2612
        %vm2677 = vmand %vm2357, %vm2613
        %vm2678 = vmand %vm2358, %vm2614
        %vm2679 = vmand %vm2359, %vm2615
        %vm2680 = vmand %vm2360, %vm2616
        %vm2681 = vmand %vm2361, %vm2617
        %vm2682 = vmand %vm2362, %vm2618
        %vm2683 = vmand %vm2363, %vm2619
        %vm2684 = vmand %vm2364, %vm2620
        %vm2685 = vmand %vm2365, %vm2621
        %vm2686 = vmand %vm2366, %vm2622
        %vm2687 = vmand %vm2367, %vm2623
        %vm2688 = vmand %vm2368, %vm2624
        %vm2689 = vmand %vm2369, %vm2625
        %vm2690 = vmand %vm2370, %vm2626
        %vm2691 = vmand %vm2371, %vm2627
        %vm2692 = vmand %vm2372, %vm2628
        %vm2693 = vmand %vm2373, %vm2629
        %vm2694 = vmand %vm2374, %vm2630
        %vm2695 = vmand %vm2375, %vm2631
        %vm2696 = vmand %vm2376, %vm2632
        %vm2697 = vmand %vm2377, %vm2633
        %vm2698 = vmand %vm2378, %vm2634
        %vm2699 = vmand %vm2379, %vm2635
        %vm2700 = vmand %vm2380, %vm2636
        %vm2701 = vmand %vm2381, %vm2637
        %vm2702 = vmand %vm2382, %vm2638
        %vm2703 = vmand %vm2383, %vm2639
        %vm2704 = vmand %vm2384, %vm2640
        %vm2705 = vmand %vm2385, %vm2641
        %vm2706 = vmand %vm2386, %vm2642
        %vm2707 = vmand %vm2387, %vm2643
        %vm2708 = vmand %vm2388, %vm2644
        %vm2709 = vmand %vm2389, %vm2645
        %vm2710 = vmand %vm2390, %vm2646
        %vm2711 = vmand %vm2391, %vm2647
        %vm2712 = vmand %vm2392, %vm2648
        %vm2713 = vmand %vm2393, %vm2649
        %vm2714 = vmand %vm2394, %vm2650
        %vm2715 = vmand %vm2395, %vm2651
        %vm2716 = vmand %vm2396, %vm2652
        %vm2717 = vmand %vm2397, %vm2653
        %vm2718 = vmand %vm2398, %vm2654
        %vm2719 = vmand %vm2399, %vm2655
        %vm2720 = vmand %vm2400, %vm2656
        %vm2721 = vmand %vm2401, %vm2657
        %vm2722 = vmand %vm2402, %vm2658
        %vm2723 = vmand %vm2403, %vm2659
        %vm2724 = vmand %vm2404, %vm2660
        %vm2725 = vmand %vm2405, %vm2661
        %vm2726 = vmand %vm2406, %vm2662
        %vm2727 = vmand %vm2407, %vm2663
        %vm2728 = vmand %vm2408, %vm2664
        %vm2729 = vmand %vm2409, %vm2665
        %vm2730 = vmand %vm2410, %vm2666
        %vm2731 = vmand %vm2411, %vm2667
        %vm2732 = vmand %vm2412, %vm2668
        %vm2733 = vmand %vm2413, %vm2669
        %vm2734 = vmand %vm2414, %vm2670
        %vm2735 = vmand %vm2415, %vm2671
        %v2736 = vsel %vm2672, 1.0, 0.0
        %v2737 = vsel %vm2673, 1.0, 0.0
        %v2738 = vsel %vm2674, 1.0, 0.0
        %v2739 = vsel %vm2675, 1.0, 0.0
        %v2740 = vsel %vm2676, 1.0, 0.0
        %v2741 = vsel %vm2677, 1.0, 0.0
        %v2742 = vsel %vm2678, 1.0, 0.0
        %v2743 = vsel %vm2679, 1.0, 0.0
        %v2744 = vsel %vm2680, 1.0, 0.0
        %v2745 = vsel %vm2681, 1.0, 0.0
        %v2746 = vsel %vm2682, 1.0, 0.0
        %v2747 = vsel %vm2683, 1.0, 0.0
        %v2748 = vsel %vm2684, 1.0, 0.0
        %v2749 = vsel %vm2685, 1.0, 0.0
        %v2750 = vsel %vm2686, 1.0, 0.0
        %v2751 = vsel %vm2687, 1.0, 0.0
        %v2752 = vsel %vm2688, 1.0, 0.0
        %v2753 = vsel %vm2689, 1.0, 0.0
        %v2754 = vsel %vm2690, 1.0, 0.0
        %v2755 = vsel %vm2691, 1.0, 0.0
        %v2756 = vsel %vm2692, 1.0, 0.0
        %v2757 = vsel %vm2693, 1.0, 0.0
        %v2758 = vsel %vm2694, 1.0, 0.0
        %v2759 = vsel %vm2695, 1.0, 0.0
        %v2760 = vsel %vm2696, 1.0, 0.0
        %v2761 = vsel %vm2697, 1.0, 0.0
        %v2762 = vsel %vm2698, 1.0, 0.0
        %v2763 = vsel %vm2699, 1.0, 0.0
        %v2764 = vsel %vm2700, 1.0, 0.0
        %v2765 = vsel %vm2701, 1.0, 0.0
        %v2766 = vsel %vm2702, 1.0, 0.0
        %v2767 = vsel %vm2703, 1.0, 0.0
        %v2768 = vsel %vm2704, 1.0, 0.0
        %v2769 = vsel %vm2705, 1.0, 0.0
        %v2770 = vsel %vm2706, 1.0, 0.0
        %v2771 = vsel %vm2707, 1.0, 0.0
        %v2772 = vsel %vm2708, 1.0, 0.0
        %v2773 = vsel %vm2709, 1.0, 0.0
        %v2774 = vsel %vm2710, 1.0, 0.0
        %v2775 = vsel %vm2711, 1.0, 0.0
        %v2776 = vsel %vm2712, 1.0, 0.0
        %v2777 = vsel %vm2713, 1.0, 0.0
        %v2778 = vsel %vm2714, 1.0, 0.0
        %v2779 = vsel %vm2715, 1.0, 0.0
        %v2780 = vsel %vm2716, 1.0, 0.0
        %v2781 = vsel %vm2717, 1.0, 0.0
        %v2782 = vsel %vm2718, 1.0, 0.0
        %v2783 = vsel %vm2719, 1.0, 0.0
        %v2784 = vsel %vm2720, 1.0, 0.0
        %v2785 = vsel %vm2721, 1.0, 0.0
        %v2786 = vsel %vm2722, 1.0, 0.0
        %v2787 = vsel %vm2723, 1.0, 0.0
        %v2788 = vsel %vm2724, 1.0, 0.0
        %v2789 = vsel %vm2725, 1.0, 0.0
        %v2790 = vsel %vm2726, 1.0, 0.0
        %v2791 = vsel %vm2727, 1.0, 0.0
        %v2792 = vsel %vm2728, 1.0, 0.0
        %v2793 = vsel %vm2729, 1.0, 0.0
        %v2794 = vsel %vm2730, 1.0, 0.0
        %v2795 = vsel %vm2731, 1.0, 0.0
        %v2796 = vsel %vm2732, 1.0, 0.0
        %v2797 = vsel %vm2733, 1.0, 0.0
        %v2798 = vsel %vm2734, 1.0, 0.0
        %v2799 = vsel %vm2735, 1.0, 0.0
        %v2800 = vld [vmem:[#allocation3] sm:$0xff]
        %v2801 = vld [vmem:[#allocation3 + $0x8] sm:$0xff]
        %v2802 = vld [vmem:[#allocation3 + $0x10] sm:$0xff]
        %v2803 = vld [vmem:[#allocation3 + $0x18] sm:$0xff]
        %v2804 = vld [vmem:[#allocation3 + $0x20] sm:$0xff]
        %v2805 = vld [vmem:[#allocation3 + $0x28] sm:$0xff]
        %v2806 = vld [vmem:[#allocation3 + $0x30] sm:$0xff]
        %v2807 = vld [vmem:[#allocation3 + $0x38] sm:$0xff]
        %v2808 = vld [vmem:[#allocation3 + $0x40] sm:$0xff]
        %v2809 = vld [vmem:[#allocation3 + $0x48] sm:$0xff]
        %v2810 = vld [vmem:[#allocation3 + $0x50] sm:$0xff]
        %v2811 = vld [vmem:[#allocation3 + $0x58] sm:$0xff]
        %v2812 = vld [vmem:[#allocation3 + $0x60] sm:$0xff]
        %v2813 = vld [vmem:[#allocation3 + $0x68] sm:$0xff]
        %v2814 = vld [vmem:[#allocation3 + $0x70] sm:$0xff]
        %v2815 = vld [vmem:[#allocation3 + $0x78] sm:$0xff]
        %v2816 = vld [vmem:[#allocation3 + $0x80] sm:$0xff]
        %v2817 = vld [vmem:[#allocation3 + $0x88] sm:$0xff]
        %v2818 = vld [vmem:[#allocation3 + $0x90] sm:$0xff]
        %v2819 = vld [vmem:[#allocation3 + $0x98] sm:$0xff]
        %v2820 = vld [vmem:[#allocation3 + $0xa0] sm:$0xff]
        %v2821 = vld [vmem:[#allocation3 + $0xa8] sm:$0xff]
        %v2822 = vld [vmem:[#allocation3 + $0xb0] sm:$0xff]
        %v2823 = vld [vmem:[#allocation3 + $0xb8] sm:$0xff]
        %v2824 = vld [vmem:[#allocation3 + $0xc0] sm:$0xff]
        %v2825 = vld [vmem:[#allocation3 + $0xc8] sm:$0xff]
        %v2826 = vld [vmem:[#allocation3 + $0xd0] sm:$0xff]
        %v2827 = vld [vmem:[#allocation3 + $0xd8] sm:$0xff]
        %v2828 = vld [vmem:[#allocation3 + $0xe0] sm:$0xff]
        %v2829 = vld [vmem:[#allocation3 + $0xe8] sm:$0xff]
        %v2830 = vld [vmem:[#allocation3 + $0xf0] sm:$0xff]
        %v2831 = vld [vmem:[#allocation3 + $0xf8] sm:$0xff]
        %v2832 = vadd.f32 %v2736, %v2737
        %2833 = vadd.xlane.f32.xlu0 %v2832
        %v2834 = vpop.xlane.xlu0 %2833
        %v2835 = vadd.f32 %v2738, %v2739
        %2836 = vadd.xlane.f32.xlu0 %v2835
        %v2837 = vpop.xlane.xlu0 %2836
        %v2838 = vadd.f32 %v2740, %v2741
        %2839 = vadd.xlane.f32.xlu0 %v2838
        %v2840 = vpop.xlane.xlu0 %2839
        %v2841 = vadd.f32 %v2742, %v2743
        %2842 = vadd.xlane.f32.xlu0 %v2841
        %v2843 = vpop.xlane.xlu0 %2842
        %v2844 = vadd.f32 %v2744, %v2745
        %2845 = vadd.xlane.f32.xlu0 %v2844
        %v2846 = vpop.xlane.xlu0 %2845
        %v2847 = vadd.f32 %v2746, %v2747
        %2848 = vadd.xlane.f32.xlu0 %v2847
        %v2849 = vpop.xlane.xlu0 %2848
        %v2850 = vadd.f32 %v2748, %v2749
        %2851 = vadd.xlane.f32.xlu0 %v2850
        %v2852 = vpop.xlane.xlu0 %2851
        %v2853 = vadd.f32 %v2750, %v2751
        %2854 = vadd.xlane.f32.xlu0 %v2853
        %v2855 = vpop.xlane.xlu0 %2854
        %v2856 = vadd.f32 %v2752, %v2753
        %2857 = vadd.xlane.f32.xlu0 %v2856
        %v2858 = vpop.xlane.xlu0 %2857
        %v2859 = vadd.f32 %v2754, %v2755
        %2860 = vadd.xlane.f32.xlu0 %v2859
        %v2861 = vpop.xlane.xlu0 %2860
        %v2862 = vadd.f32 %v2756, %v2757
        %2863 = vadd.xlane.f32.xlu0 %v2862
        %v2864 = vpop.xlane.xlu0 %2863
        %v2865 = vadd.f32 %v2758, %v2759
        %2866 = vadd.xlane.f32.xlu0 %v2865
        %v2867 = vpop.xlane.xlu0 %2866
        %v2868 = vadd.f32 %v2760, %v2761
        %2869 = vadd.xlane.f32.xlu0 %v2868
        %v2870 = vpop.xlane.xlu0 %2869
        %v2871 = vadd.f32 %v2762, %v2763
        %2872 = vadd.xlane.f32.xlu0 %v2871
        %v2873 = vpop.xlane.xlu0 %2872
        %v2874 = vadd.f32 %v2764, %v2765
        %2875 = vadd.xlane.f32.xlu0 %v2874
        %v2876 = vpop.xlane.xlu0 %2875
        %v2877 = vadd.f32 %v2766, %v2767
        %2878 = vadd.xlane.f32.xlu0 %v2877
        %v2879 = vpop.xlane.xlu0 %2878
        %v2880 = vadd.f32 %v2768, %v2769
        %2881 = vadd.xlane.f32.xlu0 %v2880
        %v2882 = vpop.xlane.xlu0 %2881
        %v2883 = vadd.f32 %v2770, %v2771
        %2884 = vadd.xlane.f32.xlu0 %v2883
        %v2885 = vpop.xlane.xlu0 %2884
        %v2886 = vadd.f32 %v2772, %v2773
        %2887 = vadd.xlane.f32.xlu0 %v2886
        %v2888 = vpop.xlane.xlu0 %2887
        %v2889 = vadd.f32 %v2774, %v2775
        %2890 = vadd.xlane.f32.xlu0 %v2889
        %v2891 = vpop.xlane.xlu0 %2890
        %v2892 = vadd.f32 %v2776, %v2777
        %2893 = vadd.xlane.f32.xlu0 %v2892
        %v2894 = vpop.xlane.xlu0 %2893
        %v2895 = vadd.f32 %v2778, %v2779
        %2896 = vadd.xlane.f32.xlu0 %v2895
        %v2897 = vpop.xlane.xlu0 %2896
        %v2898 = vadd.f32 %v2780, %v2781
        %2899 = vadd.xlane.f32.xlu0 %v2898
        %v2900 = vpop.xlane.xlu0 %2899
        %v2901 = vadd.f32 %v2782, %v2783
        %2902 = vadd.xlane.f32.xlu0 %v2901
        %v2903 = vpop.xlane.xlu0 %2902
        %v2904 = vadd.f32 %v2784, %v2785
        %2905 = vadd.xlane.f32.xlu0 %v2904
        %v2906 = vpop.xlane.xlu0 %2905
        %v2907 = vadd.f32 %v2786, %v2787
        %2908 = vadd.xlane.f32.xlu0 %v2907
        %v2909 = vpop.xlane.xlu0 %2908
        %v2910 = vadd.f32 %v2788, %v2789
        %2911 = vadd.xlane.f32.xlu0 %v2910
        %v2912 = vpop.xlane.xlu0 %2911
        %v2913 = vadd.f32 %v2790, %v2791
        %2914 = vadd.xlane.f32.xlu0 %v2913
        %v2915 = vpop.xlane.xlu0 %2914
        %v2916 = vadd.f32 %v2792, %v2793
        %2917 = vadd.xlane.f32.xlu0 %v2916
        %v2918 = vpop.xlane.xlu0 %2917
        %v2919 = vadd.f32 %v2794, %v2795
        %2920 = vadd.xlane.f32.xlu0 %v2919
        %v2921 = vpop.xlane.xlu0 %2920
        %v2922 = vadd.f32 %v2796, %v2797
        %2923 = vadd.xlane.f32.xlu0 %v2922
        %v2924 = vpop.xlane.xlu0 %2923
        %v2925 = vadd.f32 %v2798, %v2799
        %2926 = vadd.xlane.f32.xlu0 %v2925
        %v2927 = vpop.xlane.xlu0 %2926
        %v2928 = vadd.f32 %v2800, %v2834
        %v2929 = vadd.f32 %v2801, %v2837
        %v2930 = vadd.f32 %v2802, %v2840
        %v2931 = vadd.f32 %v2803, %v2843
        %v2932 = vadd.f32 %v2804, %v2846
        %v2933 = vadd.f32 %v2805, %v2849
        %v2934 = vadd.f32 %v2806, %v2852
        %v2935 = vadd.f32 %v2807, %v2855
        %v2936 = vadd.f32 %v2808, %v2858
        %v2937 = vadd.f32 %v2809, %v2861
        %v2938 = vadd.f32 %v2810, %v2864
        %v2939 = vadd.f32 %v2811, %v2867
        %v2940 = vadd.f32 %v2812, %v2870
        %v2941 = vadd.f32 %v2813, %v2873
        %v2942 = vadd.f32 %v2814, %v2876
        %v2943 = vadd.f32 %v2815, %v2879
        %v2944 = vadd.f32 %v2816, %v2882
        %v2945 = vadd.f32 %v2817, %v2885
        %v2946 = vadd.f32 %v2818, %v2888
        %v2947 = vadd.f32 %v2819, %v2891
        %v2948 = vadd.f32 %v2820, %v2894
        %v2949 = vadd.f32 %v2821, %v2897
        %v2950 = vadd.f32 %v2822, %v2900
        %v2951 = vadd.f32 %v2823, %v2903
        %v2952 = vadd.f32 %v2824, %v2906
        %v2953 = vadd.f32 %v2825, %v2909
        %v2954 = vadd.f32 %v2826, %v2912
        %v2955 = vadd.f32 %v2827, %v2915
        %v2956 = vadd.f32 %v2828, %v2918
        %v2957 = vadd.f32 %v2829, %v2921
        %v2958 = vadd.f32 %v2830, %v2924
        %v2959 = vadd.f32 %v2831, %v2927
        %vm2960 = vcmask 7168
        %2961 = vst.msk [vmem:[#allocation3] sm:$0xff] %vm2960, %v2928
        %2962 = vst.msk [vmem:[#allocation3 + $0x8] sm:$0xff] %vm2960, %v2929
        %2963 = vst.msk [vmem:[#allocation3 + $0x10] sm:$0xff] %vm2960, %v2930
        %2964 = vst.msk [vmem:[#allocation3 + $0x18] sm:$0xff] %vm2960, %v2931
        %2965 = vst.msk [vmem:[#allocation3 + $0x20] sm:$0xff] %vm2960, %v2932
        %2966 = vst.msk [vmem:[#allocation3 + $0x28] sm:$0xff] %vm2960, %v2933
        %2967 = vst.msk [vmem:[#allocation3 + $0x30] sm:$0xff] %vm2960, %v2934
        %2968 = vst.msk [vmem:[#allocation3 + $0x38] sm:$0xff] %vm2960, %v2935
        %2969 = vst.msk [vmem:[#allocation3 + $0x40] sm:$0xff] %vm2960, %v2936
        %2970 = vst.msk [vmem:[#allocation3 + $0x48] sm:$0xff] %vm2960, %v2937
        %2971 = vst.msk [vmem:[#allocation3 + $0x50] sm:$0xff] %vm2960, %v2938
        %2972 = vst.msk [vmem:[#allocation3 + $0x58] sm:$0xff] %vm2960, %v2939
        %2973 = vst.msk [vmem:[#allocation3 + $0x60] sm:$0xff] %vm2960, %v2940
        %2974 = vst.msk [vmem:[#allocation3 + $0x68] sm:$0xff] %vm2960, %v2941
        %2975 = vst.msk [vmem:[#allocation3 + $0x70] sm:$0xff] %vm2960, %v2942
        %2976 = vst.msk [vmem:[#allocation3 + $0x78] sm:$0xff] %vm2960, %v2943
        %2977 = vst.msk [vmem:[#allocation3 + $0x80] sm:$0xff] %vm2960, %v2944
        %2978 = vst.msk [vmem:[#allocation3 + $0x88] sm:$0xff] %vm2960, %v2945
        %2979 = vst.msk [vmem:[#allocation3 + $0x90] sm:$0xff] %vm2960, %v2946
        %2980 = vst.msk [vmem:[#allocation3 + $0x98] sm:$0xff] %vm2960, %v2947
        %2981 = vst.msk [vmem:[#allocation3 + $0xa0] sm:$0xff] %vm2960, %v2948
        %2982 = vst.msk [vmem:[#allocation3 + $0xa8] sm:$0xff] %vm2960, %v2949
        %2983 = vst.msk [vmem:[#allocation3 + $0xb0] sm:$0xff] %vm2960, %v2950
        %2984 = vst.msk [vmem:[#allocation3 + $0xb8] sm:$0xff] %vm2960, %v2951
        %2985 = vst.msk [vmem:[#allocation3 + $0xc0] sm:$0xff] %vm2960, %v2952
        %2986 = vst.msk [vmem:[#allocation3 + $0xc8] sm:$0xff] %vm2960, %v2953
        %2987 = vst.msk [vmem:[#allocation3 + $0xd0] sm:$0xff] %vm2960, %v2954
        %2988 = vst.msk [vmem:[#allocation3 + $0xd8] sm:$0xff] %vm2960, %v2955
        %2989 = vst.msk [vmem:[#allocation3 + $0xe0] sm:$0xff] %vm2960, %v2956
        %2990 = vst.msk [vmem:[#allocation3 + $0xe8] sm:$0xff] %vm2960, %v2957
        %2991 = vst.msk [vmem:[#allocation3 + $0xf0] sm:$0xff] %vm2960, %v2958
        %2992 = vst.msk [vmem:[#allocation3 + $0xf8] sm:$0xff] %vm2960, %v2959
        %v2993 = vld [vmem:[#allocation2] sm:$0xff]
        %v2994 = vld [vmem:[#allocation2 + $0x8] sm:$0xff]
        %v2995 = vld [vmem:[#allocation2 + $0x10] sm:$0xff]
        %v2996 = vld [vmem:[#allocation2 + $0x18] sm:$0xff]
        %v2997 = vld [vmem:[#allocation2 + $0x20] sm:$0xff]
        %v2998 = vld [vmem:[#allocation2 + $0x28] sm:$0xff]
        %v2999 = vld [vmem:[#allocation2 + $0x30] sm:$0xff]
        %v3000 = vld [vmem:[#allocation2 + $0x38] sm:$0xff]
        %v3001 = vld [vmem:[#allocation2 + $0x40] sm:$0xff]
        %v3002 = vld [vmem:[#allocation2 + $0x48] sm:$0xff]
        %v3003 = vld [vmem:[#allocation2 + $0x50] sm:$0xff]
        %v3004 = vld [vmem:[#allocation2 + $0x58] sm:$0xff]
        %v3005 = vld [vmem:[#allocation2 + $0x60] sm:$0xff]
        %v3006 = vld [vmem:[#allocation2 + $0x68] sm:$0xff]
        %v3007 = vld [vmem:[#allocation2 + $0x70] sm:$0xff]
        %v3008 = vld [vmem:[#allocation2 + $0x78] sm:$0xff]
        %v3009 = vld [vmem:[#allocation2 + $0x80] sm:$0xff]
        %v3010 = vld [vmem:[#allocation2 + $0x88] sm:$0xff]
        %v3011 = vld [vmem:[#allocation2 + $0x90] sm:$0xff]
        %v3012 = vld [vmem:[#allocation2 + $0x98] sm:$0xff]
        %v3013 = vld [vmem:[#allocation2 + $0xa0] sm:$0xff]
        %v3014 = vld [vmem:[#allocation2 + $0xa8] sm:$0xff]
        %v3015 = vld [vmem:[#allocation2 + $0xb0] sm:$0xff]
        %v3016 = vld [vmem:[#allocation2 + $0xb8] sm:$0xff]
        %v3017 = vld [vmem:[#allocation2 + $0xc0] sm:$0xff]
        %v3018 = vld [vmem:[#allocation2 + $0xc8] sm:$0xff]
        %v3019 = vld [vmem:[#allocation2 + $0xd0] sm:$0xff]
        %v3020 = vld [vmem:[#allocation2 + $0xd8] sm:$0xff]
        %v3021 = vld [vmem:[#allocation2 + $0xe0] sm:$0xff]
        %v3022 = vld [vmem:[#allocation2 + $0xe8] sm:$0xff]
        %v3023 = vld [vmem:[#allocation2 + $0xf0] sm:$0xff]
        %v3024 = vld [vmem:[#allocation2 + $0xf8] sm:$0xff]
        %v3025 = vpack.c.bf16 %v2738, %v2736
        %v3026 = vpack.c.bf16 %v2739, %v2737
        %v3027 = vpack.c.bf16 %v2742, %v2740
        %v3028 = vpack.c.bf16 %v2743, %v2741
        %v3029 = vpack.c.bf16 %v2746, %v2744
        %v3030 = vpack.c.bf16 %v2747, %v2745
        %v3031 = vpack.c.bf16 %v2750, %v2748
        %v3032 = vpack.c.bf16 %v2751, %v2749
        %v3033 = vpack.c.bf16 %v2754, %v2752
        %v3034 = vpack.c.bf16 %v2755, %v2753
        %v3035 = vpack.c.bf16 %v2758, %v2756
        %v3036 = vpack.c.bf16 %v2759, %v2757
        %v3037 = vpack.c.bf16 %v2762, %v2760
        %v3038 = vpack.c.bf16 %v2763, %v2761
        %v3039 = vpack.c.bf16 %v2766, %v2764
        %v3040 = vpack.c.bf16 %v2767, %v2765
        %v3041 = vpack.c.bf16 %v2770, %v2768
        %v3042 = vpack.c.bf16 %v2771, %v2769
        %v3043 = vpack.c.bf16 %v2774, %v2772
        %v3044 = vpack.c.bf16 %v2775, %v2773
        %v3045 = vpack.c.bf16 %v2778, %v2776
        %v3046 = vpack.c.bf16 %v2779, %v2777
        %v3047 = vpack.c.bf16 %v2782, %v2780
        %v3048 = vpack.c.bf16 %v2783, %v2781
        %v3049 = vpack.c.bf16 %v2786, %v2784
        %v3050 = vpack.c.bf16 %v2787, %v2785
        %v3051 = vpack.c.bf16 %v2790, %v2788
        %v3052 = vpack.c.bf16 %v2791, %v2789
        %v3053 = vpack.c.bf16 %v2794, %v2792
        %v3054 = vpack.c.bf16 %v2795, %v2793
        %v3055 = vpack.c.bf16 %v2798, %v2796
        %v3056 = vpack.c.bf16 %v2799, %v2797
        %3057 = vmatprep.subr.bf16.mxu0 0
        %3058 = vmatpush1.bf16.msra.mxu0 %v1755
        %3059 = vmatprep.subr.bf16.mxu0 0
        %3060 = vmatpush1.bf16.msra.mxu0 %v1754
        %3061 = vmatprep.subr.bf16.mxu0 0
        %3062 = vmatpush1.bf16.msra.mxu0 %v1753
        %3063 = vmatprep.subr.bf16.mxu0 0
        %3064 = vmatpush1.bf16.msra.mxu0 %v1752
        %3065 = vmatprep.subr.bf16.mxu0 0
        %3066 = vmatpush1.bf16.msra.mxu0 %v1751
        %3067 = vmatprep.subr.bf16.mxu0 0
        %3068 = vmatpush1.bf16.msra.mxu0 %v1750
        %3069 = vmatprep.subr.bf16.mxu0 0
        %3070 = vmatpush1.bf16.msra.mxu0 %v1749
        %3071 = vmatprep.subr.bf16.mxu0 0
        %3072 = vmatpush1.bf16.msra.mxu0 %v1748
        %3073 = vmatprep.subr.bf16.mxu0 0
        %3074 = vmatpush2.bf16.msra.mxu0 %v1763
        %3075 = vmatprep.subr.bf16.mxu0 0
        %3076 = vmatpush2.bf16.msra.mxu0 %v1762
        %3077 = vmatprep.subr.bf16.mxu0 0
        %3078 = vmatpush2.bf16.msra.mxu0 %v1761
        %3079 = vmatprep.subr.bf16.mxu0 0
        %3080 = vmatpush2.bf16.msra.mxu0 %v1760
        %3081 = vmatprep.subr.bf16.mxu0 0
        %3082 = vmatpush2.bf16.msra.mxu0 %v1759
        %3083 = vmatprep.subr.bf16.mxu0 0
        %3084 = vmatpush2.bf16.msra.mxu0 %v1758
        %3085 = vmatprep.subr.bf16.mxu0 0
        %3086 = vmatpush2.bf16.msra.mxu0 %v1757
        %3087 = vmatprep.subr.bf16.mxu0 0
        %3088 = vmatpush2.bf16.msra.mxu0 %v1756
        %3089 = vmatprep.mubr.bf16.mxu0 %v3026
        %3090 = vmatmul.mubr.bf16.gmra.mxu0 %v3025
        %v3091 = vpop.f32.mrf.mxu0
        %v3092 = vadd.f32 0.0, %v3091
        %v3093 = vpop.f32.mrf.mxu0
        %v3094 = vpop.f32.mrf.mxu0
        %v3095 = vadd.f32 0.0, %v3094
        %v3096 = vpop.f32.mrf.mxu0
        %3097 = vmatprep.mubr.bf16.mxu0 %v3028
        %3098 = vmatmul.mubr.bf16.gmra.mxu0 %v3027
        %v3099 = vpop.f32.mrf.mxu0
        %v3100 = vadd.f32 0.0, %v3099
        %v3101 = vpop.f32.mrf.mxu0
        %v3102 = vpop.f32.mrf.mxu0
        %v3103 = vadd.f32 0.0, %v3102
        %v3104 = vpop.f32.mrf.mxu0
        %3105 = vmatprep.mubr.bf16.mxu0 %v3030
        %3106 = vmatmul.mubr.bf16.gmra.mxu0 %v3029
        %v3107 = vpop.f32.mrf.mxu0
        %v3108 = vadd.f32 0.0, %v3107
        %v3109 = vpop.f32.mrf.mxu0
        %v3110 = vpop.f32.mrf.mxu0
        %v3111 = vadd.f32 0.0, %v3110
        %v3112 = vpop.f32.mrf.mxu0
        %3113 = vmatprep.mubr.bf16.mxu0 %v3032
        %3114 = vmatmul.mubr.bf16.gmra.mxu0 %v3031
        %v3115 = vpop.f32.mrf.mxu0
        %v3116 = vadd.f32 0.0, %v3115
        %v3117 = vpop.f32.mrf.mxu0
        %v3118 = vpop.f32.mrf.mxu0
        %v3119 = vadd.f32 0.0, %v3118
        %v3120 = vpop.f32.mrf.mxu0
        %3121 = vmatprep.mubr.bf16.mxu0 %v3034
        %3122 = vmatmul.mubr.bf16.gmra.mxu0 %v3033
        %v3123 = vpop.f32.mrf.mxu0
        %v3124 = vadd.f32 0.0, %v3123
        %v3125 = vpop.f32.mrf.mxu0
        %v3126 = vpop.f32.mrf.mxu0
        %v3127 = vadd.f32 0.0, %v3126
        %v3128 = vpop.f32.mrf.mxu0
        %3129 = vmatprep.mubr.bf16.mxu0 %v3036
        %3130 = vmatmul.mubr.bf16.gmra.mxu0 %v3035
        %v3131 = vpop.f32.mrf.mxu0
        %v3132 = vadd.f32 0.0, %v3131
        %v3133 = vpop.f32.mrf.mxu0
        %v3134 = vpop.f32.mrf.mxu0
        %v3135 = vadd.f32 0.0, %v3134
        %v3136 = vpop.f32.mrf.mxu0
        %3137 = vmatprep.mubr.bf16.mxu0 %v3038
        %3138 = vmatmul.mubr.bf16.gmra.mxu0 %v3037
        %v3139 = vpop.f32.mrf.mxu0
        %v3140 = vadd.f32 0.0, %v3139
        %v3141 = vpop.f32.mrf.mxu0
        %v3142 = vpop.f32.mrf.mxu0
        %v3143 = vadd.f32 0.0, %v3142
        %v3144 = vpop.f32.mrf.mxu0
        %3145 = vmatprep.mubr.bf16.mxu0 %v3040
        %3146 = vmatmul.mubr.bf16.gmra.mxu0 %v3039
        %v3147 = vpop.f32.mrf.mxu0
        %v3148 = vadd.f32 0.0, %v3147
        %v3149 = vpop.f32.mrf.mxu0
        %v3150 = vpop.f32.mrf.mxu0
        %v3151 = vadd.f32 0.0, %v3150
        %v3152 = vpop.f32.mrf.mxu0
        %3153 = vmatprep.mubr.bf16.mxu0 %v3042
        %3154 = vmatmul.mubr.bf16.gmra.mxu0 %v3041
        %v3155 = vpop.f32.mrf.mxu0
        %v3156 = vadd.f32 0.0, %v3155
        %v3157 = vpop.f32.mrf.mxu0
        %v3158 = vpop.f32.mrf.mxu0
        %v3159 = vadd.f32 0.0, %v3158
        %v3160 = vpop.f32.mrf.mxu0
        %3161 = vmatprep.mubr.bf16.mxu0 %v3044
        %3162 = vmatmul.mubr.bf16.gmra.mxu0 %v3043
        %v3163 = vpop.f32.mrf.mxu0
        %v3164 = vadd.f32 0.0, %v3163
        %v3165 = vpop.f32.mrf.mxu0
        %v3166 = vpop.f32.mrf.mxu0
        %v3167 = vadd.f32 0.0, %v3166
        %v3168 = vpop.f32.mrf.mxu0
        %3169 = vmatprep.mubr.bf16.mxu0 %v3046
        %3170 = vmatmul.mubr.bf16.gmra.mxu0 %v3045
        %v3171 = vpop.f32.mrf.mxu0
        %v3172 = vadd.f32 0.0, %v3171
        %v3173 = vpop.f32.mrf.mxu0
        %v3174 = vpop.f32.mrf.mxu0
        %v3175 = vadd.f32 0.0, %v3174
        %v3176 = vpop.f32.mrf.mxu0
        %3177 = vmatprep.mubr.bf16.mxu0 %v3048
        %3178 = vmatmul.mubr.bf16.gmra.mxu0 %v3047
        %v3179 = vpop.f32.mrf.mxu0
        %v3180 = vadd.f32 0.0, %v3179
        %v3181 = vpop.f32.mrf.mxu0
        %v3182 = vpop.f32.mrf.mxu0
        %v3183 = vadd.f32 0.0, %v3182
        %v3184 = vpop.f32.mrf.mxu0
        %3185 = vmatprep.mubr.bf16.mxu0 %v3050
        %3186 = vmatmul.mubr.bf16.gmra.mxu0 %v3049
        %v3187 = vpop.f32.mrf.mxu0
        %v3188 = vadd.f32 0.0, %v3187
        %v3189 = vpop.f32.mrf.mxu0
        %v3190 = vpop.f32.mrf.mxu0
        %v3191 = vadd.f32 0.0, %v3190
        %v3192 = vpop.f32.mrf.mxu0
        %3193 = vmatprep.mubr.bf16.mxu0 %v3052
        %3194 = vmatmul.mubr.bf16.gmra.mxu0 %v3051
        %v3195 = vpop.f32.mrf.mxu0
        %v3196 = vadd.f32 0.0, %v3195
        %v3197 = vpop.f32.mrf.mxu0
        %v3198 = vpop.f32.mrf.mxu0
        %v3199 = vadd.f32 0.0, %v3198
        %v3200 = vpop.f32.mrf.mxu0
        %3201 = vmatprep.mubr.bf16.mxu0 %v3054
        %3202 = vmatmul.mubr.bf16.gmra.mxu0 %v3053
        %v3203 = vpop.f32.mrf.mxu0
        %v3204 = vadd.f32 0.0, %v3203
        %v3205 = vpop.f32.mrf.mxu0
        %v3206 = vpop.f32.mrf.mxu0
        %v3207 = vadd.f32 0.0, %v3206
        %v3208 = vpop.f32.mrf.mxu0
        %3209 = vmatprep.mubr.bf16.mxu0 %v3056
        %3210 = vmatmul.mubr.bf16.gmra.mxu0 %v3055
        %v3211 = vpop.f32.mrf.mxu0
        %v3212 = vadd.f32 0.0, %v3211
        %v3213 = vpop.f32.mrf.mxu0
        %v3214 = vpop.f32.mrf.mxu0
        %v3215 = vadd.f32 0.0, %v3214
        %v3216 = vpop.f32.mrf.mxu0
        %3217 = vdwg.mxu0
        %v3218 = vadd.f32 %v2993, %v3092
        %v3219 = vadd.f32 %v2994, %v3095
        %v3220 = vadd.f32 %v2995, %v3100
        %v3221 = vadd.f32 %v2996, %v3103
        %v3222 = vadd.f32 %v2997, %v3108
        %v3223 = vadd.f32 %v2998, %v3111
        %v3224 = vadd.f32 %v2999, %v3116
        %v3225 = vadd.f32 %v3000, %v3119
        %v3226 = vadd.f32 %v3001, %v3124
        %v3227 = vadd.f32 %v3002, %v3127
        %v3228 = vadd.f32 %v3003, %v3132
        %v3229 = vadd.f32 %v3004, %v3135
        %v3230 = vadd.f32 %v3005, %v3140
        %v3231 = vadd.f32 %v3006, %v3143
        %v3232 = vadd.f32 %v3007, %v3148
        %v3233 = vadd.f32 %v3008, %v3151
        %v3234 = vadd.f32 %v3009, %v3156
        %v3235 = vadd.f32 %v3010, %v3159
        %v3236 = vadd.f32 %v3011, %v3164
        %v3237 = vadd.f32 %v3012, %v3167
        %v3238 = vadd.f32 %v3013, %v3172
        %v3239 = vadd.f32 %v3014, %v3175
        %v3240 = vadd.f32 %v3015, %v3180
        %v3241 = vadd.f32 %v3016, %v3183
        %v3242 = vadd.f32 %v3017, %v3188
        %v3243 = vadd.f32 %v3018, %v3191
        %v3244 = vadd.f32 %v3019, %v3196
        %v3245 = vadd.f32 %v3020, %v3199
        %v3246 = vadd.f32 %v3021, %v3204
        %v3247 = vadd.f32 %v3022, %v3207
        %v3248 = vadd.f32 %v3023, %v3212
        %v3249 = vadd.f32 %v3024, %v3215
        %3250 = vst.msk [vmem:[#allocation2] sm:$0xff] %vm1534, %v3218
        %3251 = vst.msk [vmem:[#allocation2 + $0x8] sm:$0xff] %vm1534, %v3219
        %3252 = vst.msk [vmem:[#allocation2 + $0x10] sm:$0xff] %vm1534, %v3220
        %3253 = vst.msk [vmem:[#allocation2 + $0x18] sm:$0xff] %vm1534, %v3221
        %3254 = vst.msk [vmem:[#allocation2 + $0x20] sm:$0xff] %vm1534, %v3222
        %3255 = vst.msk [vmem:[#allocation2 + $0x28] sm:$0xff] %vm1534, %v3223
        %3256 = vst.msk [vmem:[#allocation2 + $0x30] sm:$0xff] %vm1534, %v3224
        %3257 = vst.msk [vmem:[#allocation2 + $0x38] sm:$0xff] %vm1534, %v3225
        %3258 = vst.msk [vmem:[#allocation2 + $0x40] sm:$0xff] %vm1534, %v3226
        %3259 = vst.msk [vmem:[#allocation2 + $0x48] sm:$0xff] %vm1534, %v3227
        %3260 = vst.msk [vmem:[#allocation2 + $0x50] sm:$0xff] %vm1534, %v3228
        %3261 = vst.msk [vmem:[#allocation2 + $0x58] sm:$0xff] %vm1534, %v3229
        %3262 = vst.msk [vmem:[#allocation2 + $0x60] sm:$0xff] %vm1534, %v3230
        %3263 = vst.msk [vmem:[#allocation2 + $0x68] sm:$0xff] %vm1534, %v3231
        %3264 = vst.msk [vmem:[#allocation2 + $0x70] sm:$0xff] %vm1534, %v3232
        %3265 = vst.msk [vmem:[#allocation2 + $0x78] sm:$0xff] %vm1534, %v3233
        %3266 = vst.msk [vmem:[#allocation2 + $0x80] sm:$0xff] %vm1534, %v3234
        %3267 = vst.msk [vmem:[#allocation2 + $0x88] sm:$0xff] %vm1534, %v3235
        %3268 = vst.msk [vmem:[#allocation2 + $0x90] sm:$0xff] %vm1534, %v3236
        %3269 = vst.msk [vmem:[#allocation2 + $0x98] sm:$0xff] %vm1534, %v3237
        %3270 = vst.msk [vmem:[#allocation2 + $0xa0] sm:$0xff] %vm1534, %v3238
        %3271 = vst.msk [vmem:[#allocation2 + $0xa8] sm:$0xff] %vm1534, %v3239
        %3272 = vst.msk [vmem:[#allocation2 + $0xb0] sm:$0xff] %vm1534, %v3240
        %3273 = vst.msk [vmem:[#allocation2 + $0xb8] sm:$0xff] %vm1534, %v3241
        %3274 = vst.msk [vmem:[#allocation2 + $0xc0] sm:$0xff] %vm1534, %v3242
        %3275 = vst.msk [vmem:[#allocation2 + $0xc8] sm:$0xff] %vm1534, %v3243
        %3276 = vst.msk [vmem:[#allocation2 + $0xd0] sm:$0xff] %vm1534, %v3244
        %3277 = vst.msk [vmem:[#allocation2 + $0xd8] sm:$0xff] %vm1534, %v3245
        %3278 = vst.msk [vmem:[#allocation2 + $0xe0] sm:$0xff] %vm1534, %v3246
        %3279 = vst.msk [vmem:[#allocation2 + $0xe8] sm:$0xff] %vm1534, %v3247
        %3280 = vst.msk [vmem:[#allocation2 + $0xf0] sm:$0xff] %vm1534, %v3248
        %3281 = vst.msk [vmem:[#allocation2 + $0xf8] sm:$0xff] %vm1534, %v3249
      $region100: #{tpu_custom_call.1} parent=91 // pred_fallthru
        _
      %p3282 = scmp.eq.s32.totalorder %s34, 2
      // Predicated region
      $region101: #{tpu_custom_call.1} parent=91 // pred_check
        %p3283 = pneg %p3282
      $region102: #{tpu_custom_call.1} parent=91 // pred_check_branch
        %3285 = sbr.rel (%p3283) target = $region104
      $region103: #{tpu_custom_call.1} parent=91 // pred_region
        %v3286 = vld [vmem:[#allocation2] sm:$0xff]
        %v3287 = vld [vmem:[#allocation2 + $0x8] sm:$0xff]
        %v3288 = vld [vmem:[#allocation2 + $0x10] sm:$0xff]
        %v3289 = vld [vmem:[#allocation2 + $0x18] sm:$0xff]
        %v3290 = vld [vmem:[#allocation2 + $0x20] sm:$0xff]
        %v3291 = vld [vmem:[#allocation2 + $0x28] sm:$0xff]
        %v3292 = vld [vmem:[#allocation2 + $0x30] sm:$0xff]
        %v3293 = vld [vmem:[#allocation2 + $0x38] sm:$0xff]
        %v3294 = vld [vmem:[#allocation2 + $0x40] sm:$0xff]
        %v3295 = vld [vmem:[#allocation2 + $0x48] sm:$0xff]
        %v3296 = vld [vmem:[#allocation2 + $0x50] sm:$0xff]
        %v3297 = vld [vmem:[#allocation2 + $0x58] sm:$0xff]
        %v3298 = vld [vmem:[#allocation2 + $0x60] sm:$0xff]
        %v3299 = vld [vmem:[#allocation2 + $0x68] sm:$0xff]
        %v3300 = vld [vmem:[#allocation2 + $0x70] sm:$0xff]
        %v3301 = vld [vmem:[#allocation2 + $0x78] sm:$0xff]
        %v3302 = vld [vmem:[#allocation2 + $0x80] sm:$0xff]
        %v3303 = vld [vmem:[#allocation2 + $0x88] sm:$0xff]
        %v3304 = vld [vmem:[#allocation2 + $0x90] sm:$0xff]
        %v3305 = vld [vmem:[#allocation2 + $0x98] sm:$0xff]
        %v3306 = vld [vmem:[#allocation2 + $0xa0] sm:$0xff]
        %v3307 = vld [vmem:[#allocation2 + $0xa8] sm:$0xff]
        %v3308 = vld [vmem:[#allocation2 + $0xb0] sm:$0xff]
        %v3309 = vld [vmem:[#allocation2 + $0xb8] sm:$0xff]
        %v3310 = vld [vmem:[#allocation2 + $0xc0] sm:$0xff]
        %v3311 = vld [vmem:[#allocation2 + $0xc8] sm:$0xff]
        %v3312 = vld [vmem:[#allocation2 + $0xd0] sm:$0xff]
        %v3313 = vld [vmem:[#allocation2 + $0xd8] sm:$0xff]
        %v3314 = vld [vmem:[#allocation2 + $0xe0] sm:$0xff]
        %v3315 = vld [vmem:[#allocation2 + $0xe8] sm:$0xff]
        %v3316 = vld [vmem:[#allocation2 + $0xf0] sm:$0xff]
        %v3317 = vld [vmem:[#allocation2 + $0xf8] sm:$0xff]
        %v3318 = vld [vmem:[#allocation3] sm:$0xff]
        %v3319 = vld [vmem:[#allocation3 + $0x8] sm:$0xff]
        %v3320 = vld [vmem:[#allocation3 + $0x10] sm:$0xff]
        %v3321 = vld [vmem:[#allocation3 + $0x18] sm:$0xff]
        %v3322 = vld [vmem:[#allocation3 + $0x20] sm:$0xff]
        %v3323 = vld [vmem:[#allocation3 + $0x28] sm:$0xff]
        %v3324 = vld [vmem:[#allocation3 + $0x30] sm:$0xff]
        %v3325 = vld [vmem:[#allocation3 + $0x38] sm:$0xff]
        %v3326 = vld [vmem:[#allocation3 + $0x40] sm:$0xff]
        %v3327 = vld [vmem:[#allocation3 + $0x48] sm:$0xff]
        %v3328 = vld [vmem:[#allocation3 + $0x50] sm:$0xff]
        %v3329 = vld [vmem:[#allocation3 + $0x58] sm:$0xff]
        %v3330 = vld [vmem:[#allocation3 + $0x60] sm:$0xff]
        %v3331 = vld [vmem:[#allocation3 + $0x68] sm:$0xff]
        %v3332 = vld [vmem:[#allocation3 + $0x70] sm:$0xff]
        %v3333 = vld [vmem:[#allocation3 + $0x78] sm:$0xff]
        %v3334 = vld [vmem:[#allocation3 + $0x80] sm:$0xff]
        %v3335 = vld [vmem:[#allocation3 + $0x88] sm:$0xff]
        %v3336 = vld [vmem:[#allocation3 + $0x90] sm:$0xff]
        %v3337 = vld [vmem:[#allocation3 + $0x98] sm:$0xff]
        %v3338 = vld [vmem:[#allocation3 + $0xa0] sm:$0xff]
        %v3339 = vld [vmem:[#allocation3 + $0xa8] sm:$0xff]
        %v3340 = vld [vmem:[#allocation3 + $0xb0] sm:$0xff]
        %v3341 = vld [vmem:[#allocation3 + $0xb8] sm:$0xff]
        %v3342 = vld [vmem:[#allocation3 + $0xc0] sm:$0xff]
        %v3343 = vld [vmem:[#allocation3 + $0xc8] sm:$0xff]
        %v3344 = vld [vmem:[#allocation3 + $0xd0] sm:$0xff]
        %v3345 = vld [vmem:[#allocation3 + $0xd8] sm:$0xff]
        %v3346 = vld [vmem:[#allocation3 + $0xe0] sm:$0xff]
        %v3347 = vld [vmem:[#allocation3 + $0xe8] sm:$0xff]
        %v3348 = vld [vmem:[#allocation3 + $0xf0] sm:$0xff]
        %v3349 = vld [vmem:[#allocation3 + $0xf8] sm:$0xff]
        %v3350 = vmax.f32 %v3318, 1.0
        %v3351 = vmax.f32 %v3319, 1.0
        %v3352 = vmax.f32 %v3320, 1.0
        %v3353 = vmax.f32 %v3321, 1.0
        %v3354 = vmax.f32 %v3322, 1.0
        %v3355 = vmax.f32 %v3323, 1.0
        %v3356 = vmax.f32 %v3324, 1.0
        %v3357 = vmax.f32 %v3325, 1.0
        %v3358 = vmax.f32 %v3326, 1.0
        %v3359 = vmax.f32 %v3327, 1.0
        %v3360 = vmax.f32 %v3328, 1.0
        %v3361 = vmax.f32 %v3329, 1.0
        %v3362 = vmax.f32 %v3330, 1.0
        %v3363 = vmax.f32 %v3331, 1.0
        %v3364 = vmax.f32 %v3332, 1.0
        %v3365 = vmax.f32 %v3333, 1.0
        %v3366 = vmax.f32 %v3334, 1.0
        %v3367 = vmax.f32 %v3335, 1.0
        %v3368 = vmax.f32 %v3336, 1.0
        %v3369 = vmax.f32 %v3337, 1.0
        %v3370 = vmax.f32 %v3338, 1.0
        %v3371 = vmax.f32 %v3339, 1.0
        %v3372 = vmax.f32 %v3340, 1.0
        %v3373 = vmax.f32 %v3341, 1.0
        %v3374 = vmax.f32 %v3342, 1.0
        %v3375 = vmax.f32 %v3343, 1.0
        %v3376 = vmax.f32 %v3344, 1.0
        %v3377 = vmax.f32 %v3345, 1.0
        %v3378 = vmax.f32 %v3346, 1.0
        %v3379 = vmax.f32 %v3347, 1.0
        %v3380 = vmax.f32 %v3348, 1.0
        %v3381 = vmax.f32 %v3349, 1.0
        %3383 = vset.pattern.permute.xlu0 0
        %3384 = vperm.xlu0 %3383, %v3350
        %v3385 = vpop.permute.xlu0 %3384
        %3388 = vset.pattern.permute.xlu0 0
        %3389 = vperm.xlu0 %3388, %v3351
        %v3390 = vpop.permute.xlu0 %3389
        %3393 = vset.pattern.permute.xlu0 0
        %3394 = vperm.xlu0 %3393, %v3352
        %v3395 = vpop.permute.xlu0 %3394
        %3398 = vset.pattern.permute.xlu0 0
        %3399 = vperm.xlu0 %3398, %v3353
        %v3400 = vpop.permute.xlu0 %3399
        %3403 = vset.pattern.permute.xlu0 0
        %3404 = vperm.xlu0 %3403, %v3354
        %v3405 = vpop.permute.xlu0 %3404
        %3408 = vset.pattern.permute.xlu0 0
        %3409 = vperm.xlu0 %3408, %v3355
        %v3410 = vpop.permute.xlu0 %3409
        %3413 = vset.pattern.permute.xlu0 0
        %3414 = vperm.xlu0 %3413, %v3356
        %v3415 = vpop.permute.xlu0 %3414
        %3418 = vset.pattern.permute.xlu0 0
        %3419 = vperm.xlu0 %3418, %v3357
        %v3420 = vpop.permute.xlu0 %3419
        %3423 = vset.pattern.permute.xlu0 0
        %3424 = vperm.xlu0 %3423, %v3358
        %v3425 = vpop.permute.xlu0 %3424
        %3428 = vset.pattern.permute.xlu0 0
        %3429 = vperm.xlu0 %3428, %v3359
        %v3430 = vpop.permute.xlu0 %3429
        %3433 = vset.pattern.permute.xlu0 0
        %3434 = vperm.xlu0 %3433, %v3360
        %v3435 = vpop.permute.xlu0 %3434
        %3438 = vset.pattern.permute.xlu0 0
        %3439 = vperm.xlu0 %3438, %v3361
        %v3440 = vpop.permute.xlu0 %3439
        %3443 = vset.pattern.permute.xlu0 0
        %3444 = vperm.xlu0 %3443, %v3362
        %v3445 = vpop.permute.xlu0 %3444
        %3448 = vset.pattern.permute.xlu0 0
        %3449 = vperm.xlu0 %3448, %v3363
        %v3450 = vpop.permute.xlu0 %3449
        %3453 = vset.pattern.permute.xlu0 0
        %3454 = vperm.xlu0 %3453, %v3364
        %v3455 = vpop.permute.xlu0 %3454
        %3458 = vset.pattern.permute.xlu0 0
        %3459 = vperm.xlu0 %3458, %v3365
        %v3460 = vpop.permute.xlu0 %3459
        %3463 = vset.pattern.permute.xlu0 0
        %3464 = vperm.xlu0 %3463, %v3366
        %v3465 = vpop.permute.xlu0 %3464
        %3468 = vset.pattern.permute.xlu0 0
        %3469 = vperm.xlu0 %3468, %v3367
        %v3470 = vpop.permute.xlu0 %3469
        %3473 = vset.pattern.permute.xlu0 0
        %3474 = vperm.xlu0 %3473, %v3368
        %v3475 = vpop.permute.xlu0 %3474
        %3478 = vset.pattern.permute.xlu0 0
        %3479 = vperm.xlu0 %3478, %v3369
        %v3480 = vpop.permute.xlu0 %3479
        %3483 = vset.pattern.permute.xlu0 0
        %3484 = vperm.xlu0 %3483, %v3370
        %v3485 = vpop.permute.xlu0 %3484
        %3488 = vset.pattern.permute.xlu0 0
        %3489 = vperm.xlu0 %3488, %v3371
        %v3490 = vpop.permute.xlu0 %3489
        %3493 = vset.pattern.permute.xlu0 0
        %3494 = vperm.xlu0 %3493, %v3372
        %v3495 = vpop.permute.xlu0 %3494
        %3498 = vset.pattern.permute.xlu0 0
        %3499 = vperm.xlu0 %3498, %v3373
        %v3500 = vpop.permute.xlu0 %3499
        %3503 = vset.pattern.permute.xlu0 0
        %3504 = vperm.xlu0 %3503, %v3374
        %v3505 = vpop.permute.xlu0 %3504
        %3508 = vset.pattern.permute.xlu0 0
        %3509 = vperm.xlu0 %3508, %v3375
        %v3510 = vpop.permute.xlu0 %3509
        %3513 = vset.pattern.permute.xlu0 0
        %3514 = vperm.xlu0 %3513, %v3376
        %v3515 = vpop.permute.xlu0 %3514
        %3518 = vset.pattern.permute.xlu0 0
        %3519 = vperm.xlu0 %3518, %v3377
        %v3520 = vpop.permute.xlu0 %3519
        %3523 = vset.pattern.permute.xlu0 0
        %3524 = vperm.xlu0 %3523, %v3378
        %v3525 = vpop.permute.xlu0 %3524
        %3528 = vset.pattern.permute.xlu0 0
        %3529 = vperm.xlu0 %3528, %v3379
        %v3530 = vpop.permute.xlu0 %3529
        %3533 = vset.pattern.permute.xlu0 0
        %3534 = vperm.xlu0 %3533, %v3380
        %v3535 = vpop.permute.xlu0 %3534
        %3538 = vset.pattern.permute.xlu0 0
        %3539 = vperm.xlu0 %3538, %v3381
        %v3540 = vpop.permute.xlu0 %3539
        %v3542 = vrcp.pop %v3385
        %v3543 = vmul.f32 %v3286, %v3542
        %v3544 = vrcp.pop %v3390
        %v3545 = vmul.f32 %v3287, %v3544
        %v3546 = vrcp.pop %v3395
        %v3547 = vmul.f32 %v3288, %v3546
        %v3548 = vrcp.pop %v3400
        %v3549 = vmul.f32 %v3289, %v3548
        %v3550 = vrcp.pop %v3405
        %v3551 = vmul.f32 %v3290, %v3550
        %v3552 = vrcp.pop %v3410
        %v3553 = vmul.f32 %v3291, %v3552
        %v3554 = vrcp.pop %v3415
        %v3555 = vmul.f32 %v3292, %v3554
        %v3556 = vrcp.pop %v3420
        %v3557 = vmul.f32 %v3293, %v3556
        %v3558 = vrcp.pop %v3425
        %v3559 = vmul.f32 %v3294, %v3558
        %v3560 = vrcp.pop %v3430
        %v3561 = vmul.f32 %v3295, %v3560
        %v3562 = vrcp.pop %v3435
        %v3563 = vmul.f32 %v3296, %v3562
        %v3564 = vrcp.pop %v3440
        %v3565 = vmul.f32 %v3297, %v3564
        %v3566 = vrcp.pop %v3445
        %v3567 = vmul.f32 %v3298, %v3566
        %v3568 = vrcp.pop %v3450
        %v3569 = vmul.f32 %v3299, %v3568
        %v3570 = vrcp.pop %v3455
        %v3571 = vmul.f32 %v3300, %v3570
        %v3572 = vrcp.pop %v3460
        %v3573 = vmul.f32 %v3301, %v3572
        %v3574 = vrcp.pop %v3465
        %v3575 = vmul.f32 %v3302, %v3574
        %v3576 = vrcp.pop %v3470
        %v3577 = vmul.f32 %v3303, %v3576
        %v3578 = vrcp.pop %v3475
        %v3579 = vmul.f32 %v3304, %v3578
        %v3580 = vrcp.pop %v3480
        %v3581 = vmul.f32 %v3305, %v3580
        %v3582 = vrcp.pop %v3485
        %v3583 = vmul.f32 %v3306, %v3582
        %v3584 = vrcp.pop %v3490
        %v3585 = vmul.f32 %v3307, %v3584
        %v3586 = vrcp.pop %v3495
        %v3587 = vmul.f32 %v3308, %v3586
        %v3588 = vrcp.pop %v3500
        %v3589 = vmul.f32 %v3309, %v3588
        %v3590 = vrcp.pop %v3505
        %v3591 = vmul.f32 %v3310, %v3590
        %v3592 = vrcp.pop %v3510
        %v3593 = vmul.f32 %v3311, %v3592
        %v3594 = vrcp.pop %v3515
        %v3595 = vmul.f32 %v3312, %v3594
        %v3596 = vrcp.pop %v3520
        %v3597 = vmul.f32 %v3313, %v3596
        %v3598 = vrcp.pop %v3525
        %v3599 = vmul.f32 %v3314, %v3598
        %v3600 = vrcp.pop %v3530
        %v3601 = vmul.f32 %v3315, %v3600
        %v3602 = vrcp.pop %v3535
        %v3603 = vmul.f32 %v3316, %v3602
        %v3604 = vrcp.pop %v3540
        %v3605 = vmul.f32 %v3317, %v3604
        %v3606 = vld [vmem:[%s12] sm:$0x1]
        %v3608 = vlaneseq
        %v3609 = vshrl.u32 %v3608, 7
        %v3610 = vsub.s32 0, %v3609
        %v3611 = vrot.slane %v3606, %v3610
        %v3613 = vmul.f32 %v3543, %v3611
        %v3614 = vmul.f32 %v3545, %v3611
        %v3615 = vmul.f32 %v3547, %v3611
        %v3616 = vmul.f32 %v3549, %v3611
        %v3617 = vmul.f32 %v3551, %v3611
        %v3618 = vmul.f32 %v3553, %v3611
        %v3619 = vmul.f32 %v3555, %v3611
        %v3620 = vmul.f32 %v3557, %v3611
        %v3621 = vmul.f32 %v3559, %v3611
        %v3622 = vmul.f32 %v3561, %v3611
        %v3623 = vmul.f32 %v3563, %v3611
        %v3624 = vmul.f32 %v3565, %v3611
        %v3625 = vmul.f32 %v3567, %v3611
        %v3626 = vmul.f32 %v3569, %v3611
        %v3627 = vmul.f32 %v3571, %v3611
        %v3628 = vmul.f32 %v3573, %v3611
        %v3629 = vmul.f32 %v3575, %v3611
        %v3630 = vmul.f32 %v3577, %v3611
        %v3631 = vmul.f32 %v3579, %v3611
        %v3632 = vmul.f32 %v3581, %v3611
        %v3633 = vmul.f32 %v3583, %v3611
        %v3634 = vmul.f32 %v3585, %v3611
        %v3635 = vmul.f32 %v3587, %v3611
        %v3636 = vmul.f32 %v3589, %v3611
        %v3637 = vmul.f32 %v3591, %v3611
        %v3638 = vmul.f32 %v3593, %v3611
        %v3639 = vmul.f32 %v3595, %v3611
        %v3640 = vmul.f32 %v3597, %v3611
        %v3641 = vmul.f32 %v3599, %v3611
        %v3642 = vmul.f32 %v3601, %v3611
        %v3643 = vmul.f32 %v3603, %v3611
        %v3644 = vmul.f32 %v3605, %v3611
        %v3645 = vld [vmem:[%s13] sm:$0x1]
        %v3647 = vlaneseq
        %v3648 = vshrl.u32 %v3647, 7
        %v3649 = vsub.s32 0, %v3648
        %v3650 = vrot.slane %v3645, %v3649
        %v3652 = vadd.f32 %v3613, %v3650
        %v3653 = vadd.f32 %v3614, %v3650
        %v3654 = vadd.f32 %v3615, %v3650
        %v3655 = vadd.f32 %v3616, %v3650
        %v3656 = vadd.f32 %v3617, %v3650
        %v3657 = vadd.f32 %v3618, %v3650
        %v3658 = vadd.f32 %v3619, %v3650
        %v3659 = vadd.f32 %v3620, %v3650
        %v3660 = vadd.f32 %v3621, %v3650
        %v3661 = vadd.f32 %v3622, %v3650
        %v3662 = vadd.f32 %v3623, %v3650
        %v3663 = vadd.f32 %v3624, %v3650
        %v3664 = vadd.f32 %v3625, %v3650
        %v3665 = vadd.f32 %v3626, %v3650
        %v3666 = vadd.f32 %v3627, %v3650
        %v3667 = vadd.f32 %v3628, %v3650
        %v3668 = vadd.f32 %v3629, %v3650
        %v3669 = vadd.f32 %v3630, %v3650
        %v3670 = vadd.f32 %v3631, %v3650
        %v3671 = vadd.f32 %v3632, %v3650
        %v3672 = vadd.f32 %v3633, %v3650
        %v3673 = vadd.f32 %v3634, %v3650
        %v3674 = vadd.f32 %v3635, %v3650
        %v3675 = vadd.f32 %v3636, %v3650
        %v3676 = vadd.f32 %v3637, %v3650
        %v3677 = vadd.f32 %v3638, %v3650
        %v3678 = vadd.f32 %v3639, %v3650
        %v3679 = vadd.f32 %v3640, %v3650
        %v3680 = vadd.f32 %v3641, %v3650
        %v3681 = vadd.f32 %v3642, %v3650
        %v3682 = vadd.f32 %v3643, %v3650
        %v3683 = vadd.f32 %v3644, %v3650
        %vm3684 = vcmp.ge.f32.partialorder %v3652, 0.0
        %vm3685 = vcmp.ge.f32.partialorder %v3653, 0.0
        %vm3686 = vcmp.ge.f32.partialorder %v3654, 0.0
        %vm3687 = vcmp.ge.f32.partialorder %v3655, 0.0
        %vm3688 = vcmp.ge.f32.partialorder %v3656, 0.0
        %vm3689 = vcmp.ge.f32.partialorder %v3657, 0.0
        %vm3690 = vcmp.ge.f32.partialorder %v3658, 0.0
        %vm3691 = vcmp.ge.f32.partialorder %v3659, 0.0
        %vm3692 = vcmp.ge.f32.partialorder %v3660, 0.0
        %vm3693 = vcmp.ge.f32.partialorder %v3661, 0.0
        %vm3694 = vcmp.ge.f32.partialorder %v3662, 0.0
        %vm3695 = vcmp.ge.f32.partialorder %v3663, 0.0
        %vm3696 = vcmp.ge.f32.partialorder %v3664, 0.0
        %vm3697 = vcmp.ge.f32.partialorder %v3665, 0.0
        %vm3698 = vcmp.ge.f32.partialorder %v3666, 0.0
        %vm3699 = vcmp.ge.f32.partialorder %v3667, 0.0
        %vm3700 = vcmp.ge.f32.partialorder %v3668, 0.0
        %vm3701 = vcmp.ge.f32.partialorder %v3669, 0.0
        %vm3702 = vcmp.ge.f32.partialorder %v3670, 0.0
        %vm3703 = vcmp.ge.f32.partialorder %v3671, 0.0
        %vm3704 = vcmp.ge.f32.partialorder %v3672, 0.0
        %vm3705 = vcmp.ge.f32.partialorder %v3673, 0.0
        %vm3706 = vcmp.ge.f32.partialorder %v3674, 0.0
        %vm3707 = vcmp.ge.f32.partialorder %v3675, 0.0
        %vm3708 = vcmp.ge.f32.partialorder %v3676, 0.0
        %vm3709 = vcmp.ge.f32.partialorder %v3677, 0.0
        %vm3710 = vcmp.ge.f32.partialorder %v3678, 0.0
        %vm3711 = vcmp.ge.f32.partialorder %v3679, 0.0
        %vm3712 = vcmp.ge.f32.partialorder %v3680, 0.0
        %vm3713 = vcmp.ge.f32.partialorder %v3681, 0.0
        %vm3714 = vcmp.ge.f32.partialorder %v3682, 0.0
        %vm3715 = vcmp.ge.f32.partialorder %v3683, 0.0
        %v3716 = vmul.f32 %v3652, 0.1
        %v3717 = vmul.f32 %v3653, 0.1
        %v3718 = vmul.f32 %v3654, 0.1
        %v3719 = vmul.f32 %v3655, 0.1
        %v3720 = vmul.f32 %v3656, 0.1
        %v3721 = vmul.f32 %v3657, 0.1
        %v3722 = vmul.f32 %v3658, 0.1
        %v3723 = vmul.f32 %v3659, 0.1
        %v3724 = vmul.f32 %v3660, 0.1
        %v3725 = vmul.f32 %v3661, 0.1
        %v3726 = vmul.f32 %v3662, 0.1
        %v3727 = vmul.f32 %v3663, 0.1
        %v3728 = vmul.f32 %v3664, 0.1
        %v3729 = vmul.f32 %v3665, 0.1
        %v3730 = vmul.f32 %v3666, 0.1
        %v3731 = vmul.f32 %v3667, 0.1
        %v3732 = vmul.f32 %v3668, 0.1
        %v3733 = vmul.f32 %v3669, 0.1
        %v3734 = vmul.f32 %v3670, 0.1
        %v3735 = vmul.f32 %v3671, 0.1
        %v3736 = vmul.f32 %v3672, 0.1
        %v3737 = vmul.f32 %v3673, 0.1
        %v3738 = vmul.f32 %v3674, 0.1
        %v3739 = vmul.f32 %v3675, 0.1
        %v3740 = vmul.f32 %v3676, 0.1
        %v3741 = vmul.f32 %v3677, 0.1
        %v3742 = vmul.f32 %v3678, 0.1
        %v3743 = vmul.f32 %v3679, 0.1
        %v3744 = vmul.f32 %v3680, 0.1
        %v3745 = vmul.f32 %v3681, 0.1
        %v3746 = vmul.f32 %v3682, 0.1
        %v3747 = vmul.f32 %v3683, 0.1
        %v3748 = vsel %vm3684, %v3652, %v3716
        %v3749 = vsel %vm3685, %v3653, %v3717
        %v3750 = vsel %vm3686, %v3654, %v3718
        %v3751 = vsel %vm3687, %v3655, %v3719
        %v3752 = vsel %vm3688, %v3656, %v3720
        %v3753 = vsel %vm3689, %v3657, %v3721
        %v3754 = vsel %vm3690, %v3658, %v3722
        %v3755 = vsel %vm3691, %v3659, %v3723
        %v3756 = vsel %vm3692, %v3660, %v3724
        %v3757 = vsel %vm3693, %v3661, %v3725
        %v3758 = vsel %vm3694, %v3662, %v3726
        %v3759 = vsel %vm3695, %v3663, %v3727
        %v3760 = vsel %vm3696, %v3664, %v3728
        %v3761 = vsel %vm3697, %v3665, %v3729
        %v3762 = vsel %vm3698, %v3666, %v3730
        %v3763 = vsel %vm3699, %v3667, %v3731
        %v3764 = vsel %vm3700, %v3668, %v3732
        %v3765 = vsel %vm3701, %v3669, %v3733
        %v3766 = vsel %vm3702, %v3670, %v3734
        %v3767 = vsel %vm3703, %v3671, %v3735
        %v3768 = vsel %vm3704, %v3672, %v3736
        %v3769 = vsel %vm3705, %v3673, %v3737
        %v3770 = vsel %vm3706, %v3674, %v3738
        %v3771 = vsel %vm3707, %v3675, %v3739
        %v3772 = vsel %vm3708, %v3676, %v3740
        %v3773 = vsel %vm3709, %v3677, %v3741
        %v3774 = vsel %vm3710, %v3678, %v3742
        %v3775 = vsel %vm3711, %v3679, %v3743
        %v3776 = vsel %vm3712, %v3680, %v3744
        %v3777 = vsel %vm3713, %v3681, %v3745
        %v3778 = vsel %vm3714, %v3682, %v3746
        %v3779 = vsel %vm3715, %v3683, %v3747
        %v3780 = vpack.c.bf16 %v3749, %v3748
        %v3781 = vpack.c.bf16 %v3751, %v3750
        %v3782 = vpack.c.bf16 %v3753, %v3752
        %v3783 = vpack.c.bf16 %v3755, %v3754
        %v3784 = vpack.c.bf16 %v3757, %v3756
        %v3785 = vpack.c.bf16 %v3759, %v3758
        %v3786 = vpack.c.bf16 %v3761, %v3760
        %v3787 = vpack.c.bf16 %v3763, %v3762
        %v3788 = vpack.c.bf16 %v3765, %v3764
        %v3789 = vpack.c.bf16 %v3767, %v3766
        %v3790 = vpack.c.bf16 %v3769, %v3768
        %v3791 = vpack.c.bf16 %v3771, %v3770
        %v3792 = vpack.c.bf16 %v3773, %v3772
        %v3793 = vpack.c.bf16 %v3775, %v3774
        %v3794 = vpack.c.bf16 %v3777, %v3776
        %v3795 = vpack.c.bf16 %v3779, %v3778
        %v3796 = vld [vmem:[%s14] sm:$0xf]
        %v3797 = vld [vmem:[%s751] sm:$0xff]
        %v3798 = vld [vmem:[%s751 + $0x8] sm:$0xff]
        %v3799 = vld [vmem:[%s751 + $0x10] sm:$0xff]
        %v3800 = vld [vmem:[%s751 + $0x18] sm:$0xff]
        %v3801 = vld [vmem:[%s751 + $0x20] sm:$0xff]
        %v3802 = vld [vmem:[%s751 + $0x28] sm:$0xff]
        %v3803 = vld [vmem:[%s751 + $0x30] sm:$0xff]
        %v3804 = vld [vmem:[%s751 + $0x38] sm:$0xff]
        %v3805 = vld [vmem:[%s751 + $0x40] sm:$0xff]
        %v3806 = vld [vmem:[%s751 + $0x48] sm:$0xff]
        %v3807 = vld [vmem:[%s751 + $0x50] sm:$0xff]
        %v3808 = vld [vmem:[%s751 + $0x58] sm:$0xff]
        %v3809 = vld [vmem:[%s751 + $0x60] sm:$0xff]
        %v3810 = vld [vmem:[%s751 + $0x68] sm:$0xff]
        %v3811 = vld [vmem:[%s751 + $0x70] sm:$0xff]
        %v3812 = vld [vmem:[%s751 + $0x78] sm:$0xff]
        %v3813 = vld [vmem:[%s751 + $0x80] sm:$0xff]
        %v3814 = vld [vmem:[%s751 + $0x88] sm:$0xff]
        %v3815 = vld [vmem:[%s751 + $0x90] sm:$0xff]
        %v3816 = vld [vmem:[%s751 + $0x98] sm:$0xff]
        %v3817 = vld [vmem:[%s751 + $0xa0] sm:$0xff]
        %v3818 = vld [vmem:[%s751 + $0xa8] sm:$0xff]
        %v3819 = vld [vmem:[%s751 + $0xb0] sm:$0xff]
        %v3820 = vld [vmem:[%s751 + $0xb8] sm:$0xff]
        %v3821 = vld [vmem:[%s751 + $0xc0] sm:$0xff]
        %v3822 = vld [vmem:[%s751 + $0xc8] sm:$0xff]
        %v3823 = vld [vmem:[%s751 + $0xd0] sm:$0xff]
        %v3824 = vld [vmem:[%s751 + $0xd8] sm:$0xff]
        %v3825 = vld [vmem:[%s751 + $0xe0] sm:$0xff]
        %v3826 = vld [vmem:[%s751 + $0xe8] sm:$0xff]
        %v3827 = vld [vmem:[%s751 + $0xf0] sm:$0xff]
        %v3828 = vld [vmem:[%s751 + $0xf8] sm:$0xff]
        %v3829 = vld [vmem:[%s15] sm:$0x1]
        %v3831 = vlaneseq
        %v3832 = vshrl.u32 %v3831, 7
        %v3833 = vsub.s32 0, %v3832
        %v3834 = vrot.slane %v3829, %v3833
        %v3836 = vmul.f32 %v3797, %v3834
        %v3837 = vmul.f32 %v3798, %v3834
        %v3838 = vmul.f32 %v3799, %v3834
        %v3839 = vmul.f32 %v3800, %v3834
        %v3840 = vmul.f32 %v3801, %v3834
        %v3841 = vmul.f32 %v3802, %v3834
        %v3842 = vmul.f32 %v3803, %v3834
        %v3843 = vmul.f32 %v3804, %v3834
        %v3844 = vmul.f32 %v3805, %v3834
        %v3845 = vmul.f32 %v3806, %v3834
        %v3846 = vmul.f32 %v3807, %v3834
        %v3847 = vmul.f32 %v3808, %v3834
        %v3848 = vmul.f32 %v3809, %v3834
        %v3849 = vmul.f32 %v3810, %v3834
        %v3850 = vmul.f32 %v3811, %v3834
        %v3851 = vmul.f32 %v3812, %v3834
        %v3852 = vmul.f32 %v3813, %v3834
        %v3853 = vmul.f32 %v3814, %v3834
        %v3854 = vmul.f32 %v3815, %v3834
        %v3855 = vmul.f32 %v3816, %v3834
        %v3856 = vmul.f32 %v3817, %v3834
        %v3857 = vmul.f32 %v3818, %v3834
        %v3858 = vmul.f32 %v3819, %v3834
        %v3859 = vmul.f32 %v3820, %v3834
        %v3860 = vmul.f32 %v3821, %v3834
        %v3861 = vmul.f32 %v3822, %v3834
        %v3862 = vmul.f32 %v3823, %v3834
        %v3863 = vmul.f32 %v3824, %v3834
        %v3864 = vmul.f32 %v3825, %v3834
        %v3865 = vmul.f32 %v3826, %v3834
        %v3866 = vmul.f32 %v3827, %v3834
        %v3867 = vmul.f32 %v3828, %v3834
        %v3868 = vld [vmem:[%s16] sm:$0x1]
        %v3870 = vlaneseq
        %v3871 = vshrl.u32 %v3870, 7
        %v3872 = vsub.s32 0, %v3871
        %v3873 = vrot.slane %v3868, %v3872
        %v3875 = vadd.f32 %v3836, %v3873
        %v3876 = vadd.f32 %v3837, %v3873
        %v3877 = vadd.f32 %v3838, %v3873
        %v3878 = vadd.f32 %v3839, %v3873
        %v3879 = vadd.f32 %v3840, %v3873
        %v3880 = vadd.f32 %v3841, %v3873
        %v3881 = vadd.f32 %v3842, %v3873
        %v3882 = vadd.f32 %v3843, %v3873
        %v3883 = vadd.f32 %v3844, %v3873
        %v3884 = vadd.f32 %v3845, %v3873
        %v3885 = vadd.f32 %v3846, %v3873
        %v3886 = vadd.f32 %v3847, %v3873
        %v3887 = vadd.f32 %v3848, %v3873
        %v3888 = vadd.f32 %v3849, %v3873
        %v3889 = vadd.f32 %v3850, %v3873
        %v3890 = vadd.f32 %v3851, %v3873
        %v3891 = vadd.f32 %v3852, %v3873
        %v3892 = vadd.f32 %v3853, %v3873
        %v3893 = vadd.f32 %v3854, %v3873
        %v3894 = vadd.f32 %v3855, %v3873
        %v3895 = vadd.f32 %v3856, %v3873
        %v3896 = vadd.f32 %v3857, %v3873
        %v3897 = vadd.f32 %v3858, %v3873
        %v3898 = vadd.f32 %v3859, %v3873
        %v3899 = vadd.f32 %v3860, %v3873
        %v3900 = vadd.f32 %v3861, %v3873
        %v3901 = vadd.f32 %v3862, %v3873
        %v3902 = vadd.f32 %v3863, %v3873
        %v3903 = vadd.f32 %v3864, %v3873
        %v3904 = vadd.f32 %v3865, %v3873
        %v3905 = vadd.f32 %v3866, %v3873
        %v3906 = vadd.f32 %v3867, %v3873
        %vm3907 = vcmp.ge.f32.partialorder %v3875, 0.0
        %vm3908 = vcmp.ge.f32.partialorder %v3876, 0.0
        %vm3909 = vcmp.ge.f32.partialorder %v3877, 0.0
        %vm3910 = vcmp.ge.f32.partialorder %v3878, 0.0
        %vm3911 = vcmp.ge.f32.partialorder %v3879, 0.0
        %vm3912 = vcmp.ge.f32.partialorder %v3880, 0.0
        %vm3913 = vcmp.ge.f32.partialorder %v3881, 0.0
        %vm3914 = vcmp.ge.f32.partialorder %v3882, 0.0
        %vm3915 = vcmp.ge.f32.partialorder %v3883, 0.0
        %vm3916 = vcmp.ge.f32.partialorder %v3884, 0.0
        %vm3917 = vcmp.ge.f32.partialorder %v3885, 0.0
        %vm3918 = vcmp.ge.f32.partialorder %v3886, 0.0
        %vm3919 = vcmp.ge.f32.partialorder %v3887, 0.0
        %vm3920 = vcmp.ge.f32.partialorder %v3888, 0.0
        %vm3921 = vcmp.ge.f32.partialorder %v3889, 0.0
        %vm3922 = vcmp.ge.f32.partialorder %v3890, 0.0
        %vm3923 = vcmp.ge.f32.partialorder %v3891, 0.0
        %vm3924 = vcmp.ge.f32.partialorder %v3892, 0.0
        %vm3925 = vcmp.ge.f32.partialorder %v3893, 0.0
        %vm3926 = vcmp.ge.f32.partialorder %v3894, 0.0
        %vm3927 = vcmp.ge.f32.partialorder %v3895, 0.0
        %vm3928 = vcmp.ge.f32.partialorder %v3896, 0.0
        %vm3929 = vcmp.ge.f32.partialorder %v3897, 0.0
        %vm3930 = vcmp.ge.f32.partialorder %v3898, 0.0
        %vm3931 = vcmp.ge.f32.partialorder %v3899, 0.0
        %vm3932 = vcmp.ge.f32.partialorder %v3900, 0.0
        %vm3933 = vcmp.ge.f32.partialorder %v3901, 0.0
        %vm3934 = vcmp.ge.f32.partialorder %v3902, 0.0
        %vm3935 = vcmp.ge.f32.partialorder %v3903, 0.0
        %vm3936 = vcmp.ge.f32.partialorder %v3904, 0.0
        %vm3937 = vcmp.ge.f32.partialorder %v3905, 0.0
        %vm3938 = vcmp.ge.f32.partialorder %v3906, 0.0
        %v3939 = vmul.f32 %v3875, 0.1
        %v3940 = vmul.f32 %v3876, 0.1
        %v3941 = vmul.f32 %v3877, 0.1
        %v3942 = vmul.f32 %v3878, 0.1
        %v3943 = vmul.f32 %v3879, 0.1
        %v3944 = vmul.f32 %v3880, 0.1
        %v3945 = vmul.f32 %v3881, 0.1
        %v3946 = vmul.f32 %v3882, 0.1
        %v3947 = vmul.f32 %v3883, 0.1
        %v3948 = vmul.f32 %v3884, 0.1
        %v3949 = vmul.f32 %v3885, 0.1
        %v3950 = vmul.f32 %v3886, 0.1
        %v3951 = vmul.f32 %v3887, 0.1
        %v3952 = vmul.f32 %v3888, 0.1
        %v3953 = vmul.f32 %v3889, 0.1
        %v3954 = vmul.f32 %v3890, 0.1
        %v3955 = vmul.f32 %v3891, 0.1
        %v3956 = vmul.f32 %v3892, 0.1
        %v3957 = vmul.f32 %v3893, 0.1
        %v3958 = vmul.f32 %v3894, 0.1
        %v3959 = vmul.f32 %v3895, 0.1
        %v3960 = vmul.f32 %v3896, 0.1
        %v3961 = vmul.f32 %v3897, 0.1
        %v3962 = vmul.f32 %v3898, 0.1
        %v3963 = vmul.f32 %v3899, 0.1
        %v3964 = vmul.f32 %v3900, 0.1
        %v3965 = vmul.f32 %v3901, 0.1
        %v3966 = vmul.f32 %v3902, 0.1
        %v3967 = vmul.f32 %v3903, 0.1
        %v3968 = vmul.f32 %v3904, 0.1
        %v3969 = vmul.f32 %v3905, 0.1
        %v3970 = vmul.f32 %v3906, 0.1
        %v3971 = vsel %vm3907, %v3875, %v3939
        %v3972 = vsel %vm3908, %v3876, %v3940
        %v3973 = vsel %vm3909, %v3877, %v3941
        %v3974 = vsel %vm3910, %v3878, %v3942
        %v3975 = vsel %vm3911, %v3879, %v3943
        %v3976 = vsel %vm3912, %v3880, %v3944
        %v3977 = vsel %vm3913, %v3881, %v3945
        %v3978 = vsel %vm3914, %v3882, %v3946
        %v3979 = vsel %vm3915, %v3883, %v3947
        %v3980 = vsel %vm3916, %v3884, %v3948
        %v3981 = vsel %vm3917, %v3885, %v3949
        %v3982 = vsel %vm3918, %v3886, %v3950
        %v3983 = vsel %vm3919, %v3887, %v3951
        %v3984 = vsel %vm3920, %v3888, %v3952
        %v3985 = vsel %vm3921, %v3889, %v3953
        %v3986 = vsel %vm3922, %v3890, %v3954
        %v3987 = vsel %vm3923, %v3891, %v3955
        %v3988 = vsel %vm3924, %v3892, %v3956
        %v3989 = vsel %vm3925, %v3893, %v3957
        %v3990 = vsel %vm3926, %v3894, %v3958
        %v3991 = vsel %vm3927, %v3895, %v3959
        %v3992 = vsel %vm3928, %v3896, %v3960
        %v3993 = vsel %vm3929, %v3897, %v3961
        %v3994 = vsel %vm3930, %v3898, %v3962
        %v3995 = vsel %vm3931, %v3899, %v3963
        %v3996 = vsel %vm3932, %v3900, %v3964
        %v3997 = vsel %vm3933, %v3901, %v3965
        %v3998 = vsel %vm3934, %v3902, %v3966
        %v3999 = vsel %vm3935, %v3903, %v3967
        %v4000 = vsel %vm3936, %v3904, %v3968
        %v4001 = vsel %vm3937, %v3905, %v3969
        %v4002 = vsel %vm3938, %v3906, %v3970
        %v4003 = vpack.c.bf16 %v3972, %v3971
        %v4004 = vpack.c.bf16 %v3974, %v3973
        %v4005 = vpack.c.bf16 %v3976, %v3975
        %v4006 = vpack.c.bf16 %v3978, %v3977
        %v4007 = vpack.c.bf16 %v3980, %v3979
        %v4008 = vpack.c.bf16 %v3982, %v3981
        %v4009 = vpack.c.bf16 %v3984, %v3983
        %v4010 = vpack.c.bf16 %v3986, %v3985
        %v4011 = vpack.c.bf16 %v3988, %v3987
        %v4012 = vpack.c.bf16 %v3990, %v3989
        %v4013 = vpack.c.bf16 %v3992, %v3991
        %v4014 = vpack.c.bf16 %v3994, %v3993
        %v4015 = vpack.c.bf16 %v3996, %v3995
        %v4016 = vpack.c.bf16 %v3998, %v3997
        %v4017 = vpack.c.bf16 %v4000, %v3999
        %v4018 = vpack.c.bf16 %v4002, %v4001
        %v4019 = vld [vmem:[%s17] sm:$0xf]
        %v4020 = vld [vmem:[%s17 + $0x4] sm:$0xf]
        %v4023 = vunpack.c.l.b16 %v4019
        %v4024 = vunpack.c.l.b16 %v4020
        %v4025 = vpack.c.b16 %v4024, %v4023
        %vm4027 = vcmask 130048
        %v4029 = vsel %vm4027, %v4003, 0
        %v4032 = vsel %vm4027, %v4004, 0
        %v4035 = vsel %vm4027, %v4005, 0
        %v4038 = vsel %vm4027, %v4006, 0
        %v4041 = vsel %vm4027, %v4007, 0
        %v4044 = vsel %vm4027, %v4008, 0
        %v4047 = vsel %vm4027, %v4009, 0
        %v4050 = vsel %vm4027, %v4010, 0
        %v4053 = vsel %vm4027, %v4011, 0
        %v4056 = vsel %vm4027, %v4012, 0
        %v4059 = vsel %vm4027, %v4013, 0
        %v4062 = vsel %vm4027, %v4014, 0
        %v4065 = vsel %vm4027, %v4015, 0
        %v4068 = vsel %vm4027, %v4016, 0
        %v4071 = vsel %vm4027, %v4017, 0
        %v4074 = vsel %vm4027, %v4018, 0
        %4076 = vmatprep.subr.bf16.mxu0 0
        %4077 = vmatpush1.bf16.msra.mxu0 0
        %4078 = vmatprep.subr.bf16.mxu0 0
        %4079 = vmatpush1.bf16.msra.mxu0 0
        %4080 = vmatprep.subr.bf16.mxu0 0
        %4081 = vmatpush1.bf16.msra.mxu0 0
        %4082 = vmatprep.subr.bf16.mxu0 0
        %4083 = vmatpush1.bf16.msra.mxu0 0
        %4084 = vmatprep.subr.bf16.mxu0 0
        %4085 = vmatpush1.bf16.msra.mxu0 0
        %4086 = vmatprep.subr.bf16.mxu0 0
        %4087 = vmatpush1.bf16.msra.mxu0 0
        %4088 = vmatprep.subr.bf16.mxu0 0
        %4089 = vmatpush1.bf16.msra.mxu0 0
        %4090 = vmatprep.subr.bf16.mxu0 0
        %4091 = vmatpush1.bf16.msra.mxu0 %v4025
        %4092 = vmatprep.subr.bf16.mxu0 0
        %4093 = vmatpush2.bf16.msra.mxu0 0
        %4094 = vmatprep.subr.bf16.mxu0 0
        %4095 = vmatpush2.bf16.msra.mxu0 0
        %4096 = vmatprep.subr.bf16.mxu0 0
        %4097 = vmatpush2.bf16.msra.mxu0 0
        %4098 = vmatprep.subr.bf16.mxu0 0
        %4099 = vmatpush2.bf16.msra.mxu0 0
        %4100 = vmatprep.subr.bf16.mxu0 0
        %4101 = vmatpush2.bf16.msra.mxu0 0
        %4102 = vmatprep.subr.bf16.mxu0 0
        %4103 = vmatpush2.bf16.msra.mxu0 0
        %4104 = vmatprep.subr.bf16.mxu0 0
        %4105 = vmatpush2.bf16.msra.mxu0 0
        %4106 = vmatprep.subr.bf16.mxu0 0
        %4107 = vmatpush2.bf16.msra.mxu0 0
        %4108 = vmatprep.mubr.bf16.mxu0 0
        %4109 = vmatmul.mubr.bf16.gmra.mxu0 %v4029
        %v4110 = vpop.f32.mrf.mxu0
        %v4111 = vadd.f32 0.0, %v4110
        %v4112 = vpop.f32.mrf.mxu0
        %v4113 = vpop.f32.mrf.mxu0
        %v4114 = vadd.f32 0.0, %v4113
        %v4115 = vpop.f32.mrf.mxu0
        %4116 = vmatprep.mubr.bf16.mxu0 0
        %4117 = vmatmul.mubr.bf16.gmra.mxu0 %v4032
        %v4118 = vpop.f32.mrf.mxu0
        %v4119 = vadd.f32 0.0, %v4118
        %v4120 = vpop.f32.mrf.mxu0
        %v4121 = vpop.f32.mrf.mxu0
        %v4122 = vadd.f32 0.0, %v4121
        %v4123 = vpop.f32.mrf.mxu0
        %4124 = vmatprep.mubr.bf16.mxu0 0
        %4125 = vmatmul.mubr.bf16.gmra.mxu0 %v4035
        %v4126 = vpop.f32.mrf.mxu0
        %v4127 = vadd.f32 0.0, %v4126
        %v4128 = vpop.f32.mrf.mxu0
        %v4129 = vpop.f32.mrf.mxu0
        %v4130 = vadd.f32 0.0, %v4129
        %v4131 = vpop.f32.mrf.mxu0
        %4132 = vmatprep.mubr.bf16.mxu0 0
        %4133 = vmatmul.mubr.bf16.gmra.mxu0 %v4038
        %v4134 = vpop.f32.mrf.mxu0
        %v4135 = vadd.f32 0.0, %v4134
        %v4136 = vpop.f32.mrf.mxu0
        %v4137 = vpop.f32.mrf.mxu0
        %v4138 = vadd.f32 0.0, %v4137
        %v4139 = vpop.f32.mrf.mxu0
        %4140 = vmatprep.mubr.bf16.mxu0 0
        %4141 = vmatmul.mubr.bf16.gmra.mxu0 %v4041
        %v4142 = vpop.f32.mrf.mxu0
        %v4143 = vadd.f32 0.0, %v4142
        %v4144 = vpop.f32.mrf.mxu0
        %v4145 = vpop.f32.mrf.mxu0
        %v4146 = vadd.f32 0.0, %v4145
        %v4147 = vpop.f32.mrf.mxu0
        %4148 = vmatprep.mubr.bf16.mxu0 0
        %4149 = vmatmul.mubr.bf16.gmra.mxu0 %v4044
        %v4150 = vpop.f32.mrf.mxu0
        %v4151 = vadd.f32 0.0, %v4150
        %v4152 = vpop.f32.mrf.mxu0
        %v4153 = vpop.f32.mrf.mxu0
        %v4154 = vadd.f32 0.0, %v4153
        %v4155 = vpop.f32.mrf.mxu0
        %4156 = vmatprep.mubr.bf16.mxu0 0
        %4157 = vmatmul.mubr.bf16.gmra.mxu0 %v4047
        %v4158 = vpop.f32.mrf.mxu0
        %v4159 = vadd.f32 0.0, %v4158
        %v4160 = vpop.f32.mrf.mxu0
        %v4161 = vpop.f32.mrf.mxu0
        %v4162 = vadd.f32 0.0, %v4161
        %v4163 = vpop.f32.mrf.mxu0
        %4164 = vmatprep.mubr.bf16.mxu0 0
        %4165 = vmatmul.mubr.bf16.gmra.mxu0 %v4050
        %v4166 = vpop.f32.mrf.mxu0
        %v4167 = vadd.f32 0.0, %v4166
        %v4168 = vpop.f32.mrf.mxu0
        %v4169 = vpop.f32.mrf.mxu0
        %v4170 = vadd.f32 0.0, %v4169
        %v4171 = vpop.f32.mrf.mxu0
        %4172 = vmatprep.mubr.bf16.mxu0 0
        %4173 = vmatmul.mubr.bf16.gmra.mxu0 %v4053
        %v4174 = vpop.f32.mrf.mxu0
        %v4175 = vadd.f32 0.0, %v4174
        %v4176 = vpop.f32.mrf.mxu0
        %v4177 = vpop.f32.mrf.mxu0
        %v4178 = vadd.f32 0.0, %v4177
        %v4179 = vpop.f32.mrf.mxu0
        %4180 = vmatprep.mubr.bf16.mxu0 0
        %4181 = vmatmul.mubr.bf16.gmra.mxu0 %v4056
        %v4182 = vpop.f32.mrf.mxu0
        %v4183 = vadd.f32 0.0, %v4182
        %v4184 = vpop.f32.mrf.mxu0
        %v4185 = vpop.f32.mrf.mxu0
        %v4186 = vadd.f32 0.0, %v4185
        %v4187 = vpop.f32.mrf.mxu0
        %4188 = vmatprep.mubr.bf16.mxu0 0
        %4189 = vmatmul.mubr.bf16.gmra.mxu0 %v4059
        %v4190 = vpop.f32.mrf.mxu0
        %v4191 = vadd.f32 0.0, %v4190
        %v4192 = vpop.f32.mrf.mxu0
        %v4193 = vpop.f32.mrf.mxu0
        %v4194 = vadd.f32 0.0, %v4193
        %v4195 = vpop.f32.mrf.mxu0
        %4196 = vmatprep.mubr.bf16.mxu0 0
        %4197 = vmatmul.mubr.bf16.gmra.mxu0 %v4062
        %v4198 = vpop.f32.mrf.mxu0
        %v4199 = vadd.f32 0.0, %v4198
        %v4200 = vpop.f32.mrf.mxu0
        %v4201 = vpop.f32.mrf.mxu0
        %v4202 = vadd.f32 0.0, %v4201
        %v4203 = vpop.f32.mrf.mxu0
        %4204 = vmatprep.mubr.bf16.mxu0 0
        %4205 = vmatmul.mubr.bf16.gmra.mxu0 %v4065
        %v4206 = vpop.f32.mrf.mxu0
        %v4207 = vadd.f32 0.0, %v4206
        %v4208 = vpop.f32.mrf.mxu0
        %v4209 = vpop.f32.mrf.mxu0
        %v4210 = vadd.f32 0.0, %v4209
        %v4211 = vpop.f32.mrf.mxu0
        %4212 = vmatprep.mubr.bf16.mxu0 0
        %4213 = vmatmul.mubr.bf16.gmra.mxu0 %v4068
        %v4214 = vpop.f32.mrf.mxu0
        %v4215 = vadd.f32 0.0, %v4214
        %v4216 = vpop.f32.mrf.mxu0
        %v4217 = vpop.f32.mrf.mxu0
        %v4218 = vadd.f32 0.0, %v4217
        %v4219 = vpop.f32.mrf.mxu0
        %4220 = vmatprep.mubr.bf16.mxu0 0
        %4221 = vmatmul.mubr.bf16.gmra.mxu0 %v4071
        %v4222 = vpop.f32.mrf.mxu0
        %v4223 = vadd.f32 0.0, %v4222
        %v4224 = vpop.f32.mrf.mxu0
        %v4225 = vpop.f32.mrf.mxu0
        %v4226 = vadd.f32 0.0, %v4225
        %v4227 = vpop.f32.mrf.mxu0
        %4228 = vmatprep.mubr.bf16.mxu0 0
        %4229 = vmatmul.mubr.bf16.gmra.mxu0 %v4074
        %v4230 = vpop.f32.mrf.mxu0
        %v4231 = vadd.f32 0.0, %v4230
        %v4232 = vpop.f32.mrf.mxu0
        %v4233 = vpop.f32.mrf.mxu0
        %v4234 = vadd.f32 0.0, %v4233
        %v4235 = vpop.f32.mrf.mxu0
        %4236 = vdwg.mxu0
        %vm4237 = vcmask 64512
        %v4239 = vsel %vm4237, %v3780, 0
        %v4242 = vsel %vm4237, %v3781, 0
        %v4245 = vsel %vm4237, %v3782, 0
        %v4248 = vsel %vm4237, %v3783, 0
        %v4251 = vsel %vm4237, %v3784, 0
        %v4254 = vsel %vm4237, %v3785, 0
        %v4257 = vsel %vm4237, %v3786, 0
        %v4260 = vsel %vm4237, %v3787, 0
        %v4263 = vsel %vm4237, %v3788, 0
        %v4266 = vsel %vm4237, %v3789, 0
        %v4269 = vsel %vm4237, %v3790, 0
        %v4272 = vsel %vm4237, %v3791, 0
        %v4275 = vsel %vm4237, %v3792, 0
        %v4278 = vsel %vm4237, %v3793, 0
        %v4281 = vsel %vm4237, %v3794, 0
        %v4284 = vsel %vm4237, %v3795, 0
        %vm4286 = vcmask 1043456
        %v4288 = vsel %vm4286, %v3796, 0
        %4290 = vmatprep.subr.bf16.mxu0 0
        %4291 = vmatpush1.bf16.msra.mxu0 0
        %4292 = vmatprep.subr.bf16.mxu0 0
        %4293 = vmatpush1.bf16.msra.mxu0 0
        %4294 = vmatprep.subr.bf16.mxu0 0
        %4295 = vmatpush1.bf16.msra.mxu0 0
        %4296 = vmatprep.subr.bf16.mxu0 0
        %4297 = vmatpush1.bf16.msra.mxu0 0
        %4298 = vmatprep.subr.bf16.mxu0 0
        %4299 = vmatpush1.bf16.msra.mxu0 0
        %4300 = vmatprep.subr.bf16.mxu0 0
        %4301 = vmatpush1.bf16.msra.mxu0 0
        %4302 = vmatprep.subr.bf16.mxu0 0
        %4303 = vmatpush1.bf16.msra.mxu0 0
        %4304 = vmatprep.subr.bf16.mxu0 0
        %4305 = vmatpush1.bf16.msra.mxu0 %v4288
        %4306 = vmatprep.subr.bf16.mxu0 0
        %4307 = vmatpush2.bf16.msra.mxu0 0
        %4308 = vmatprep.subr.bf16.mxu0 0
        %4309 = vmatpush2.bf16.msra.mxu0 0
        %4310 = vmatprep.subr.bf16.mxu0 0
        %4311 = vmatpush2.bf16.msra.mxu0 0
        %4312 = vmatprep.subr.bf16.mxu0 0
        %4313 = vmatpush2.bf16.msra.mxu0 0
        %4314 = vmatprep.subr.bf16.mxu0 0
        %4315 = vmatpush2.bf16.msra.mxu0 0
        %4316 = vmatprep.subr.bf16.mxu0 0
        %4317 = vmatpush2.bf16.msra.mxu0 0
        %4318 = vmatprep.subr.bf16.mxu0 0
        %4319 = vmatpush2.bf16.msra.mxu0 0
        %4320 = vmatprep.subr.bf16.mxu0 0
        %4321 = vmatpush2.bf16.msra.mxu0 0
        %4322 = vmatprep.mubr.bf16.mxu0 0
        %4323 = vmatmul.mubr.bf16.gmra.mxu0 %v4239
        %v4324 = vpop.f32.mrf.mxu0
        %v4325 = vadd.f32 %v4111, %v4324
        %v4326 = vpop.f32.mrf.mxu0
        %v4327 = vpop.f32.mrf.mxu0
        %v4328 = vadd.f32 %v4114, %v4327
        %v4329 = vpop.f32.mrf.mxu0
        %4330 = vmatprep.mubr.bf16.mxu0 0
        %4331 = vmatmul.mubr.bf16.gmra.mxu0 %v4242
        %v4332 = vpop.f32.mrf.mxu0
        %v4333 = vadd.f32 %v4119, %v4332
        %v4334 = vpop.f32.mrf.mxu0
        %v4335 = vpop.f32.mrf.mxu0
        %v4336 = vadd.f32 %v4122, %v4335
        %v4337 = vpop.f32.mrf.mxu0
        %4338 = vmatprep.mubr.bf16.mxu0 0
        %4339 = vmatmul.mubr.bf16.gmra.mxu0 %v4245
        %v4340 = vpop.f32.mrf.mxu0
        %v4341 = vadd.f32 %v4127, %v4340
        %v4342 = vpop.f32.mrf.mxu0
        %v4343 = vpop.f32.mrf.mxu0
        %v4344 = vadd.f32 %v4130, %v4343
        %v4345 = vpop.f32.mrf.mxu0
        %4346 = vmatprep.mubr.bf16.mxu0 0
        %4347 = vmatmul.mubr.bf16.gmra.mxu0 %v4248
        %v4348 = vpop.f32.mrf.mxu0
        %v4349 = vadd.f32 %v4135, %v4348
        %v4350 = vpop.f32.mrf.mxu0
        %v4351 = vpop.f32.mrf.mxu0
        %v4352 = vadd.f32 %v4138, %v4351
        %v4353 = vpop.f32.mrf.mxu0
        %4354 = vmatprep.mubr.bf16.mxu0 0
        %4355 = vmatmul.mubr.bf16.gmra.mxu0 %v4251
        %v4356 = vpop.f32.mrf.mxu0
        %v4357 = vadd.f32 %v4143, %v4356
        %v4358 = vpop.f32.mrf.mxu0
        %v4359 = vpop.f32.mrf.mxu0
        %v4360 = vadd.f32 %v4146, %v4359
        %v4361 = vpop.f32.mrf.mxu0
        %4362 = vmatprep.mubr.bf16.mxu0 0
        %4363 = vmatmul.mubr.bf16.gmra.mxu0 %v4254
        %v4364 = vpop.f32.mrf.mxu0
        %v4365 = vadd.f32 %v4151, %v4364
        %v4366 = vpop.f32.mrf.mxu0
        %v4367 = vpop.f32.mrf.mxu0
        %v4368 = vadd.f32 %v4154, %v4367
        %v4369 = vpop.f32.mrf.mxu0
        %4370 = vmatprep.mubr.bf16.mxu0 0
        %4371 = vmatmul.mubr.bf16.gmra.mxu0 %v4257
        %v4372 = vpop.f32.mrf.mxu0
        %v4373 = vadd.f32 %v4159, %v4372
        %v4374 = vpop.f32.mrf.mxu0
        %v4375 = vpop.f32.mrf.mxu0
        %v4376 = vadd.f32 %v4162, %v4375
        %v4377 = vpop.f32.mrf.mxu0
        %4378 = vmatprep.mubr.bf16.mxu0 0
        %4379 = vmatmul.mubr.bf16.gmra.mxu0 %v4260
        %v4380 = vpop.f32.mrf.mxu0
        %v4381 = vadd.f32 %v4167, %v4380
        %v4382 = vpop.f32.mrf.mxu0
        %v4383 = vpop.f32.mrf.mxu0
        %v4384 = vadd.f32 %v4170, %v4383
        %v4385 = vpop.f32.mrf.mxu0
        %4386 = vmatprep.mubr.bf16.mxu0 0
        %4387 = vmatmul.mubr.bf16.gmra.mxu0 %v4263
        %v4388 = vpop.f32.mrf.mxu0
        %v4389 = vadd.f32 %v4175, %v4388
        %v4390 = vpop.f32.mrf.mxu0
        %v4391 = vpop.f32.mrf.mxu0
        %v4392 = vadd.f32 %v4178, %v4391
        %v4393 = vpop.f32.mrf.mxu0
        %4394 = vmatprep.mubr.bf16.mxu0 0
        %4395 = vmatmul.mubr.bf16.gmra.mxu0 %v4266
        %v4396 = vpop.f32.mrf.mxu0
        %v4397 = vadd.f32 %v4183, %v4396
        %v4398 = vpop.f32.mrf.mxu0
        %v4399 = vpop.f32.mrf.mxu0
        %v4400 = vadd.f32 %v4186, %v4399
        %v4401 = vpop.f32.mrf.mxu0
        %4402 = vmatprep.mubr.bf16.mxu0 0
        %4403 = vmatmul.mubr.bf16.gmra.mxu0 %v4269
        %v4404 = vpop.f32.mrf.mxu0
        %v4405 = vadd.f32 %v4191, %v4404
        %v4406 = vpop.f32.mrf.mxu0
        %v4407 = vpop.f32.mrf.mxu0
        %v4408 = vadd.f32 %v4194, %v4407
        %v4409 = vpop.f32.mrf.mxu0
        %4410 = vmatprep.mubr.bf16.mxu0 0
        %4411 = vmatmul.mubr.bf16.gmra.mxu0 %v4272
        %v4412 = vpop.f32.mrf.mxu0
        %v4413 = vadd.f32 %v4199, %v4412
        %v4414 = vpop.f32.mrf.mxu0
        %v4415 = vpop.f32.mrf.mxu0
        %v4416 = vadd.f32 %v4202, %v4415
        %v4417 = vpop.f32.mrf.mxu0
        %4418 = vmatprep.mubr.bf16.mxu0 0
        %4419 = vmatmul.mubr.bf16.gmra.mxu0 %v4275
        %v4420 = vpop.f32.mrf.mxu0
        %v4421 = vadd.f32 %v4207, %v4420
        %v4422 = vpop.f32.mrf.mxu0
        %v4423 = vpop.f32.mrf.mxu0
        %v4424 = vadd.f32 %v4210, %v4423
        %v4425 = vpop.f32.mrf.mxu0
        %4426 = vmatprep.mubr.bf16.mxu0 0
        %4427 = vmatmul.mubr.bf16.gmra.mxu0 %v4278
        %v4428 = vpop.f32.mrf.mxu0
        %v4429 = vadd.f32 %v4215, %v4428
        %v4430 = vpop.f32.mrf.mxu0
        %v4431 = vpop.f32.mrf.mxu0
        %v4432 = vadd.f32 %v4218, %v4431
        %v4433 = vpop.f32.mrf.mxu0
        %4434 = vmatprep.mubr.bf16.mxu0 0
        %4435 = vmatmul.mubr.bf16.gmra.mxu0 %v4281
        %v4436 = vpop.f32.mrf.mxu0
        %v4437 = vadd.f32 %v4223, %v4436
        %v4438 = vpop.f32.mrf.mxu0
        %v4439 = vpop.f32.mrf.mxu0
        %v4440 = vadd.f32 %v4226, %v4439
        %v4441 = vpop.f32.mrf.mxu0
        %4442 = vmatprep.mubr.bf16.mxu0 0
        %4443 = vmatmul.mubr.bf16.gmra.mxu0 %v4284
        %v4444 = vpop.f32.mrf.mxu0
        %v4445 = vadd.f32 %v4231, %v4444
        %v4446 = vpop.f32.mrf.mxu0
        %v4447 = vpop.f32.mrf.mxu0
        %v4448 = vadd.f32 %v4234, %v4447
        %v4449 = vpop.f32.mrf.mxu0
        %4450 = vdwg.mxu0
        %vm4451 = vcmask 261120
        %4452 = vst.msk [vmem:[%s822] sm:$0xff] %vm4451, %v4325
        %4453 = vst.msk [vmem:[%s822 + $0x8] sm:$0xff] %vm4451, %v4328
        %4454 = vst.msk [vmem:[%s822 + $0x10] sm:$0xff] %vm4451, %v4333
        %4455 = vst.msk [vmem:[%s822 + $0x18] sm:$0xff] %vm4451, %v4336
        %4456 = vst.msk [vmem:[%s822 + $0x20] sm:$0xff] %vm4451, %v4341
        %4457 = vst.msk [vmem:[%s822 + $0x28] sm:$0xff] %vm4451, %v4344
        %4458 = vst.msk [vmem:[%s822 + $0x30] sm:$0xff] %vm4451, %v4349
        %4459 = vst.msk [vmem:[%s822 + $0x38] sm:$0xff] %vm4451, %v4352
        %4460 = vst.msk [vmem:[%s822 + $0x40] sm:$0xff] %vm4451, %v4357
        %4461 = vst.msk [vmem:[%s822 + $0x48] sm:$0xff] %vm4451, %v4360
        %4462 = vst.msk [vmem:[%s822 + $0x50] sm:$0xff] %vm4451, %v4365
        %4463 = vst.msk [vmem:[%s822 + $0x58] sm:$0xff] %vm4451, %v4368
        %4464 = vst.msk [vmem:[%s822 + $0x60] sm:$0xff] %vm4451, %v4373
        %4465 = vst.msk [vmem:[%s822 + $0x68] sm:$0xff] %vm4451, %v4376
        %4466 = vst.msk [vmem:[%s822 + $0x70] sm:$0xff] %vm4451, %v4381
        %4467 = vst.msk [vmem:[%s822 + $0x78] sm:$0xff] %vm4451, %v4384
        %4468 = vst.msk [vmem:[%s822 + $0x80] sm:$0xff] %vm4451, %v4389
        %4469 = vst.msk [vmem:[%s822 + $0x88] sm:$0xff] %vm4451, %v4392
        %4470 = vst.msk [vmem:[%s822 + $0x90] sm:$0xff] %vm4451, %v4397
        %4471 = vst.msk [vmem:[%s822 + $0x98] sm:$0xff] %vm4451, %v4400
        %4472 = vst.msk [vmem:[%s822 + $0xa0] sm:$0xff] %vm4451, %v4405
        %4473 = vst.msk [vmem:[%s822 + $0xa8] sm:$0xff] %vm4451, %v4408
        %4474 = vst.msk [vmem:[%s822 + $0xb0] sm:$0xff] %vm4451, %v4413
        %4475 = vst.msk [vmem:[%s822 + $0xb8] sm:$0xff] %vm4451, %v4416
        %4476 = vst.msk [vmem:[%s822 + $0xc0] sm:$0xff] %vm4451, %v4421
        %4477 = vst.msk [vmem:[%s822 + $0xc8] sm:$0xff] %vm4451, %v4424
        %4478 = vst.msk [vmem:[%s822 + $0xd0] sm:$0xff] %vm4451, %v4429
        %4479 = vst.msk [vmem:[%s822 + $0xd8] sm:$0xff] %vm4451, %v4432
        %4480 = vst.msk [vmem:[%s822 + $0xe0] sm:$0xff] %vm4451, %v4437
        %4481 = vst.msk [vmem:[%s822 + $0xe8] sm:$0xff] %vm4451, %v4440
        %4482 = vst.msk [vmem:[%s822 + $0xf0] sm:$0xff] %vm4451, %v4445
        %4483 = vst.msk [vmem:[%s822 + $0xf8] sm:$0xff] %vm4451, %v4448
      $region104: #{tpu_custom_call.1} parent=91 // pred_fallthru
        _
      %s4484 = smul.u32 32, %s33
      %p4485 = scmp.lt.s32.totalorder %s4484, 31
      %s4486 = scalar_select %p4485, %s4484, 31
      %s4487 = smul.addr %s4486, 8
      %s4488 = scalar_lea.vmem %s18, %s4487
      // Predicated region
      $region105: #{tpu_custom_call.1} parent=91 // pred_check
        %p4489 = pneg %p503
      $region106: #{tpu_custom_call.1} parent=91 // pred_check_branch
        %4491 = sbr.rel (%p4489) target = $region108
      $region107: #{tpu_custom_call.1} parent=91 // pred_region
        %s4492 = smul.u32 32, %s33
      $region108: #{tpu_custom_call.1} parent=91 // pred_fallthru
        _
      // Predicated region
      $region109: #{tpu_custom_call.1} parent=91 // pred_check
        %p4493 = pneg %p503
      $region110: #{tpu_custom_call.1} parent=91 // pred_check_branch
        %4495 = sbr.rel (%p4493) target = $region112
      $region111: #{tpu_custom_call.1} parent=91 // pred_region
        %s4496 = smul.u32 32, %s33
        %p4497 = scmp.lt.s32.totalorder %s4496, 31
        %s4498 = scalar_select %p4497, %s4496, 31
        %s4499 = smul.addr %s4498, 8
        %s4500 = scalar_lea.vmem %s18, %s4499
      $region112: #{tpu_custom_call.1} parent=91 // pred_fallthru
        _
    $region92: #{tpu_custom_call.1} parent=5 // pred_fallthru
      _
    %p4501 = scmp.le.s32.totalorder 2, %s24
    // Predicated region
    $region113: #{tpu_custom_call.1} parent=5 // pred_check
      %p4502 = pneg %p4501
    $region114: #{tpu_custom_call.1} parent=5 // pred_check_branch
      %4504 = sbr.rel (%p4502) target = $region116
    $region115: #{tpu_custom_call.1} parent=5 // pred_region
      %s4505 = ssub.s32 %s24, 2
    $region116: #{tpu_custom_call.1} parent=5 // pred_fallthru
      _
  $region6: #{tpu_custom_call.1} parent=0 // loop_footer
    %s28 = sadd.s32 1, %s24
  $region7: #{tpu_custom_call.1} parent=0 // loop_footer_branch
    %23 = sbr.rel target = $region3
  $region8: #{tpu_custom_call.1} parent=0 // loop_exit
    _

</llo_original>
